<compile_context>
chip_gen: v7x
topology: tpu7x:2x2x1
jax: 0.10.0
libtpu: 0.0.40
codegen_flags: <defaults>
</compile_context>

<pallas_src>
import functools

import numpy as np
import jax
import jax.numpy as jnp
from jax.experimental import pallas as pl
from jax.experimental.pallas import tpu as pltpu


def _round_up(x, m):
    return (x + m - 1) // m * m


# ----------------------------------------------------------------------------
# Kernel 1: per-frame STFT energy via Parseval (no DFT matmuls).
# ----------------------------------------------------------------------------
def _frame_energy_kernel(n_fft, tile_t, y_ref, w_ref, w2_ref, aw_ref, fe_ref):
    # y_ref : (B, n_blocks_pad, hop)  hop-blocked padded waveform (resident)
    # w_ref : (R, hop)   hann window split into hop-sized segments
    # w2_ref: (R, hop)   hann^2 segments
    # aw_ref: (R, hop)   (-1)^n * hann segments
    # fe_ref: (B, tile_t) frame energies for this frame tile (lane-dense)
    i = pl.program_id(0)
    t0 = pl.multiple_of(i * tile_t, tile_t)
    B = y_ref.shape[0]
    R = w_ref.shape[0]

    s1 = jnp.zeros((B, tile_t), jnp.float32)   # sum(w * frame)
    s2 = jnp.zeros((B, tile_t), jnp.float32)   # sum((w * frame)^2)
    s3 = jnp.zeros((B, tile_t), jnp.float32)   # sum((-1)^n * w * frame)
    for j in range(R):                         # static unroll, R = n_fft // hop
        ys = y_ref[:, pl.ds(t0 + j, tile_t), :]          # (B, tile_t, hop)
        wj = w_ref[pl.ds(j, 1), :]                       # (1, hop)
        w2j = w2_ref[pl.ds(j, 1), :]
        awj = aw_ref[pl.ds(j, 1), :]
        s1 = s1 + jnp.sum(ys * wj, axis=-1)
        s2 = s2 + jnp.sum((ys * ys) * w2j, axis=-1)
        s3 = s3 + jnp.sum(ys * awj, axis=-1)

    # Onesided power sum (exact Parseval identity for real frames).
    power = 0.5 * (n_fft * s2 + s1 * s1 + s3 * s3)
    fe_ref[...] = jnp.sqrt(jnp.maximum(power, 1e-10))


# ----------------------------------------------------------------------------
# Kernel 2: token-averaged energy + norm_by_average.
# ----------------------------------------------------------------------------
def _token_avg_kernel(tile_k, fe_ref, st_ref, en_ref, out_ref):
    # fe_ref : (T_pad, B)   frame energies, time on sublanes
    # st_ref : (B, K_pad)   int32 token start frames (clamped to T)
    # en_ref : (B, K_pad)   int32 token end frames   (clamped to T)
    # out_ref: (B, K_pad)   token-averaged, normalised energy (resident)
    k = pl.program_id(0)
    k0 = pl.multiple_of(k * tile_k, tile_k)
    T_pad, B = fe_ref.shape

    # time index along sublanes, token along lanes (hoisted out of the b loop)
    t_idx = jax.lax.broadcasted_iota(jnp.int32, (T_pad, tile_k), 0)
    for b in range(B):                                   # static unroll, small B
        st = st_ref[pl.ds(b, 1), pl.ds(k0, tile_k)]      # (1, tile_k)
        en = en_ref[pl.ds(b, 1), pl.ds(k0, tile_k)]      # (1, tile_k)
        mask = ((t_idx >= st) & (t_idx < en)).astype(jnp.float32)  # (T_pad, tk)
        fe_col = fe_ref[:, pl.ds(b, 1)]                  # (T_pad, 1)
        sums = jnp.sum(mask * fe_col, axis=0, keepdims=True)       # (1, tile_k)
        counts = (en - st).astype(jnp.float32)
        inv = pl.reciprocal(jnp.maximum(counts, 1.0), approx=True)
        out_ref[pl.ds(b, 1), pl.ds(k0, tile_k)] = jnp.where(
            counts > 0.0, sums * inv, 0.0)

    # norm_by_average: the module divides the WHOLE batch by the mean of the
    # non-zero token energies of batch row 0 (matches the PyTorch reference).
    @pl.when(k == pl.num_programs(0) - 1)
    def _():
        row0 = out_ref[pl.ds(0, 1), :]                   # (1, K_pad)
        nz = (row0 != 0.0).astype(jnp.float32)
        denom = jnp.maximum(jnp.sum(nz, axis=-1, keepdims=True), 1.0)
        avg = jnp.sum(row0 * nz, axis=-1, keepdims=True) / denom    # (1, 1)
        out_ref[...] = out_ref[...] * pl.reciprocal(avg, approx=True)


# ----------------------------------------------------------------------------
# Wrapper mirroring EnergyCalculator.forward (feats_lengths=None, full wave
# lengths, use_token_averaged_energy=True, norm_by_average=True).
# ----------------------------------------------------------------------------
def energy_calculator(input_waves, durations, *, n_fft=256, hop_length=64,
                      tile_t=128, tile_k=128):
    B, L = input_waves.shape
    n_tok = durations.shape[1]
    hop = hop_length
    assert n_fft % hop == 0, "hop_length must divide n_fft"
    R = n_fft // hop

    # --- center=True STFT framing (torch.stft: reflect pad of n_fft//2) ----
    pad = n_fft // 2
    x = jnp.pad(input_waves.astype(jnp.float32), ((0, 0), (pad, pad)),
                mode="reflect")
    T = L // hop + 1                              # number of STFT frames
    T_pad = _round_up(T, tile_t)
    num_tiles = T_pad // tile_t
    n_blocks_pad = _round_up(T_pad + R - 1, 8)
    target_len = n_blocks_pad * hop
    cur = x.shape[1]
    if cur < target_len:
        x = jnp.pad(x, ((0, 0), (0, target_len - cur)))
    else:
        x = x[:, :target_len]
    # hop-blocked waveform: NO overlapping-frame materialisation (no 4x HBM).
    y2d = x.reshape(B, n_blocks_pad, hop)

    # --- periodic Hann window split into hop-sized segments ----------------
    n = jnp.arange(n_fft, dtype=jnp.float32)
    w = 0.5 - 0.5 * jnp.cos(2.0 * jnp.pi * n / n_fft)
    sign = jnp.where(jnp.arange(n_fft) % 2 == 0, 1.0, -1.0).astype(jnp.float32)
    w_seg = w.reshape(R, hop)
    w2_seg = (w * w).reshape(R, hop)
    aw_seg = (w * sign).reshape(R, hop)

    # --- kernel 1: per-frame energies, grid over frame tiles ---------------
    fe = pl.pallas_call(
        functools.partial(_frame_energy_kernel, float(n_fft), tile_t),
        out_shape=jax.ShapeDtypeStruct((B, T_pad), jnp.float32),
        grid=(num_tiles,),
        in_specs=[
            pl.BlockSpec((B, n_blocks_pad, hop), lambda i: (0, 0, 0)),
            pl.BlockSpec((R, hop), lambda i: (0, 0)),
            pl.BlockSpec((R, hop), lambda i: (0, 0)),
            pl.BlockSpec((R, hop), lambda i: (0, 0)),
        ],
        out_specs=pl.BlockSpec((B, tile_t), lambda i: (0, i)),
        compiler_params=pltpu.CompilerParams(
            dimension_semantics=("parallel",),
            vmem_limit_bytes=32 * 1024 * 1024),
    )(y2d, w_seg, w2_seg, aw_seg)

    # --- token frame boundaries (clamped to T, padded to tile_k) -----------
    durations = durations.astype(jnp.int32)
    dcum = jnp.cumsum(durations, axis=1)
    starts = jnp.concatenate([jnp.zeros((B, 1), jnp.int32), dcum[:, :-1]], axis=1)
    ends = dcum
    starts = jnp.minimum(starts, T)   # torch slicing clamps to sequence length
    ends = jnp.minimum(ends, T)
    K_pad = _round_up(n_tok, tile_k)
    num_k_tiles = K_pad // tile_k
    pad_k = K_pad - n_tok
    starts = jnp.pad(starts, ((0, 0), (0, pad_k)))   # padded tokens: start=end=0
    ends = jnp.pad(ends, ((0, 0), (0, pad_k)))

    # --- kernel 2: token averaging + norm_by_average -----------------------
    feT = fe.T                                       # (T_pad, B): layout plumbing
    tok = pl.pallas_call(
        functools.partial(_token_avg_kernel, tile_k),
        out_shape=jax.ShapeDtypeStruct((B, K_pad), jnp.float32),
        grid=(num_k_tiles,),
        in_specs=[
            pl.BlockSpec((T_pad, B), lambda k: (0, 0)),
            pl.BlockSpec((B, K_pad), lambda k: (0, 0)),
            pl.BlockSpec((B, K_pad), lambda k: (0, 0)),
        ],
        out_specs=pl.BlockSpec((B, K_pad), lambda k: (0, 0)),
        compiler_params=pltpu.CompilerParams(
            dimension_semantics=("arbitrary",),
            vmem_limit_bytes=32 * 1024 * 1024),
    )(feT, starts, ends)

    energy = tok[:, :n_tok].reshape(B, n_tok, 1)     # .unsqueeze(-1)
    energy_lengths = jnp.full((B,), n_tok, dtype=jnp.int32)  # durations_lengths
    return energy, energy_lengths


# ----------------------------------------------------------------------------
# NumPy reference (rfft-based) reproducing the PyTorch semantics.
# ----------------------------------------------------------------------------
def _reference_energy(waves, durations, n_fft, hop):
    waves = np.asarray(waves, np.float64)
    B, L = waves.shape
    pad = n_fft // 2
    x = np.pad(waves, ((0, 0), (pad, pad)), mode="reflect")
    T = L // hop + 1
    nn = np.arange(n_fft)
    win = 0.5 - 0.5 * np.cos(2.0 * np.pi * nn / n_fft)
    energies = np.zeros((B, T))
    for b in range(B):
        for t in range(T):
            fr = x[b, t * hop:t * hop + n_fft] * win
            spec = np.fft.rfft(fr, n=n_fft)
            energies[b, t] = np.sqrt(max(np.sum(np.abs(spec) ** 2), 1e-10))
    durations = np.asarray(durations)
    N = durations.shape[1]
    tok = np.zeros((B, N))
    for b in range(B):
        cs = np.concatenate([[0], np.cumsum(durations[b])])
        for j in range(N):
            s, e = int(cs[j]), int(cs[j + 1])
            tok[b, j] = energies[b, s:e].mean() if e > s else 0.0
    avg = tok[0][tok[0] != 0.0].mean()
    return (tok / avg)[..., None]


if __name__ == "__main__":
    # B=2 waveforms of 16384 samples, n_fft=256, hop=64 -> 257 STFT frames
    # (3 frame tiles of 128), 8 tokens per utterance (durations sum to 257).
    B, L = 2, 16384
    n_fft, hop = 256, 64
    key = jax.random.PRNGKey(0)
    waves = jax.random.normal(key, (B, L), dtype=jnp.float32)
    durations = jnp.array([[30, 40, 25, 35, 28, 33, 36, 30],
                           [20, 45, 30, 30, 40, 25, 37, 30]], dtype=jnp.int32)

    energy, energy_lengths = energy_calculator(
        waves, durations, n_fft=n_fft, hop_length=hop)
    energy = jax.block_until_ready(energy)
    energy_lengths = jax.block_until_ready(energy_lengths)

    ref = _reference_energy(np.asarray(waves), np.asarray(durations), n_fft, hop)
    assert energy.shape == (B, durations.shape[1], 1), energy.shape
    np.testing.assert_allclose(np.asarray(energy), ref, rtol=3e-2, atol=3e-2)

    print("KERNEL_OK")
</pallas_src>

<mosaic_0001>
module attributes {stable_mosaic.version = 11 : i64} {
  func.func @_frame_energy_kernel(%arg0: i32, %arg1: memref<2x392x64xf32, #tpu.memory_space<vmem>>, %arg2: memref<4x64xf32, #tpu.memory_space<vmem>>, %arg3: memref<4x64xf32, #tpu.memory_space<vmem>>, %arg4: memref<4x64xf32, #tpu.memory_space<vmem>>, %arg5: memref<2x128xf32, #tpu.memory_space<vmem>>) attributes {dimension_semantics = [#tpu.dimension_semantics<parallel>], iteration_bounds = array<i64: 3>, scalar_prefetch = 0 : i64, scratch_operands = 0 : i64, tpu.core_type = #tpu.core_type<tc>, window_params = [{pipeline_mode = #tpu.pipeline_mode<synchronous>, transform_indices = @transform_0, window_bounds = array<i64: 2, 392, 64>}, {pipeline_mode = #tpu.pipeline_mode<synchronous>, transform_indices = @transform_1, window_bounds = array<i64: 4, 64>}, {pipeline_mode = #tpu.pipeline_mode<synchronous>, transform_indices = @transform_2, window_bounds = array<i64: 4, 64>}, {pipeline_mode = #tpu.pipeline_mode<synchronous>, transform_indices = @transform_3, window_bounds = array<i64: 4, 64>}, {transform_indices = @transform_4, window_bounds = array<i64: 2, 128>}]} {
    %c128_i32 = arith.constant 128 : i32
    %0 = arith.muli %arg0, %c128_i32 : i32
    %1 = tpu.assume_multiple %0, 128 : i32
    %cst = arith.constant 0.000000e+00 : f32
    %2 = vector.broadcast %cst : f32 to vector<2x128xf32>
    %cst_0 = arith.constant 0.000000e+00 : f32
    %3 = vector.broadcast %cst_0 : f32 to vector<2x128xf32>
    %cst_1 = arith.constant 0.000000e+00 : f32
    %4 = vector.broadcast %cst_1 : f32 to vector<2x128xf32>
    %c0_i32 = arith.constant 0 : i32
    %5 = arith.addi %1, %c0_i32 : i32
    %c0 = arith.constant 0 : index
    %6 = arith.index_cast %5 : i32 to index
    %c0_2 = arith.constant 0 : index
    %7 = vector.load %arg1[%c0, %6, %c0_2] : memref<2x392x64xf32, #tpu.memory_space<vmem>>, vector<2x128x64xf32>
    %c0_3 = arith.constant 0 : index
    %c0_4 = arith.constant 0 : index
    %8 = vector.load %arg2[%c0_3, %c0_4] : memref<4x64xf32, #tpu.memory_space<vmem>>, vector<1x64xf32>
    %c0_5 = arith.constant 0 : index
    %c0_6 = arith.constant 0 : index
    %9 = vector.load %arg3[%c0_5, %c0_6] : memref<4x64xf32, #tpu.memory_space<vmem>>, vector<1x64xf32>
    %c0_7 = arith.constant 0 : index
    %c0_8 = arith.constant 0 : index
    %10 = vector.load %arg4[%c0_7, %c0_8] : memref<4x64xf32, #tpu.memory_space<vmem>>, vector<1x64xf32>
    %11 = vector.shape_cast %8 : vector<1x64xf32> to vector<1x1x64xf32>
    %12 = vector.broadcast %11 : vector<1x1x64xf32> to vector<2x128x64xf32>
    %13 = arith.mulf %7, %12 : vector<2x128x64xf32>
    %cst_9 = arith.constant dense<0.000000e+00> : vector<2x128xf32>
    %14 = vector.multi_reduction <add>, %13, %cst_9 [2] : vector<2x128x64xf32> to vector<2x128xf32>
    %15 = arith.addf %2, %14 : vector<2x128xf32>
    %16 = arith.mulf %7, %7 : vector<2x128x64xf32>
    %17 = vector.shape_cast %9 : vector<1x64xf32> to vector<1x1x64xf32>
    %18 = vector.broadcast %17 : vector<1x1x64xf32> to vector<2x128x64xf32>
    %19 = arith.mulf %16, %18 : vector<2x128x64xf32>
    %cst_10 = arith.constant dense<0.000000e+00> : vector<2x128xf32>
    %20 = vector.multi_reduction <add>, %19, %cst_10 [2] : vector<2x128x64xf32> to vector<2x128xf32>
    %21 = arith.addf %3, %20 : vector<2x128xf32>
    %22 = vector.shape_cast %10 : vector<1x64xf32> to vector<1x1x64xf32>
    %23 = vector.broadcast %22 : vector<1x1x64xf32> to vector<2x128x64xf32>
    %24 = arith.mulf %7, %23 : vector<2x128x64xf32>
    %cst_11 = arith.constant dense<0.000000e+00> : vector<2x128xf32>
    %25 = vector.multi_reduction <add>, %24, %cst_11 [2] : vector<2x128x64xf32> to vector<2x128xf32>
    %26 = arith.addf %4, %25 : vector<2x128xf32>
    %c1_i32 = arith.constant 1 : i32
    %27 = arith.addi %1, %c1_i32 : i32
    %c0_12 = arith.constant 0 : index
    %28 = arith.index_cast %27 : i32 to index
    %c0_13 = arith.constant 0 : index
    %29 = vector.load %arg1[%c0_12, %28, %c0_13] : memref<2x392x64xf32, #tpu.memory_space<vmem>>, vector<2x128x64xf32>
    %c1 = arith.constant 1 : index
    %c0_14 = arith.constant 0 : index
    %30 = vector.load %arg2[%c1, %c0_14] : memref<4x64xf32, #tpu.memory_space<vmem>>, vector<1x64xf32>
    %c1_15 = arith.constant 1 : index
    %c0_16 = arith.constant 0 : index
    %31 = vector.load %arg3[%c1_15, %c0_16] : memref<4x64xf32, #tpu.memory_space<vmem>>, vector<1x64xf32>
    %c1_17 = arith.constant 1 : index
    %c0_18 = arith.constant 0 : index
    %32 = vector.load %arg4[%c1_17, %c0_18] : memref<4x64xf32, #tpu.memory_space<vmem>>, vector<1x64xf32>
    %33 = vector.shape_cast %30 : vector<1x64xf32> to vector<1x1x64xf32>
    %34 = vector.broadcast %33 : vector<1x1x64xf32> to vector<2x128x64xf32>
    %35 = arith.mulf %29, %34 : vector<2x128x64xf32>
    %cst_19 = arith.constant dense<0.000000e+00> : vector<2x128xf32>
    %36 = vector.multi_reduction <add>, %35, %cst_19 [2] : vector<2x128x64xf32> to vector<2x128xf32>
    %37 = arith.addf %15, %36 : vector<2x128xf32>
    %38 = arith.mulf %29, %29 : vector<2x128x64xf32>
    %39 = vector.shape_cast %31 : vector<1x64xf32> to vector<1x1x64xf32>
    %40 = vector.broadcast %39 : vector<1x1x64xf32> to vector<2x128x64xf32>
    %41 = arith.mulf %38, %40 : vector<2x128x64xf32>
    %cst_20 = arith.constant dense<0.000000e+00> : vector<2x128xf32>
    %42 = vector.multi_reduction <add>, %41, %cst_20 [2] : vector<2x128x64xf32> to vector<2x128xf32>
    %43 = arith.addf %21, %42 : vector<2x128xf32>
    %44 = vector.shape_cast %32 : vector<1x64xf32> to vector<1x1x64xf32>
    %45 = vector.broadcast %44 : vector<1x1x64xf32> to vector<2x128x64xf32>
    %46 = arith.mulf %29, %45 : vector<2x128x64xf32>
    %cst_21 = arith.constant dense<0.000000e+00> : vector<2x128xf32>
    %47 = vector.multi_reduction <add>, %46, %cst_21 [2] : vector<2x128x64xf32> to vector<2x128xf32>
    %48 = arith.addf %26, %47 : vector<2x128xf32>
    %c2_i32 = arith.constant 2 : i32
    %49 = arith.addi %1, %c2_i32 : i32
    %c0_22 = arith.constant 0 : index
    %50 = arith.index_cast %49 : i32 to index
    %c0_23 = arith.constant 0 : index
    %51 = vector.load %arg1[%c0_22, %50, %c0_23] : memref<2x392x64xf32, #tpu.memory_space<vmem>>, vector<2x128x64xf32>
    %c2 = arith.constant 2 : index
    %c0_24 = arith.constant 0 : index
    %52 = vector.load %arg2[%c2, %c0_24] : memref<4x64xf32, #tpu.memory_space<vmem>>, vector<1x64xf32>
    %c2_25 = arith.constant 2 : index
    %c0_26 = arith.constant 0 : index
    %53 = vector.load %arg3[%c2_25, %c0_26] : memref<4x64xf32, #tpu.memory_space<vmem>>, vector<1x64xf32>
    %c2_27 = arith.constant 2 : index
    %c0_28 = arith.constant 0 : index
    %54 = vector.load %arg4[%c2_27, %c0_28] : memref<4x64xf32, #tpu.memory_space<vmem>>, vector<1x64xf32>
    %55 = vector.shape_cast %52 : vector<1x64xf32> to vector<1x1x64xf32>
    %56 = vector.broadcast %55 : vector<1x1x64xf32> to vector<2x128x64xf32>
    %57 = arith.mulf %51, %56 : vector<2x128x64xf32>
    %cst_29 = arith.constant dense<0.000000e+00> : vector<2x128xf32>
    %58 = vector.multi_reduction <add>, %57, %cst_29 [2] : vector<2x128x64xf32> to vector<2x128xf32>
    %59 = arith.addf %37, %58 : vector<2x128xf32>
    %60 = arith.mulf %51, %51 : vector<2x128x64xf32>
    %61 = vector.shape_cast %53 : vector<1x64xf32> to vector<1x1x64xf32>
    %62 = vector.broadcast %61 : vector<1x1x64xf32> to vector<2x128x64xf32>
    %63 = arith.mulf %60, %62 : vector<2x128x64xf32>
    %cst_30 = arith.constant dense<0.000000e+00> : vector<2x128xf32>
    %64 = vector.multi_reduction <add>, %63, %cst_30 [2] : vector<2x128x64xf32> to vector<2x128xf32>
    %65 = arith.addf %43, %64 : vector<2x128xf32>
    %66 = vector.shape_cast %54 : vector<1x64xf32> to vector<1x1x64xf32>
    %67 = vector.broadcast %66 : vector<1x1x64xf32> to vector<2x128x64xf32>
    %68 = arith.mulf %51, %67 : vector<2x128x64xf32>
    %cst_31 = arith.constant dense<0.000000e+00> : vector<2x128xf32>
    %69 = vector.multi_reduction <add>, %68, %cst_31 [2] : vector<2x128x64xf32> to vector<2x128xf32>
    %70 = arith.addf %48, %69 : vector<2x128xf32>
    %c3_i32 = arith.constant 3 : i32
    %71 = arith.addi %1, %c3_i32 : i32
    %c0_32 = arith.constant 0 : index
    %72 = arith.index_cast %71 : i32 to index
    %c0_33 = arith.constant 0 : index
    %73 = vector.load %arg1[%c0_32, %72, %c0_33] : memref<2x392x64xf32, #tpu.memory_space<vmem>>, vector<2x128x64xf32>
    %c3 = arith.constant 3 : index
    %c0_34 = arith.constant 0 : index
    %74 = vector.load %arg2[%c3, %c0_34] : memref<4x64xf32, #tpu.memory_space<vmem>>, vector<1x64xf32>
    %c3_35 = arith.constant 3 : index
    %c0_36 = arith.constant 0 : index
    %75 = vector.load %arg3[%c3_35, %c0_36] : memref<4x64xf32, #tpu.memory_space<vmem>>, vector<1x64xf32>
    %c3_37 = arith.constant 3 : index
    %c0_38 = arith.constant 0 : index
    %76 = vector.load %arg4[%c3_37, %c0_38] : memref<4x64xf32, #tpu.memory_space<vmem>>, vector<1x64xf32>
    %77 = vector.shape_cast %74 : vector<1x64xf32> to vector<1x1x64xf32>
    %78 = vector.broadcast %77 : vector<1x1x64xf32> to vector<2x128x64xf32>
    %79 = arith.mulf %73, %78 : vector<2x128x64xf32>
    %cst_39 = arith.constant dense<0.000000e+00> : vector<2x128xf32>
    %80 = vector.multi_reduction <add>, %79, %cst_39 [2] : vector<2x128x64xf32> to vector<2x128xf32>
    %81 = arith.addf %59, %80 : vector<2x128xf32>
    %82 = arith.mulf %73, %73 : vector<2x128x64xf32>
    %83 = vector.shape_cast %75 : vector<1x64xf32> to vector<1x1x64xf32>
    %84 = vector.broadcast %83 : vector<1x1x64xf32> to vector<2x128x64xf32>
    %85 = arith.mulf %82, %84 : vector<2x128x64xf32>
    %cst_40 = arith.constant dense<0.000000e+00> : vector<2x128xf32>
    %86 = vector.multi_reduction <add>, %85, %cst_40 [2] : vector<2x128x64xf32> to vector<2x128xf32>
    %87 = arith.addf %65, %86 : vector<2x128xf32>
    %88 = vector.shape_cast %76 : vector<1x64xf32> to vector<1x1x64xf32>
    %89 = vector.broadcast %88 : vector<1x1x64xf32> to vector<2x128x64xf32>
    %90 = arith.mulf %73, %89 : vector<2x128x64xf32>
    %cst_41 = arith.constant dense<0.000000e+00> : vector<2x128xf32>
    %91 = vector.multi_reduction <add>, %90, %cst_41 [2] : vector<2x128x64xf32> to vector<2x128xf32>
    %92 = arith.addf %70, %91 : vector<2x128xf32>
    %cst_42 = arith.constant 2.560000e+02 : f32
    %93 = vector.broadcast %cst_42 : f32 to vector<2x128xf32>
    %94 = arith.mulf %93, %87 : vector<2x128xf32>
    %95 = arith.mulf %81, %81 : vector<2x128xf32>
    %96 = arith.addf %94, %95 : vector<2x128xf32>
    %97 = arith.mulf %92, %92 : vector<2x128xf32>
    %98 = arith.addf %96, %97 : vector<2x128xf32>
    %cst_43 = arith.constant 5.000000e-01 : f32
    %99 = vector.broadcast %cst_43 : f32 to vector<2x128xf32>
    %100 = arith.mulf %99, %98 : vector<2x128xf32>
    %cst_44 = arith.constant 1.000000e-10 : f32
    %101 = vector.broadcast %cst_44 : f32 to vector<2x128xf32>
    %102 = arith.maximumf %100, %101 : vector<2x128xf32>
    %103 = math.sqrt %102 : vector<2x128xf32>
    %c0_45 = arith.constant 0 : index
    %c0_46 = arith.constant 0 : index
    %104 = vector.load %arg5[%c0_45, %c0_46] : memref<2x128xf32, #tpu.memory_space<vmem>>, vector<2x128xf32>
    tpu.vector_store %arg5[%c0_45, %c0_46], %103 {strides = array<i32>} : memref<2x128xf32, #tpu.memory_space<vmem>>, vector<2x128xf32>,
    return
  }
  func.func @transform_0(%arg0: i32) -> (i32, i32, i32) {
    %c0_i32 = arith.constant 0 : i32
    %c0_i32_0 = arith.constant 0 : i32
    %c0_i32_1 = arith.constant 0 : i32
    %c0_i32_2 = arith.constant 0 : i32
    return %c0_i32, %c0_i32_0, %c0_i32_1 : i32, i32, i32
  }
  func.func @transform_1(%arg0: i32) -> (i32, i32) {
    %c0_i32 = arith.constant 0 : i32
    %c0_i32_0 = arith.constant 0 : i32
    %c0_i32_1 = arith.constant 0 : i32
    return %c0_i32, %c0_i32_0 : i32, i32
  }
  func.func @transform_2(%arg0: i32) -> (i32, i32) {
    %c0_i32 = arith.constant 0 : i32
    %c0_i32_0 = arith.constant 0 : i32
    %c0_i32_1 = arith.constant 0 : i32
    return %c0_i32, %c0_i32_0 : i32, i32
  }
  func.func @transform_3(%arg0: i32) -> (i32, i32) {
    %c0_i32 = arith.constant 0 : i32
    %c0_i32_0 = arith.constant 0 : i32
    %c0_i32_1 = arith.constant 0 : i32
    return %c0_i32, %c0_i32_0 : i32, i32
  }
  func.func @transform_4(%arg0: i32) -> (i32, i32) {
    %c0_i32 = arith.constant 0 : i32
    %c0_i32_0 = arith.constant 0 : i32
    return %c0_i32, %arg0 : i32, i32
  }
}

</mosaic_0001>

<llo_original>
// kernel: tpu_custom_call.1
$region0: #{tpu_custom_call.1}
  #allocation0 [shape = 'u32[]', space=smem, size = 0x4, offset = 0x4, fixed_abs, tag = 'smem constant byte address 0x4 - core index']
  #allocation1 [shape = 'u32[144,128]{1,0:T(1,128)}', space=vmem, size = 0x12000, scoped, tag = 'internal scratch']
  %s0 = inlined_call_operand.vmem [shape: f32[2,392,64], index: 0, kind: input, shape index: {}]
  %s1 = inlined_call_operand.vmem [shape: f32[4,64], index: 1, kind: input, shape index: {}]
  %s2 = inlined_call_operand.vmem [shape: f32[4,64], index: 2, kind: input, shape index: {}]
  %s3 = inlined_call_operand.vmem [shape: f32[4,64], index: 3, kind: input, shape index: {}]
  %s4 = inlined_call_operand.hbm [shape: f32[2,384], index: 4, kind: output, shape index: {}]
  %s5 = sld [smem:[#allocation0]]
  $region49: #{tpu_custom_call.1} parent=0
    _
  %s7 = ssub.s32 1, %s5
  %s8 = scalar_select 0, %s7, %s5
  $region1: #{tpu_custom_call.1} parent=0
    #allocation2 [shape = 'u8[2048]{0}', space=vmem, size = 0x800, scoped, tag = 'output window, operand 0']
    #allocation3 [shape = 's32[2]{0}', space=sflag, size = 0x8, scoped, tag = 'scoped memory for tpu_custom_call.1']
    %9 = vsyncpa [#allocation3], 0
    %s10 = scalar_lea.sflag [#allocation3], 1
    %11 = vsyncpa %s10, 0
    loop: start=0, step=1, limit=5
    $region2: #{tpu_custom_call.1} parent=1 // loop_pre_header
      _
    $region3: #{tpu_custom_call.1} parent=1 // loop_header
      %s13 = sphi 0, %s17
      %p14 = scmp.ge.s32.totalorder %s13, 5
      %s21 = sphi 0, %s21
      %s23 = sphi 0, %s21
      %s24 = sphi 0, %s23
      %s38 = sphi 0, %s24
      %s42 = sphi 0, %s42
      %s44 = sphi 0, %s42
      %s45 = sphi 0, %s44
      %s59 = sphi 0, %s45
      %s63 = sphi 0, %s63
      %s65 = sphi 0, %s63
      %s66 = sphi 0, %s65
      %s80 = sphi 0, %s66
      %s84 = sphi 0, %s84
      %s86 = sphi 0, %s84
      %s87 = sphi 0, %s86
      %s101 = sphi 0, %s87
      %s107 = sphi 0, %s109
      %s110 = sphi 0, %s107
      %s111 = sphi 0, %s110
      %s127 = sphi 0, %s111
    $region4: #{tpu_custom_call.1} parent=1 // loop_header_branch
      %16 = sbr.rel (%p14) target = $region8
    $region5: #{tpu_custom_call.1} parent=1 // loop_body
      %s18 = ssub.s32 %s13, 1
      %s19 = ssub.s32 %s13, 2
      %s20 = sadd.s32 %s13, 1
      %s22 = sadd.s32 %s21, 1
      %p25 = scmp.eq.s32.totalorder %s13, 2
      %p26 = scmp.ne.s32.totalorder %s21, %s23
      %p27 = scmp.eq.s32.totalorder %s13, 0
      %p28 = por %p26, %p27
      %p29 = scmp.ne.s32.totalorder %s21, %s23
      %p30 = scmp.eq.s32.totalorder %s18, 2
      %p31 = por %p29, %p30
      %p32 = scmp.ne.s32.totalorder %s23, %s24
      %p33 = scmp.eq.s32.totalorder %s18, 0
      %p34 = por %p32, %p33
      %p35 = scmp.ne.s32.totalorder %s23, %s24
      %p36 = scmp.eq.s32.totalorder %s19, 2
      %p37 = por %p35, %p36
      %p39 = scmp.ne.s32.totalorder %s24, %s38
      %p40 = scmp.eq.s32.totalorder %s19, 0
      %p41 = por %p39, %p40
      %s43 = sadd.s32 %s42, 1
      %p46 = scmp.eq.s32.totalorder %s13, 2
      %p47 = scmp.ne.s32.totalorder %s42, %s44
      %p48 = scmp.eq.s32.totalorder %s13, 0
      %p49 = por %p47, %p48
      %p50 = scmp.ne.s32.totalorder %s42, %s44
      %p51 = scmp.eq.s32.totalorder %s18, 2
      %p52 = por %p50, %p51
      %p53 = scmp.ne.s32.totalorder %s44, %s45
      %p54 = scmp.eq.s32.totalorder %s18, 0
      %p55 = por %p53, %p54
      %p56 = scmp.ne.s32.totalorder %s44, %s45
      %p57 = scmp.eq.s32.totalorder %s19, 2
      %p58 = por %p56, %p57
      %p60 = scmp.ne.s32.totalorder %s45, %s59
      %p61 = scmp.eq.s32.totalorder %s19, 0
      %p62 = por %p60, %p61
      %s64 = sadd.s32 %s63, 1
      %p67 = scmp.eq.s32.totalorder %s13, 2
      %p68 = scmp.ne.s32.totalorder %s63, %s65
      %p69 = scmp.eq.s32.totalorder %s13, 0
      %p70 = por %p68, %p69
      %p71 = scmp.ne.s32.totalorder %s63, %s65
      %p72 = scmp.eq.s32.totalorder %s18, 2
      %p73 = por %p71, %p72
      %p74 = scmp.ne.s32.totalorder %s65, %s66
      %p75 = scmp.eq.s32.totalorder %s18, 0
      %p76 = por %p74, %p75
      %p77 = scmp.ne.s32.totalorder %s65, %s66
      %p78 = scmp.eq.s32.totalorder %s19, 2
      %p79 = por %p77, %p78
      %p81 = scmp.ne.s32.totalorder %s66, %s80
      %p82 = scmp.eq.s32.totalorder %s19, 0
      %p83 = por %p81, %p82
      %s85 = sadd.s32 %s84, 1
      %p88 = scmp.eq.s32.totalorder %s13, 2
      %p89 = scmp.ne.s32.totalorder %s84, %s86
      %p90 = scmp.eq.s32.totalorder %s13, 0
      %p91 = por %p89, %p90
      %p92 = scmp.ne.s32.totalorder %s84, %s86
      %p93 = scmp.eq.s32.totalorder %s18, 2
      %p94 = por %p92, %p93
      %p95 = scmp.ne.s32.totalorder %s86, %s87
      %p96 = scmp.eq.s32.totalorder %s18, 0
      %p97 = por %p95, %p96
      %p98 = scmp.ne.s32.totalorder %s86, %s87
      %p99 = scmp.eq.s32.totalorder %s19, 2
      %p100 = por %p98, %p99
      %p102 = scmp.ne.s32.totalorder %s87, %s101
      %p103 = scmp.eq.s32.totalorder %s19, 0
      %p104 = por %p102, %p103
      %s105 = ssub.s32 %s13, %s20
      %p106 = scmp.eq.s32.totalorder %s105, 0
      %s108 = sadd.s32 %s107, 1
      %s109 = scalar_select %p106, %s107, %s108
      %p112 = pneg %p106
      %p113 = scmp.eq.s32.totalorder %s13, 2
      %p114 = por %p112, %p113
      %p115 = scmp.ne.s32.totalorder %s107, %s110
      %p116 = scmp.eq.s32.totalorder %s13, 0
      %p117 = por %p115, %p116
      %p118 = scmp.ne.s32.totalorder %s107, %s110
      %p119 = scmp.eq.s32.totalorder %s18, 2
      %p120 = por %p118, %p119
      %p121 = scmp.ne.s32.totalorder %s110, %s111
      %p122 = scmp.eq.s32.totalorder %s18, 0
      %p123 = por %p121, %p122
      %p124 = scmp.ne.s32.totalorder %s110, %s111
      %p125 = scmp.eq.s32.totalorder %s19, 2
      %p126 = por %p124, %p125
      %p128 = scmp.ne.s32.totalorder %s111, %s127
      %p129 = scmp.eq.s32.totalorder %s19, 0
      %p130 = por %p128, %p129
      %p131 = scmp.le.s32.totalorder 1, %s13
      %p132 = scmp.lt.s32.totalorder %s13, 4
      %p133 = pnand %p131, %p132
      %p134 = pneg %p133
      // Predicated region
      $region9: #{tpu_custom_call.1} parent=5 // pred_check
        _
      $region10: #{tpu_custom_call.1} parent=5 // pred_check_branch
        %136 = sbr.rel (%p133) target = $region12
      $region11: #{tpu_custom_call.1} parent=5 // pred_region
        %s137 = ssub.s32 %s13, 1
        // Predicated region
        $region13: #{tpu_custom_call.1} parent=11 // pred_check
          %p138 = pneg %p34
        $region14: #{tpu_custom_call.1} parent=11 // pred_check_branch
          %140 = sbr.rel (%p138) target = $region16
        $region15: #{tpu_custom_call.1} parent=11 // pred_region
          _
        $region16: #{tpu_custom_call.1} parent=11 // pred_fallthru
          _
        // Predicated region
        $region17: #{tpu_custom_call.1} parent=11 // pred_check
          %p141 = pneg %p55
        $region18: #{tpu_custom_call.1} parent=11 // pred_check_branch
          %143 = sbr.rel (%p141) target = $region20
        $region19: #{tpu_custom_call.1} parent=11 // pred_region
          _
        $region20: #{tpu_custom_call.1} parent=11 // pred_fallthru
          _
        // Predicated region
        $region21: #{tpu_custom_call.1} parent=11 // pred_check
          %p144 = pneg %p76
        $region22: #{tpu_custom_call.1} parent=11 // pred_check_branch
          %146 = sbr.rel (%p144) target = $region24
        $region23: #{tpu_custom_call.1} parent=11 // pred_region
          _
        $region24: #{tpu_custom_call.1} parent=11 // pred_fallthru
          _
        // Predicated region
        $region25: #{tpu_custom_call.1} parent=11 // pred_check
          %p147 = pneg %p97
        $region26: #{tpu_custom_call.1} parent=11 // pred_check_branch
          %149 = sbr.rel (%p147) target = $region28
        $region27: #{tpu_custom_call.1} parent=11 // pred_region
          _
        $region28: #{tpu_custom_call.1} parent=11 // pred_fallthru
          _
      $region12: #{tpu_custom_call.1} parent=5 // pred_fallthru
        _
      %p150 = scmp.lt.s32.totalorder %s13, 3
      // Predicated region
      $region29: #{tpu_custom_call.1} parent=5 // pred_check
        %p151 = pneg %p150
      $region30: #{tpu_custom_call.1} parent=5 // pred_check_branch
        %153 = sbr.rel (%p151) target = $region32
      $region31: #{tpu_custom_call.1} parent=5 // pred_region
        _
      $region32: #{tpu_custom_call.1} parent=5 // pred_fallthru
        _
      %p154 = scmp.le.s32.totalorder 1, %s13
      %p155 = scmp.lt.s32.totalorder %s13, 4
      %p156 = pnand %p154, %p155
      %p157 = pneg %p156
      // Predicated region
      $region33: #{tpu_custom_call.1} parent=5 // pred_check
        _
      $region34: #{tpu_custom_call.1} parent=5 // pred_check_branch
        %159 = sbr.rel (%p156) target = $region36
      $region35: #{tpu_custom_call.1} parent=5 // pred_region
        %s160 = ssub.s32 %s13, 1
        %p161 = pneg %p34
        %p162 = pneg %p31
        %p163 = pneg %p55
        %p164 = pneg %p52
        %p165 = pneg %p76
        %p166 = pneg %p73
        %p167 = pneg %p97
        %p168 = pneg %p94
        %p169 = pneg %p123
        %p170 = pneg %p120
        %s171 = sand.u32 %s110, 1
        %s172 = scalar_lea.sflag [#allocation3], %s171
        %s173 = sand.u32 %s110, 1
        %s174 = smul.addr %s173, 2
        %s175 = scalar_lea.vmem [#allocation2], %s174
        %s176 = smul.u32 %s18, 128
        %s177 = scalar_lea.vmem %s0, %s176
        %v178 = vld [vmem:[%s177] sm:$0xff]
        %v179 = vld [vmem:[%s177 + $0x8] sm:$0xff]
        %v180 = vld [vmem:[%s177 + $0x10] sm:$0xff]
        %v181 = vld [vmem:[%s177 + $0x18] sm:$0xff]
        %v182 = vld [vmem:[%s177 + $0x20] sm:$0xff]
        %v183 = vld [vmem:[%s177 + $0x28] sm:$0xff]
        %v184 = vld [vmem:[%s177 + $0x30] sm:$0xff]
        %v185 = vld [vmem:[%s177 + $0x38] sm:$0xff]
        %v186 = vld [vmem:[%s177 + $0x40] sm:$0xff]
        %v187 = vld [vmem:[%s177 + $0x48] sm:$0xff]
        %v188 = vld [vmem:[%s177 + $0x50] sm:$0xff]
        %v189 = vld [vmem:[%s177 + $0x58] sm:$0xff]
        %v190 = vld [vmem:[%s177 + $0x60] sm:$0xff]
        %v191 = vld [vmem:[%s177 + $0x68] sm:$0xff]
        %v192 = vld [vmem:[%s177 + $0x70] sm:$0xff]
        %v193 = vld [vmem:[%s177 + $0x78] sm:$0xff]
        %v194 = vld [vmem:[%s177 + $0x188] sm:$0xff]
        %v195 = vld [vmem:[%s177 + $0x190] sm:$0xff]
        %v196 = vld [vmem:[%s177 + $0x198] sm:$0xff]
        %v197 = vld [vmem:[%s177 + $0x1a0] sm:$0xff]
        %v198 = vld [vmem:[%s177 + $0x1a8] sm:$0xff]
        %v199 = vld [vmem:[%s177 + $0x1b0] sm:$0xff]
        %v200 = vld [vmem:[%s177 + $0x1b8] sm:$0xff]
        %v201 = vld [vmem:[%s177 + $0x1c0] sm:$0xff]
        %v202 = vld [vmem:[%s177 + $0x1c8] sm:$0xff]
        %v203 = vld [vmem:[%s177 + $0x1d0] sm:$0xff]
        %v204 = vld [vmem:[%s177 + $0x1d8] sm:$0xff]
        %v205 = vld [vmem:[%s177 + $0x1e0] sm:$0xff]
        %v206 = vld [vmem:[%s177 + $0x1e8] sm:$0xff]
        %v207 = vld [vmem:[%s177 + $0x1f0] sm:$0xff]
        %v208 = vld [vmem:[%s177 + $0x1f8] sm:$0xff]
        %v209 = vld [vmem:[%s177 + $0x200] sm:$0xff]
        %v210 = vld [vmem:[%s1] sm:$0x1]
        %v211 = vld [vmem:[%s2] sm:$0x1]
        %v212 = vld [vmem:[%s3] sm:$0x1]
        %v213 = vlaneseq
        %v214 = vshrl.u32 %v213, 7
        %v215 = vsub.s32 0, %v214
        %v216 = vrot.slane %v210, %v215
        %v217 = vmul.f32 %v178, %v216
        %v218 = vmul.f32 %v179, %v216
        %v219 = vmul.f32 %v180, %v216
        %v220 = vmul.f32 %v181, %v216
        %v221 = vmul.f32 %v182, %v216
        %v222 = vmul.f32 %v183, %v216
        %v223 = vmul.f32 %v184, %v216
        %v224 = vmul.f32 %v185, %v216
        %v225 = vmul.f32 %v186, %v216
        %v226 = vmul.f32 %v187, %v216
        %v227 = vmul.f32 %v188, %v216
        %v228 = vmul.f32 %v189, %v216
        %v229 = vmul.f32 %v190, %v216
        %v230 = vmul.f32 %v191, %v216
        %v231 = vmul.f32 %v192, %v216
        %v232 = vmul.f32 %v193, %v216
        %v233 = vmul.f32 %v194, %v216
        %v234 = vmul.f32 %v195, %v216
        %v235 = vmul.f32 %v196, %v216
        %v236 = vmul.f32 %v197, %v216
        %v237 = vmul.f32 %v198, %v216
        %v238 = vmul.f32 %v199, %v216
        %v239 = vmul.f32 %v200, %v216
        %v240 = vmul.f32 %v201, %v216
        %v241 = vmul.f32 %v202, %v216
        %v242 = vmul.f32 %v203, %v216
        %v243 = vmul.f32 %v204, %v216
        %v244 = vmul.f32 %v205, %v216
        %v245 = vmul.f32 %v206, %v216
        %v246 = vmul.f32 %v207, %v216
        %v247 = vmul.f32 %v208, %v216
        %v248 = vmul.f32 %v209, %v216
        %vm249 = vcmask 523264
        %v250 = vsel %vm249, %v217, 0.0
        %251 = vadd.xlane.f32.xlu0 %v250
        %v252 = vpop.xlane.xlu0 %251
        %v253 = vsel %vm249, %v218, 0.0
        %254 = vadd.xlane.f32.xlu0 %v253
        %v255 = vpop.xlane.xlu0 %254
        %v256 = vsel %vm249, %v219, 0.0
        %257 = vadd.xlane.f32.xlu0 %v256
        %v258 = vpop.xlane.xlu0 %257
        %v259 = vsel %vm249, %v220, 0.0
        %260 = vadd.xlane.f32.xlu0 %v259
        %v261 = vpop.xlane.xlu0 %260
        %v262 = vsel %vm249, %v221, 0.0
        %263 = vadd.xlane.f32.xlu0 %v262
        %v264 = vpop.xlane.xlu0 %263
        %v265 = vsel %vm249, %v222, 0.0
        %266 = vadd.xlane.f32.xlu0 %v265
        %v267 = vpop.xlane.xlu0 %266
        %v268 = vsel %vm249, %v223, 0.0
        %269 = vadd.xlane.f32.xlu0 %v268
        %v270 = vpop.xlane.xlu0 %269
        %v271 = vsel %vm249, %v224, 0.0
        %272 = vadd.xlane.f32.xlu0 %v271
        %v273 = vpop.xlane.xlu0 %272
        %v274 = vsel %vm249, %v225, 0.0
        %275 = vadd.xlane.f32.xlu0 %v274
        %v276 = vpop.xlane.xlu0 %275
        %v277 = vsel %vm249, %v226, 0.0
        %278 = vadd.xlane.f32.xlu0 %v277
        %v279 = vpop.xlane.xlu0 %278
        %v280 = vsel %vm249, %v227, 0.0
        %281 = vadd.xlane.f32.xlu0 %v280
        %v282 = vpop.xlane.xlu0 %281
        %v283 = vsel %vm249, %v228, 0.0
        %284 = vadd.xlane.f32.xlu0 %v283
        %v285 = vpop.xlane.xlu0 %284
        %v286 = vsel %vm249, %v229, 0.0
        %287 = vadd.xlane.f32.xlu0 %v286
        %v288 = vpop.xlane.xlu0 %287
        %v289 = vsel %vm249, %v230, 0.0
        %290 = vadd.xlane.f32.xlu0 %v289
        %v291 = vpop.xlane.xlu0 %290
        %v292 = vsel %vm249, %v231, 0.0
        %293 = vadd.xlane.f32.xlu0 %v292
        %v294 = vpop.xlane.xlu0 %293
        %v295 = vsel %vm249, %v232, 0.0
        %296 = vadd.xlane.f32.xlu0 %v295
        %v297 = vpop.xlane.xlu0 %296
        %v298 = vsel %vm249, %v233, 0.0
        %299 = vadd.xlane.f32.xlu0 %v298
        %v300 = vpop.xlane.xlu0 %299
        %v301 = vsel %vm249, %v234, 0.0
        %302 = vadd.xlane.f32.xlu0 %v301
        %v303 = vpop.xlane.xlu0 %302
        %v304 = vsel %vm249, %v235, 0.0
        %305 = vadd.xlane.f32.xlu0 %v304
        %v306 = vpop.xlane.xlu0 %305
        %v307 = vsel %vm249, %v236, 0.0
        %308 = vadd.xlane.f32.xlu0 %v307
        %v309 = vpop.xlane.xlu0 %308
        %v310 = vsel %vm249, %v237, 0.0
        %311 = vadd.xlane.f32.xlu0 %v310
        %v312 = vpop.xlane.xlu0 %311
        %v313 = vsel %vm249, %v238, 0.0
        %314 = vadd.xlane.f32.xlu0 %v313
        %v315 = vpop.xlane.xlu0 %314
        %v316 = vsel %vm249, %v239, 0.0
        %317 = vadd.xlane.f32.xlu0 %v316
        %v318 = vpop.xlane.xlu0 %317
        %v319 = vsel %vm249, %v240, 0.0
        %320 = vadd.xlane.f32.xlu0 %v319
        %v321 = vpop.xlane.xlu0 %320
        %v322 = vsel %vm249, %v241, 0.0
        %323 = vadd.xlane.f32.xlu0 %v322
        %v324 = vpop.xlane.xlu0 %323
        %v325 = vsel %vm249, %v242, 0.0
        %326 = vadd.xlane.f32.xlu0 %v325
        %v327 = vpop.xlane.xlu0 %326
        %v328 = vsel %vm249, %v243, 0.0
        %329 = vadd.xlane.f32.xlu0 %v328
        %v330 = vpop.xlane.xlu0 %329
        %v331 = vsel %vm249, %v244, 0.0
        %332 = vadd.xlane.f32.xlu0 %v331
        %v333 = vpop.xlane.xlu0 %332
        %v334 = vsel %vm249, %v245, 0.0
        %335 = vadd.xlane.f32.xlu0 %v334
        %v336 = vpop.xlane.xlu0 %335
        %v337 = vsel %vm249, %v246, 0.0
        %338 = vadd.xlane.f32.xlu0 %v337
        %v339 = vpop.xlane.xlu0 %338
        %v340 = vsel %vm249, %v247, 0.0
        %341 = vadd.xlane.f32.xlu0 %v340
        %v342 = vpop.xlane.xlu0 %341
        %v343 = vsel %vm249, %v248, 0.0
        %344 = vadd.xlane.f32.xlu0 %v343
        %v345 = vpop.xlane.xlu0 %344
        %v346 = vadd.f32 %v252, 0.0
        %v347 = vadd.f32 %v255, 0.0
        %v348 = vadd.f32 %v258, 0.0
        %v349 = vadd.f32 %v261, 0.0
        %v350 = vadd.f32 %v264, 0.0
        %v351 = vadd.f32 %v267, 0.0
        %v352 = vadd.f32 %v270, 0.0
        %v353 = vadd.f32 %v273, 0.0
        %v354 = vadd.f32 %v276, 0.0
        %v355 = vadd.f32 %v279, 0.0
        %v356 = vadd.f32 %v282, 0.0
        %v357 = vadd.f32 %v285, 0.0
        %v358 = vadd.f32 %v288, 0.0
        %v359 = vadd.f32 %v291, 0.0
        %v360 = vadd.f32 %v294, 0.0
        %v361 = vadd.f32 %v297, 0.0
        %v362 = vadd.f32 %v300, 0.0
        %v363 = vadd.f32 %v303, 0.0
        %v364 = vadd.f32 %v306, 0.0
        %v365 = vadd.f32 %v309, 0.0
        %v366 = vadd.f32 %v312, 0.0
        %v367 = vadd.f32 %v315, 0.0
        %v368 = vadd.f32 %v318, 0.0
        %v369 = vadd.f32 %v321, 0.0
        %v370 = vadd.f32 %v324, 0.0
        %v371 = vadd.f32 %v327, 0.0
        %v372 = vadd.f32 %v330, 0.0
        %v373 = vadd.f32 %v333, 0.0
        %v374 = vadd.f32 %v336, 0.0
        %v375 = vadd.f32 %v339, 0.0
        %v376 = vadd.f32 %v342, 0.0
        %v377 = vadd.f32 %v345, 0.0
        %v378 = vmul.f32 %v178, %v178
        %v379 = vmul.f32 %v179, %v179
        %v380 = vmul.f32 %v180, %v180
        %v381 = vmul.f32 %v181, %v181
        %v382 = vmul.f32 %v182, %v182
        %v383 = vmul.f32 %v183, %v183
        %v384 = vmul.f32 %v184, %v184
        %v385 = vmul.f32 %v185, %v185
        %v386 = vmul.f32 %v186, %v186
        %v387 = vmul.f32 %v187, %v187
        %v388 = vmul.f32 %v188, %v188
        %v389 = vmul.f32 %v189, %v189
        %v390 = vmul.f32 %v190, %v190
        %v391 = vmul.f32 %v191, %v191
        %v392 = vmul.f32 %v192, %v192
        %v393 = vmul.f32 %v193, %v193
        %v394 = vmul.f32 %v194, %v194
        %v395 = vmul.f32 %v195, %v195
        %v396 = vmul.f32 %v196, %v196
        %v397 = vmul.f32 %v197, %v197
        %v398 = vmul.f32 %v198, %v198
        %v399 = vmul.f32 %v199, %v199
        %v400 = vmul.f32 %v200, %v200
        %v401 = vmul.f32 %v201, %v201
        %v402 = vmul.f32 %v202, %v202
        %v403 = vmul.f32 %v203, %v203
        %v404 = vmul.f32 %v204, %v204
        %v405 = vmul.f32 %v205, %v205
        %v406 = vmul.f32 %v206, %v206
        %v407 = vmul.f32 %v207, %v207
        %v408 = vmul.f32 %v208, %v208
        %v409 = vmul.f32 %v209, %v209
        %v410 = vlaneseq
        %v411 = vshrl.u32 %v410, 7
        %v412 = vsub.s32 0, %v411
        %v413 = vrot.slane %v211, %v412
        %v414 = vmul.f32 %v378, %v413
        %v415 = vmul.f32 %v379, %v413
        %v416 = vmul.f32 %v380, %v413
        %v417 = vmul.f32 %v381, %v413
        %v418 = vmul.f32 %v382, %v413
        %v419 = vmul.f32 %v383, %v413
        %v420 = vmul.f32 %v384, %v413
        %v421 = vmul.f32 %v385, %v413
        %v422 = vmul.f32 %v386, %v413
        %v423 = vmul.f32 %v387, %v413
        %v424 = vmul.f32 %v388, %v413
        %v425 = vmul.f32 %v389, %v413
        %v426 = vmul.f32 %v390, %v413
        %v427 = vmul.f32 %v391, %v413
        %v428 = vmul.f32 %v392, %v413
        %v429 = vmul.f32 %v393, %v413
        %v430 = vmul.f32 %v394, %v413
        %v431 = vmul.f32 %v395, %v413
        %v432 = vmul.f32 %v396, %v413
        %v433 = vmul.f32 %v397, %v413
        %v434 = vmul.f32 %v398, %v413
        %v435 = vmul.f32 %v399, %v413
        %v436 = vmul.f32 %v400, %v413
        %v437 = vmul.f32 %v401, %v413
        %v438 = vmul.f32 %v402, %v413
        %v439 = vmul.f32 %v403, %v413
        %v440 = vmul.f32 %v404, %v413
        %v441 = vmul.f32 %v405, %v413
        %v442 = vmul.f32 %v406, %v413
        %v443 = vmul.f32 %v407, %v413
        %v444 = vmul.f32 %v408, %v413
        %v445 = vmul.f32 %v409, %v413
        %v446 = vsel %vm249, %v414, 0.0
        %447 = vadd.xlane.f32.xlu0 %v446
        %v448 = vpop.xlane.xlu0 %447
        %v449 = vsel %vm249, %v415, 0.0
        %450 = vadd.xlane.f32.xlu0 %v449
        %v451 = vpop.xlane.xlu0 %450
        %v452 = vsel %vm249, %v416, 0.0
        %453 = vadd.xlane.f32.xlu0 %v452
        %v454 = vpop.xlane.xlu0 %453
        %v455 = vsel %vm249, %v417, 0.0
        %456 = vadd.xlane.f32.xlu0 %v455
        %v457 = vpop.xlane.xlu0 %456
        %v458 = vsel %vm249, %v418, 0.0
        %459 = vadd.xlane.f32.xlu0 %v458
        %v460 = vpop.xlane.xlu0 %459
        %v461 = vsel %vm249, %v419, 0.0
        %462 = vadd.xlane.f32.xlu0 %v461
        %v463 = vpop.xlane.xlu0 %462
        %v464 = vsel %vm249, %v420, 0.0
        %465 = vadd.xlane.f32.xlu0 %v464
        %v466 = vpop.xlane.xlu0 %465
        %v467 = vsel %vm249, %v421, 0.0
        %468 = vadd.xlane.f32.xlu0 %v467
        %v469 = vpop.xlane.xlu0 %468
        %v470 = vsel %vm249, %v422, 0.0
        %471 = vadd.xlane.f32.xlu0 %v470
        %v472 = vpop.xlane.xlu0 %471
        %v473 = vsel %vm249, %v423, 0.0
        %474 = vadd.xlane.f32.xlu0 %v473
        %v475 = vpop.xlane.xlu0 %474
        %v476 = vsel %vm249, %v424, 0.0
        %477 = vadd.xlane.f32.xlu0 %v476
        %v478 = vpop.xlane.xlu0 %477
        %v479 = vsel %vm249, %v425, 0.0
        %480 = vadd.xlane.f32.xlu0 %v479
        %v481 = vpop.xlane.xlu0 %480
        %v482 = vsel %vm249, %v426, 0.0
        %483 = vadd.xlane.f32.xlu0 %v482
        %v484 = vpop.xlane.xlu0 %483
        %v485 = vsel %vm249, %v427, 0.0
        %486 = vadd.xlane.f32.xlu0 %v485
        %v487 = vpop.xlane.xlu0 %486
        %v488 = vsel %vm249, %v428, 0.0
        %489 = vadd.xlane.f32.xlu0 %v488
        %v490 = vpop.xlane.xlu0 %489
        %v491 = vsel %vm249, %v429, 0.0
        %492 = vadd.xlane.f32.xlu0 %v491
        %v493 = vpop.xlane.xlu0 %492
        %v494 = vsel %vm249, %v430, 0.0
        %495 = vadd.xlane.f32.xlu0 %v494
        %v496 = vpop.xlane.xlu0 %495
        %v497 = vsel %vm249, %v431, 0.0
        %498 = vadd.xlane.f32.xlu0 %v497
        %v499 = vpop.xlane.xlu0 %498
        %v500 = vsel %vm249, %v432, 0.0
        %501 = vadd.xlane.f32.xlu0 %v500
        %v502 = vpop.xlane.xlu0 %501
        %v503 = vsel %vm249, %v433, 0.0
        %504 = vadd.xlane.f32.xlu0 %v503
        %v505 = vpop.xlane.xlu0 %504
        %v506 = vsel %vm249, %v434, 0.0
        %507 = vadd.xlane.f32.xlu0 %v506
        %v508 = vpop.xlane.xlu0 %507
        %v509 = vsel %vm249, %v435, 0.0
        %510 = vadd.xlane.f32.xlu0 %v509
        %v511 = vpop.xlane.xlu0 %510
        %v512 = vsel %vm249, %v436, 0.0
        %513 = vadd.xlane.f32.xlu0 %v512
        %v514 = vpop.xlane.xlu0 %513
        %v515 = vsel %vm249, %v437, 0.0
        %516 = vadd.xlane.f32.xlu0 %v515
        %v517 = vpop.xlane.xlu0 %516
        %v518 = vsel %vm249, %v438, 0.0
        %519 = vadd.xlane.f32.xlu0 %v518
        %v520 = vpop.xlane.xlu0 %519
        %v521 = vsel %vm249, %v439, 0.0
        %522 = vadd.xlane.f32.xlu0 %v521
        %v523 = vpop.xlane.xlu0 %522
        %v524 = vsel %vm249, %v440, 0.0
        %525 = vadd.xlane.f32.xlu0 %v524
        %v526 = vpop.xlane.xlu0 %525
        %v527 = vsel %vm249, %v441, 0.0
        %528 = vadd.xlane.f32.xlu0 %v527
        %v529 = vpop.xlane.xlu0 %528
        %v530 = vsel %vm249, %v442, 0.0
        %531 = vadd.xlane.f32.xlu0 %v530
        %v532 = vpop.xlane.xlu0 %531
        %v533 = vsel %vm249, %v443, 0.0
        %534 = vadd.xlane.f32.xlu0 %v533
        %v535 = vpop.xlane.xlu0 %534
        %v536 = vsel %vm249, %v444, 0.0
        %537 = vadd.xlane.f32.xlu0 %v536
        %v538 = vpop.xlane.xlu0 %537
        %v539 = vsel %vm249, %v445, 0.0
        %540 = vadd.xlane.f32.xlu0 %v539
        %v541 = vpop.xlane.xlu0 %540
        %v542 = vadd.f32 %v448, 0.0
        %v543 = vadd.f32 %v451, 0.0
        %v544 = vadd.f32 %v454, 0.0
        %v545 = vadd.f32 %v457, 0.0
        %v546 = vadd.f32 %v460, 0.0
        %v547 = vadd.f32 %v463, 0.0
        %v548 = vadd.f32 %v466, 0.0
        %v549 = vadd.f32 %v469, 0.0
        %v550 = vadd.f32 %v472, 0.0
        %v551 = vadd.f32 %v475, 0.0
        %v552 = vadd.f32 %v478, 0.0
        %v553 = vadd.f32 %v481, 0.0
        %v554 = vadd.f32 %v484, 0.0
        %v555 = vadd.f32 %v487, 0.0
        %v556 = vadd.f32 %v490, 0.0
        %v557 = vadd.f32 %v493, 0.0
        %v558 = vadd.f32 %v496, 0.0
        %v559 = vadd.f32 %v499, 0.0
        %v560 = vadd.f32 %v502, 0.0
        %v561 = vadd.f32 %v505, 0.0
        %v562 = vadd.f32 %v508, 0.0
        %v563 = vadd.f32 %v511, 0.0
        %v564 = vadd.f32 %v514, 0.0
        %v565 = vadd.f32 %v517, 0.0
        %v566 = vadd.f32 %v520, 0.0
        %v567 = vadd.f32 %v523, 0.0
        %v568 = vadd.f32 %v526, 0.0
        %v569 = vadd.f32 %v529, 0.0
        %v570 = vadd.f32 %v532, 0.0
        %v571 = vadd.f32 %v535, 0.0
        %v572 = vadd.f32 %v538, 0.0
        %v573 = vadd.f32 %v541, 0.0
        %v574 = vlaneseq
        %v575 = vshrl.u32 %v574, 7
        %v576 = vsub.s32 0, %v575
        %v577 = vrot.slane %v212, %v576
        %v578 = vmul.f32 %v178, %v577
        %v579 = vmul.f32 %v179, %v577
        %v580 = vmul.f32 %v180, %v577
        %v581 = vmul.f32 %v181, %v577
        %v582 = vmul.f32 %v182, %v577
        %v583 = vmul.f32 %v183, %v577
        %v584 = vmul.f32 %v184, %v577
        %v585 = vmul.f32 %v185, %v577
        %v586 = vmul.f32 %v186, %v577
        %v587 = vmul.f32 %v187, %v577
        %v588 = vmul.f32 %v188, %v577
        %v589 = vmul.f32 %v189, %v577
        %v590 = vmul.f32 %v190, %v577
        %v591 = vmul.f32 %v191, %v577
        %v592 = vmul.f32 %v192, %v577
        %v593 = vmul.f32 %v193, %v577
        %v594 = vmul.f32 %v194, %v577
        %v595 = vmul.f32 %v195, %v577
        %v596 = vmul.f32 %v196, %v577
        %v597 = vmul.f32 %v197, %v577
        %v598 = vmul.f32 %v198, %v577
        %v599 = vmul.f32 %v199, %v577
        %v600 = vmul.f32 %v200, %v577
        %v601 = vmul.f32 %v201, %v577
        %v602 = vmul.f32 %v202, %v577
        %v603 = vmul.f32 %v203, %v577
        %v604 = vmul.f32 %v204, %v577
        %v605 = vmul.f32 %v205, %v577
        %v606 = vmul.f32 %v206, %v577
        %v607 = vmul.f32 %v207, %v577
        %v608 = vmul.f32 %v208, %v577
        %v609 = vmul.f32 %v209, %v577
        %v610 = vsel %vm249, %v578, 0.0
        %611 = vadd.xlane.f32.xlu0 %v610
        %v612 = vpop.xlane.xlu0 %611
        %v613 = vsel %vm249, %v579, 0.0
        %614 = vadd.xlane.f32.xlu0 %v613
        %v615 = vpop.xlane.xlu0 %614
        %v616 = vsel %vm249, %v580, 0.0
        %617 = vadd.xlane.f32.xlu0 %v616
        %v618 = vpop.xlane.xlu0 %617
        %v619 = vsel %vm249, %v581, 0.0
        %620 = vadd.xlane.f32.xlu0 %v619
        %v621 = vpop.xlane.xlu0 %620
        %v622 = vsel %vm249, %v582, 0.0
        %623 = vadd.xlane.f32.xlu0 %v622
        %v624 = vpop.xlane.xlu0 %623
        %v625 = vsel %vm249, %v583, 0.0
        %626 = vadd.xlane.f32.xlu0 %v625
        %v627 = vpop.xlane.xlu0 %626
        %v628 = vsel %vm249, %v584, 0.0
        %629 = vadd.xlane.f32.xlu0 %v628
        %v630 = vpop.xlane.xlu0 %629
        %v631 = vsel %vm249, %v585, 0.0
        %632 = vadd.xlane.f32.xlu0 %v631
        %v633 = vpop.xlane.xlu0 %632
        %v634 = vsel %vm249, %v586, 0.0
        %635 = vadd.xlane.f32.xlu0 %v634
        %v636 = vpop.xlane.xlu0 %635
        %v637 = vsel %vm249, %v587, 0.0
        %638 = vadd.xlane.f32.xlu0 %v637
        %v639 = vpop.xlane.xlu0 %638
        %v640 = vsel %vm249, %v588, 0.0
        %641 = vadd.xlane.f32.xlu0 %v640
        %v642 = vpop.xlane.xlu0 %641
        %v643 = vsel %vm249, %v589, 0.0
        %644 = vadd.xlane.f32.xlu0 %v643
        %v645 = vpop.xlane.xlu0 %644
        %v646 = vsel %vm249, %v590, 0.0
        %647 = vadd.xlane.f32.xlu0 %v646
        %v648 = vpop.xlane.xlu0 %647
        %v649 = vsel %vm249, %v591, 0.0
        %650 = vadd.xlane.f32.xlu0 %v649
        %v651 = vpop.xlane.xlu0 %650
        %v652 = vsel %vm249, %v592, 0.0
        %653 = vadd.xlane.f32.xlu0 %v652
        %v654 = vpop.xlane.xlu0 %653
        %v655 = vsel %vm249, %v593, 0.0
        %656 = vadd.xlane.f32.xlu0 %v655
        %v657 = vpop.xlane.xlu0 %656
        %v658 = vsel %vm249, %v594, 0.0
        %659 = vadd.xlane.f32.xlu0 %v658
        %v660 = vpop.xlane.xlu0 %659
        %v661 = vsel %vm249, %v595, 0.0
        %662 = vadd.xlane.f32.xlu0 %v661
        %v663 = vpop.xlane.xlu0 %662
        %v664 = vsel %vm249, %v596, 0.0
        %665 = vadd.xlane.f32.xlu0 %v664
        %v666 = vpop.xlane.xlu0 %665
        %v667 = vsel %vm249, %v597, 0.0
        %668 = vadd.xlane.f32.xlu0 %v667
        %v669 = vpop.xlane.xlu0 %668
        %v670 = vsel %vm249, %v598, 0.0
        %671 = vadd.xlane.f32.xlu0 %v670
        %v672 = vpop.xlane.xlu0 %671
        %v673 = vsel %vm249, %v599, 0.0
        %674 = vadd.xlane.f32.xlu0 %v673
        %v675 = vpop.xlane.xlu0 %674
        %v676 = vsel %vm249, %v600, 0.0
        %677 = vadd.xlane.f32.xlu0 %v676
        %v678 = vpop.xlane.xlu0 %677
        %v679 = vsel %vm249, %v601, 0.0
        %680 = vadd.xlane.f32.xlu0 %v679
        %v681 = vpop.xlane.xlu0 %680
        %v682 = vsel %vm249, %v602, 0.0
        %683 = vadd.xlane.f32.xlu0 %v682
        %v684 = vpop.xlane.xlu0 %683
        %v685 = vsel %vm249, %v603, 0.0
        %686 = vadd.xlane.f32.xlu0 %v685
        %v687 = vpop.xlane.xlu0 %686
        %v688 = vsel %vm249, %v604, 0.0
        %689 = vadd.xlane.f32.xlu0 %v688
        %v690 = vpop.xlane.xlu0 %689
        %v691 = vsel %vm249, %v605, 0.0
        %692 = vadd.xlane.f32.xlu0 %v691
        %v693 = vpop.xlane.xlu0 %692
        %v694 = vsel %vm249, %v606, 0.0
        %695 = vadd.xlane.f32.xlu0 %v694
        %v696 = vpop.xlane.xlu0 %695
        %v697 = vsel %vm249, %v607, 0.0
        %698 = vadd.xlane.f32.xlu0 %v697
        %v699 = vpop.xlane.xlu0 %698
        %v700 = vsel %vm249, %v608, 0.0
        %701 = vadd.xlane.f32.xlu0 %v700
        %v702 = vpop.xlane.xlu0 %701
        %v703 = vsel %vm249, %v609, 0.0
        %704 = vadd.xlane.f32.xlu0 %v703
        %v705 = vpop.xlane.xlu0 %704
        %v706 = vadd.f32 %v612, 0.0
        %v707 = vadd.f32 %v615, 0.0
        %v708 = vadd.f32 %v618, 0.0
        %v709 = vadd.f32 %v621, 0.0
        %v710 = vadd.f32 %v624, 0.0
        %v711 = vadd.f32 %v627, 0.0
        %v712 = vadd.f32 %v630, 0.0
        %v713 = vadd.f32 %v633, 0.0
        %v714 = vadd.f32 %v636, 0.0
        %v715 = vadd.f32 %v639, 0.0
        %v716 = vadd.f32 %v642, 0.0
        %v717 = vadd.f32 %v645, 0.0
        %v718 = vadd.f32 %v648, 0.0
        %v719 = vadd.f32 %v651, 0.0
        %v720 = vadd.f32 %v654, 0.0
        %v721 = vadd.f32 %v657, 0.0
        %v722 = vadd.f32 %v660, 0.0
        %v723 = vadd.f32 %v663, 0.0
        %v724 = vadd.f32 %v666, 0.0
        %v725 = vadd.f32 %v669, 0.0
        %v726 = vadd.f32 %v672, 0.0
        %v727 = vadd.f32 %v675, 0.0
        %v728 = vadd.f32 %v678, 0.0
        %v729 = vadd.f32 %v681, 0.0
        %v730 = vadd.f32 %v684, 0.0
        %v731 = vadd.f32 %v687, 0.0
        %v732 = vadd.f32 %v690, 0.0
        %v733 = vadd.f32 %v693, 0.0
        %v734 = vadd.f32 %v696, 0.0
        %v735 = vadd.f32 %v699, 0.0
        %v736 = vadd.f32 %v702, 0.0
        %v737 = vadd.f32 %v705, 0.0
        %s738 = sadd.s32 %s176, 1
        %s739 = scalar_lea.vmem %s0, %s738
        %v740 = vld [vmem:[%s739] sm:$0xff]
        %v741 = vld [vmem:[%s739 + $0x8] sm:$0xff]
        %v742 = vld [vmem:[%s739 + $0x10] sm:$0xff]
        %v743 = vld [vmem:[%s739 + $0x18] sm:$0xff]
        %v744 = vld [vmem:[%s739 + $0x20] sm:$0xff]
        %v745 = vld [vmem:[%s739 + $0x28] sm:$0xff]
        %v746 = vld [vmem:[%s739 + $0x30] sm:$0xff]
        %v747 = vld [vmem:[%s739 + $0x38] sm:$0xff]
        %v748 = vld [vmem:[%s739 + $0x40] sm:$0xff]
        %v749 = vld [vmem:[%s739 + $0x48] sm:$0xff]
        %v750 = vld [vmem:[%s739 + $0x50] sm:$0xff]
        %v751 = vld [vmem:[%s739 + $0x58] sm:$0xff]
        %v752 = vld [vmem:[%s739 + $0x60] sm:$0xff]
        %v753 = vld [vmem:[%s739 + $0x68] sm:$0xff]
        %v754 = vld [vmem:[%s739 + $0x70] sm:$0xff]
        %v755 = vld [vmem:[%s739 + $0x78] sm:$0xff]
        %v756 = vld [vmem:[%s739 + $0x188] sm:$0xff]
        %v757 = vld [vmem:[%s739 + $0x190] sm:$0xff]
        %v758 = vld [vmem:[%s739 + $0x198] sm:$0xff]
        %v759 = vld [vmem:[%s739 + $0x1a0] sm:$0xff]
        %v760 = vld [vmem:[%s739 + $0x1a8] sm:$0xff]
        %v761 = vld [vmem:[%s739 + $0x1b0] sm:$0xff]
        %v762 = vld [vmem:[%s739 + $0x1b8] sm:$0xff]
        %v763 = vld [vmem:[%s739 + $0x1c0] sm:$0xff]
        %v764 = vld [vmem:[%s739 + $0x1c8] sm:$0xff]
        %v765 = vld [vmem:[%s739 + $0x1d0] sm:$0xff]
        %v766 = vld [vmem:[%s739 + $0x1d8] sm:$0xff]
        %v767 = vld [vmem:[%s739 + $0x1e0] sm:$0xff]
        %v768 = vld [vmem:[%s739 + $0x1e8] sm:$0xff]
        %v769 = vld [vmem:[%s739 + $0x1f0] sm:$0xff]
        %v770 = vld [vmem:[%s739 + $0x1f8] sm:$0xff]
        %v771 = vld [vmem:[%s739 + $0x200] sm:$0xff]
        %v772 = vld [vmem:[%s1 + $0x1] sm:$0x1]
        %v773 = vld [vmem:[%s2 + $0x1] sm:$0x1]
        %v774 = vld [vmem:[%s3 + $0x1] sm:$0x1]
        %v775 = vlaneseq
        %v776 = vshrl.u32 %v775, 7
        %v777 = vsub.s32 0, %v776
        %v778 = vrot.slane %v772, %v777
        %v779 = vmul.f32 %v740, %v778
        %v780 = vmul.f32 %v741, %v778
        %v781 = vmul.f32 %v742, %v778
        %v782 = vmul.f32 %v743, %v778
        %v783 = vmul.f32 %v744, %v778
        %v784 = vmul.f32 %v745, %v778
        %v785 = vmul.f32 %v746, %v778
        %v786 = vmul.f32 %v747, %v778
        %v787 = vmul.f32 %v748, %v778
        %v788 = vmul.f32 %v749, %v778
        %v789 = vmul.f32 %v750, %v778
        %v790 = vmul.f32 %v751, %v778
        %v791 = vmul.f32 %v752, %v778
        %v792 = vmul.f32 %v753, %v778
        %v793 = vmul.f32 %v754, %v778
        %v794 = vmul.f32 %v755, %v778
        %v795 = vmul.f32 %v756, %v778
        %v796 = vmul.f32 %v757, %v778
        %v797 = vmul.f32 %v758, %v778
        %v798 = vmul.f32 %v759, %v778
        %v799 = vmul.f32 %v760, %v778
        %v800 = vmul.f32 %v761, %v778
        %v801 = vmul.f32 %v762, %v778
        %v802 = vmul.f32 %v763, %v778
        %v803 = vmul.f32 %v764, %v778
        %v804 = vmul.f32 %v765, %v778
        %v805 = vmul.f32 %v766, %v778
        %v806 = vmul.f32 %v767, %v778
        %v807 = vmul.f32 %v768, %v778
        %v808 = vmul.f32 %v769, %v778
        %v809 = vmul.f32 %v770, %v778
        %v810 = vmul.f32 %v771, %v778
        %v811 = vsel %vm249, %v779, 0.0
        %812 = vadd.xlane.f32.xlu0 %v811
        %v813 = vpop.xlane.xlu0 %812
        %v814 = vsel %vm249, %v780, 0.0
        %815 = vadd.xlane.f32.xlu0 %v814
        %v816 = vpop.xlane.xlu0 %815
        %v817 = vsel %vm249, %v781, 0.0
        %818 = vadd.xlane.f32.xlu0 %v817
        %v819 = vpop.xlane.xlu0 %818
        %v820 = vsel %vm249, %v782, 0.0
        %821 = vadd.xlane.f32.xlu0 %v820
        %v822 = vpop.xlane.xlu0 %821
        %v823 = vsel %vm249, %v783, 0.0
        %824 = vadd.xlane.f32.xlu0 %v823
        %v825 = vpop.xlane.xlu0 %824
        %v826 = vsel %vm249, %v784, 0.0
        %827 = vadd.xlane.f32.xlu0 %v826
        %v828 = vpop.xlane.xlu0 %827
        %v829 = vsel %vm249, %v785, 0.0
        %830 = vadd.xlane.f32.xlu0 %v829
        %v831 = vpop.xlane.xlu0 %830
        %v832 = vsel %vm249, %v786, 0.0
        %833 = vadd.xlane.f32.xlu0 %v832
        %v834 = vpop.xlane.xlu0 %833
        %v835 = vsel %vm249, %v787, 0.0
        %836 = vadd.xlane.f32.xlu0 %v835
        %v837 = vpop.xlane.xlu0 %836
        %v838 = vsel %vm249, %v788, 0.0
        %839 = vadd.xlane.f32.xlu0 %v838
        %v840 = vpop.xlane.xlu0 %839
        %v841 = vsel %vm249, %v789, 0.0
        %842 = vadd.xlane.f32.xlu0 %v841
        %v843 = vpop.xlane.xlu0 %842
        %v844 = vsel %vm249, %v790, 0.0
        %845 = vadd.xlane.f32.xlu0 %v844
        %v846 = vpop.xlane.xlu0 %845
        %v847 = vsel %vm249, %v791, 0.0
        %848 = vadd.xlane.f32.xlu0 %v847
        %v849 = vpop.xlane.xlu0 %848
        %v850 = vsel %vm249, %v792, 0.0
        %851 = vadd.xlane.f32.xlu0 %v850
        %v852 = vpop.xlane.xlu0 %851
        %v853 = vsel %vm249, %v793, 0.0
        %854 = vadd.xlane.f32.xlu0 %v853
        %v855 = vpop.xlane.xlu0 %854
        %v856 = vsel %vm249, %v794, 0.0
        %857 = vadd.xlane.f32.xlu0 %v856
        %v858 = vpop.xlane.xlu0 %857
        %v859 = vsel %vm249, %v795, 0.0
        %860 = vadd.xlane.f32.xlu0 %v859
        %v861 = vpop.xlane.xlu0 %860
        %v862 = vsel %vm249, %v796, 0.0
        %863 = vadd.xlane.f32.xlu0 %v862
        %v864 = vpop.xlane.xlu0 %863
        %v865 = vsel %vm249, %v797, 0.0
        %866 = vadd.xlane.f32.xlu0 %v865
        %v867 = vpop.xlane.xlu0 %866
        %v868 = vsel %vm249, %v798, 0.0
        %869 = vadd.xlane.f32.xlu0 %v868
        %v870 = vpop.xlane.xlu0 %869
        %v871 = vsel %vm249, %v799, 0.0
        %872 = vadd.xlane.f32.xlu0 %v871
        %v873 = vpop.xlane.xlu0 %872
        %v874 = vsel %vm249, %v800, 0.0
        %875 = vadd.xlane.f32.xlu0 %v874
        %v876 = vpop.xlane.xlu0 %875
        %v877 = vsel %vm249, %v801, 0.0
        %878 = vadd.xlane.f32.xlu0 %v877
        %v879 = vpop.xlane.xlu0 %878
        %v880 = vsel %vm249, %v802, 0.0
        %881 = vadd.xlane.f32.xlu0 %v880
        %v882 = vpop.xlane.xlu0 %881
        %v883 = vsel %vm249, %v803, 0.0
        %884 = vadd.xlane.f32.xlu0 %v883
        %v885 = vpop.xlane.xlu0 %884
        %v886 = vsel %vm249, %v804, 0.0
        %887 = vadd.xlane.f32.xlu0 %v886
        %v888 = vpop.xlane.xlu0 %887
        %v889 = vsel %vm249, %v805, 0.0
        %890 = vadd.xlane.f32.xlu0 %v889
        %v891 = vpop.xlane.xlu0 %890
        %v892 = vsel %vm249, %v806, 0.0
        %893 = vadd.xlane.f32.xlu0 %v892
        %v894 = vpop.xlane.xlu0 %893
        %v895 = vsel %vm249, %v807, 0.0
        %896 = vadd.xlane.f32.xlu0 %v895
        %v897 = vpop.xlane.xlu0 %896
        %v898 = vsel %vm249, %v808, 0.0
        %899 = vadd.xlane.f32.xlu0 %v898
        %v900 = vpop.xlane.xlu0 %899
        %v901 = vsel %vm249, %v809, 0.0
        %902 = vadd.xlane.f32.xlu0 %v901
        %v903 = vpop.xlane.xlu0 %902
        %v904 = vsel %vm249, %v810, 0.0
        %905 = vadd.xlane.f32.xlu0 %v904
        %v906 = vpop.xlane.xlu0 %905
        %v907 = vadd.f32 %v346, %v813
        %v908 = vadd.f32 %v347, %v816
        %v909 = vadd.f32 %v348, %v819
        %v910 = vadd.f32 %v349, %v822
        %v911 = vadd.f32 %v350, %v825
        %v912 = vadd.f32 %v351, %v828
        %v913 = vadd.f32 %v352, %v831
        %v914 = vadd.f32 %v353, %v834
        %v915 = vadd.f32 %v354, %v837
        %v916 = vadd.f32 %v355, %v840
        %v917 = vadd.f32 %v356, %v843
        %v918 = vadd.f32 %v357, %v846
        %v919 = vadd.f32 %v358, %v849
        %v920 = vadd.f32 %v359, %v852
        %v921 = vadd.f32 %v360, %v855
        %v922 = vadd.f32 %v361, %v858
        %v923 = vadd.f32 %v362, %v861
        %v924 = vadd.f32 %v363, %v864
        %v925 = vadd.f32 %v364, %v867
        %v926 = vadd.f32 %v365, %v870
        %v927 = vadd.f32 %v366, %v873
        %v928 = vadd.f32 %v367, %v876
        %v929 = vadd.f32 %v368, %v879
        %v930 = vadd.f32 %v369, %v882
        %v931 = vadd.f32 %v370, %v885
        %v932 = vadd.f32 %v371, %v888
        %v933 = vadd.f32 %v372, %v891
        %v934 = vadd.f32 %v373, %v894
        %v935 = vadd.f32 %v374, %v897
        %v936 = vadd.f32 %v375, %v900
        %v937 = vadd.f32 %v376, %v903
        %v938 = vadd.f32 %v377, %v906
        %v939 = vmul.f32 %v740, %v740
        %v940 = vmul.f32 %v741, %v741
        %v941 = vmul.f32 %v742, %v742
        %v942 = vmul.f32 %v743, %v743
        %v943 = vmul.f32 %v744, %v744
        %v944 = vmul.f32 %v745, %v745
        %v945 = vmul.f32 %v746, %v746
        %v946 = vmul.f32 %v747, %v747
        %v947 = vmul.f32 %v748, %v748
        %v948 = vmul.f32 %v749, %v749
        %v949 = vmul.f32 %v750, %v750
        %v950 = vmul.f32 %v751, %v751
        %v951 = vmul.f32 %v752, %v752
        %v952 = vmul.f32 %v753, %v753
        %v953 = vmul.f32 %v754, %v754
        %v954 = vmul.f32 %v755, %v755
        %v955 = vmul.f32 %v756, %v756
        %v956 = vmul.f32 %v757, %v757
        %v957 = vmul.f32 %v758, %v758
        %v958 = vmul.f32 %v759, %v759
        %v959 = vmul.f32 %v760, %v760
        %v960 = vmul.f32 %v761, %v761
        %v961 = vmul.f32 %v762, %v762
        %v962 = vmul.f32 %v763, %v763
        %v963 = vmul.f32 %v764, %v764
        %v964 = vmul.f32 %v765, %v765
        %v965 = vmul.f32 %v766, %v766
        %v966 = vmul.f32 %v767, %v767
        %v967 = vmul.f32 %v768, %v768
        %v968 = vmul.f32 %v769, %v769
        %v969 = vmul.f32 %v770, %v770
        %v970 = vmul.f32 %v771, %v771
        %v971 = vlaneseq
        %v972 = vshrl.u32 %v971, 7
        %v973 = vsub.s32 0, %v972
        %v974 = vrot.slane %v773, %v973
        %v975 = vmul.f32 %v939, %v974
        %v976 = vmul.f32 %v940, %v974
        %v977 = vmul.f32 %v941, %v974
        %v978 = vmul.f32 %v942, %v974
        %v979 = vmul.f32 %v943, %v974
        %v980 = vmul.f32 %v944, %v974
        %v981 = vmul.f32 %v945, %v974
        %v982 = vmul.f32 %v946, %v974
        %v983 = vmul.f32 %v947, %v974
        %v984 = vmul.f32 %v948, %v974
        %v985 = vmul.f32 %v949, %v974
        %v986 = vmul.f32 %v950, %v974
        %v987 = vmul.f32 %v951, %v974
        %v988 = vmul.f32 %v952, %v974
        %v989 = vmul.f32 %v953, %v974
        %v990 = vmul.f32 %v954, %v974
        %v991 = vmul.f32 %v955, %v974
        %v992 = vmul.f32 %v956, %v974
        %v993 = vmul.f32 %v957, %v974
        %v994 = vmul.f32 %v958, %v974
        %v995 = vmul.f32 %v959, %v974
        %v996 = vmul.f32 %v960, %v974
        %v997 = vmul.f32 %v961, %v974
        %v998 = vmul.f32 %v962, %v974
        %v999 = vmul.f32 %v963, %v974
        %v1000 = vmul.f32 %v964, %v974
        %v1001 = vmul.f32 %v965, %v974
        %v1002 = vmul.f32 %v966, %v974
        %v1003 = vmul.f32 %v967, %v974
        %v1004 = vmul.f32 %v968, %v974
        %v1005 = vmul.f32 %v969, %v974
        %v1006 = vmul.f32 %v970, %v974
        %v1007 = vsel %vm249, %v975, 0.0
        %1008 = vadd.xlane.f32.xlu0 %v1007
        %v1009 = vpop.xlane.xlu0 %1008
        %v1010 = vsel %vm249, %v976, 0.0
        %1011 = vadd.xlane.f32.xlu0 %v1010
        %v1012 = vpop.xlane.xlu0 %1011
        %v1013 = vsel %vm249, %v977, 0.0
        %1014 = vadd.xlane.f32.xlu0 %v1013
        %v1015 = vpop.xlane.xlu0 %1014
        %v1016 = vsel %vm249, %v978, 0.0
        %1017 = vadd.xlane.f32.xlu0 %v1016
        %v1018 = vpop.xlane.xlu0 %1017
        %v1019 = vsel %vm249, %v979, 0.0
        %1020 = vadd.xlane.f32.xlu0 %v1019
        %v1021 = vpop.xlane.xlu0 %1020
        %v1022 = vsel %vm249, %v980, 0.0
        %1023 = vadd.xlane.f32.xlu0 %v1022
        %v1024 = vpop.xlane.xlu0 %1023
        %v1025 = vsel %vm249, %v981, 0.0
        %1026 = vadd.xlane.f32.xlu0 %v1025
        %v1027 = vpop.xlane.xlu0 %1026
        %v1028 = vsel %vm249, %v982, 0.0
        %1029 = vadd.xlane.f32.xlu0 %v1028
        %v1030 = vpop.xlane.xlu0 %1029
        %v1031 = vsel %vm249, %v983, 0.0
        %1032 = vadd.xlane.f32.xlu0 %v1031
        %v1033 = vpop.xlane.xlu0 %1032
        %v1034 = vsel %vm249, %v984, 0.0
        %1035 = vadd.xlane.f32.xlu0 %v1034
        %v1036 = vpop.xlane.xlu0 %1035
        %v1037 = vsel %vm249, %v985, 0.0
        %1038 = vadd.xlane.f32.xlu0 %v1037
        %v1039 = vpop.xlane.xlu0 %1038
        %v1040 = vsel %vm249, %v986, 0.0
        %1041 = vadd.xlane.f32.xlu0 %v1040
        %v1042 = vpop.xlane.xlu0 %1041
        %v1043 = vsel %vm249, %v987, 0.0
        %1044 = vadd.xlane.f32.xlu0 %v1043
        %v1045 = vpop.xlane.xlu0 %1044
        %v1046 = vsel %vm249, %v988, 0.0
        %1047 = vadd.xlane.f32.xlu0 %v1046
        %v1048 = vpop.xlane.xlu0 %1047
        %v1049 = vsel %vm249, %v989, 0.0
        %1050 = vadd.xlane.f32.xlu0 %v1049
        %v1051 = vpop.xlane.xlu0 %1050
        %v1052 = vsel %vm249, %v990, 0.0
        %1053 = vadd.xlane.f32.xlu0 %v1052
        %v1054 = vpop.xlane.xlu0 %1053
        %v1055 = vsel %vm249, %v991, 0.0
        %1056 = vadd.xlane.f32.xlu0 %v1055
        %v1057 = vpop.xlane.xlu0 %1056
        %v1058 = vsel %vm249, %v992, 0.0
        %1059 = vadd.xlane.f32.xlu0 %v1058
        %v1060 = vpop.xlane.xlu0 %1059
        %v1061 = vsel %vm249, %v993, 0.0
        %1062 = vadd.xlane.f32.xlu0 %v1061
        %v1063 = vpop.xlane.xlu0 %1062
        %v1064 = vsel %vm249, %v994, 0.0
        %1065 = vadd.xlane.f32.xlu0 %v1064
        %v1066 = vpop.xlane.xlu0 %1065
        %v1067 = vsel %vm249, %v995, 0.0
        %1068 = vadd.xlane.f32.xlu0 %v1067
        %v1069 = vpop.xlane.xlu0 %1068
        %v1070 = vsel %vm249, %v996, 0.0
        %1071 = vadd.xlane.f32.xlu0 %v1070
        %v1072 = vpop.xlane.xlu0 %1071
        %v1073 = vsel %vm249, %v997, 0.0
        %1074 = vadd.xlane.f32.xlu0 %v1073
        %v1075 = vpop.xlane.xlu0 %1074
        %v1076 = vsel %vm249, %v998, 0.0
        %1077 = vadd.xlane.f32.xlu0 %v1076
        %v1078 = vpop.xlane.xlu0 %1077
        %v1079 = vsel %vm249, %v999, 0.0
        %1080 = vadd.xlane.f32.xlu0 %v1079
        %v1081 = vpop.xlane.xlu0 %1080
        %v1082 = vsel %vm249, %v1000, 0.0
        %1083 = vadd.xlane.f32.xlu0 %v1082
        %v1084 = vpop.xlane.xlu0 %1083
        %v1085 = vsel %vm249, %v1001, 0.0
        %1086 = vadd.xlane.f32.xlu0 %v1085
        %v1087 = vpop.xlane.xlu0 %1086
        %v1088 = vsel %vm249, %v1002, 0.0
        %1089 = vadd.xlane.f32.xlu0 %v1088
        %v1090 = vpop.xlane.xlu0 %1089
        %v1091 = vsel %vm249, %v1003, 0.0
        %1092 = vadd.xlane.f32.xlu0 %v1091
        %v1093 = vpop.xlane.xlu0 %1092
        %v1094 = vsel %vm249, %v1004, 0.0
        %1095 = vadd.xlane.f32.xlu0 %v1094
        %v1096 = vpop.xlane.xlu0 %1095
        %v1097 = vsel %vm249, %v1005, 0.0
        %1098 = vadd.xlane.f32.xlu0 %v1097
        %v1099 = vpop.xlane.xlu0 %1098
        %v1100 = vsel %vm249, %v1006, 0.0
        %1101 = vadd.xlane.f32.xlu0 %v1100
        %v1102 = vpop.xlane.xlu0 %1101
        %v1103 = vadd.f32 %v542, %v1009
        %v1104 = vadd.f32 %v543, %v1012
        %v1105 = vadd.f32 %v544, %v1015
        %v1106 = vadd.f32 %v545, %v1018
        %v1107 = vadd.f32 %v546, %v1021
        %v1108 = vadd.f32 %v547, %v1024
        %v1109 = vadd.f32 %v548, %v1027
        %v1110 = vadd.f32 %v549, %v1030
        %v1111 = vadd.f32 %v550, %v1033
        %v1112 = vadd.f32 %v551, %v1036
        %v1113 = vadd.f32 %v552, %v1039
        %v1114 = vadd.f32 %v553, %v1042
        %v1115 = vadd.f32 %v554, %v1045
        %v1116 = vadd.f32 %v555, %v1048
        %v1117 = vadd.f32 %v556, %v1051
        %v1118 = vadd.f32 %v557, %v1054
        %v1119 = vadd.f32 %v558, %v1057
        %v1120 = vadd.f32 %v559, %v1060
        %v1121 = vadd.f32 %v560, %v1063
        %v1122 = vadd.f32 %v561, %v1066
        %v1123 = vadd.f32 %v562, %v1069
        %v1124 = vadd.f32 %v563, %v1072
        %v1125 = vadd.f32 %v564, %v1075
        %v1126 = vadd.f32 %v565, %v1078
        %v1127 = vadd.f32 %v566, %v1081
        %v1128 = vadd.f32 %v567, %v1084
        %v1129 = vadd.f32 %v568, %v1087
        %v1130 = vadd.f32 %v569, %v1090
        %v1131 = vadd.f32 %v570, %v1093
        %v1132 = vadd.f32 %v571, %v1096
        %v1133 = vadd.f32 %v572, %v1099
        %v1134 = vadd.f32 %v573, %v1102
        %v1135 = vlaneseq
        %v1136 = vshrl.u32 %v1135, 7
        %v1137 = vsub.s32 0, %v1136
        %v1138 = vrot.slane %v774, %v1137
        %v1139 = vmul.f32 %v740, %v1138
        %v1140 = vmul.f32 %v741, %v1138
        %v1141 = vmul.f32 %v742, %v1138
        %v1142 = vmul.f32 %v743, %v1138
        %v1143 = vmul.f32 %v744, %v1138
        %v1144 = vmul.f32 %v745, %v1138
        %v1145 = vmul.f32 %v746, %v1138
        %v1146 = vmul.f32 %v747, %v1138
        %v1147 = vmul.f32 %v748, %v1138
        %v1148 = vmul.f32 %v749, %v1138
        %v1149 = vmul.f32 %v750, %v1138
        %v1150 = vmul.f32 %v751, %v1138
        %v1151 = vmul.f32 %v752, %v1138
        %v1152 = vmul.f32 %v753, %v1138
        %v1153 = vmul.f32 %v754, %v1138
        %v1154 = vmul.f32 %v755, %v1138
        %v1155 = vmul.f32 %v756, %v1138
        %v1156 = vmul.f32 %v757, %v1138
        %v1157 = vmul.f32 %v758, %v1138
        %v1158 = vmul.f32 %v759, %v1138
        %v1159 = vmul.f32 %v760, %v1138
        %v1160 = vmul.f32 %v761, %v1138
        %v1161 = vmul.f32 %v762, %v1138
        %v1162 = vmul.f32 %v763, %v1138
        %v1163 = vmul.f32 %v764, %v1138
        %v1164 = vmul.f32 %v765, %v1138
        %v1165 = vmul.f32 %v766, %v1138
        %v1166 = vmul.f32 %v767, %v1138
        %v1167 = vmul.f32 %v768, %v1138
        %v1168 = vmul.f32 %v769, %v1138
        %v1169 = vmul.f32 %v770, %v1138
        %v1170 = vmul.f32 %v771, %v1138
        %v1171 = vsel %vm249, %v1139, 0.0
        %1172 = vadd.xlane.f32.xlu0 %v1171
        %v1173 = vpop.xlane.xlu0 %1172
        %v1174 = vsel %vm249, %v1140, 0.0
        %1175 = vadd.xlane.f32.xlu0 %v1174
        %v1176 = vpop.xlane.xlu0 %1175
        %v1177 = vsel %vm249, %v1141, 0.0
        %1178 = vadd.xlane.f32.xlu0 %v1177
        %v1179 = vpop.xlane.xlu0 %1178
        %v1180 = vsel %vm249, %v1142, 0.0
        %1181 = vadd.xlane.f32.xlu0 %v1180
        %v1182 = vpop.xlane.xlu0 %1181
        %v1183 = vsel %vm249, %v1143, 0.0
        %1184 = vadd.xlane.f32.xlu0 %v1183
        %v1185 = vpop.xlane.xlu0 %1184
        %v1186 = vsel %vm249, %v1144, 0.0
        %1187 = vadd.xlane.f32.xlu0 %v1186
        %v1188 = vpop.xlane.xlu0 %1187
        %v1189 = vsel %vm249, %v1145, 0.0
        %1190 = vadd.xlane.f32.xlu0 %v1189
        %v1191 = vpop.xlane.xlu0 %1190
        %v1192 = vsel %vm249, %v1146, 0.0
        %1193 = vadd.xlane.f32.xlu0 %v1192
        %v1194 = vpop.xlane.xlu0 %1193
        %v1195 = vsel %vm249, %v1147, 0.0
        %1196 = vadd.xlane.f32.xlu0 %v1195
        %v1197 = vpop.xlane.xlu0 %1196
        %v1198 = vsel %vm249, %v1148, 0.0
        %1199 = vadd.xlane.f32.xlu0 %v1198
        %v1200 = vpop.xlane.xlu0 %1199
        %v1201 = vsel %vm249, %v1149, 0.0
        %1202 = vadd.xlane.f32.xlu0 %v1201
        %v1203 = vpop.xlane.xlu0 %1202
        %v1204 = vsel %vm249, %v1150, 0.0
        %1205 = vadd.xlane.f32.xlu0 %v1204
        %v1206 = vpop.xlane.xlu0 %1205
        %v1207 = vsel %vm249, %v1151, 0.0
        %1208 = vadd.xlane.f32.xlu0 %v1207
        %v1209 = vpop.xlane.xlu0 %1208
        %v1210 = vsel %vm249, %v1152, 0.0
        %1211 = vadd.xlane.f32.xlu0 %v1210
        %v1212 = vpop.xlane.xlu0 %1211
        %v1213 = vsel %vm249, %v1153, 0.0
        %1214 = vadd.xlane.f32.xlu0 %v1213
        %v1215 = vpop.xlane.xlu0 %1214
        %v1216 = vsel %vm249, %v1154, 0.0
        %1217 = vadd.xlane.f32.xlu0 %v1216
        %v1218 = vpop.xlane.xlu0 %1217
        %v1219 = vsel %vm249, %v1155, 0.0
        %1220 = vadd.xlane.f32.xlu0 %v1219
        %v1221 = vpop.xlane.xlu0 %1220
        %v1222 = vsel %vm249, %v1156, 0.0
        %1223 = vadd.xlane.f32.xlu0 %v1222
        %v1224 = vpop.xlane.xlu0 %1223
        %v1225 = vsel %vm249, %v1157, 0.0
        %1226 = vadd.xlane.f32.xlu0 %v1225
        %v1227 = vpop.xlane.xlu0 %1226
        %v1228 = vsel %vm249, %v1158, 0.0
        %1229 = vadd.xlane.f32.xlu0 %v1228
        %v1230 = vpop.xlane.xlu0 %1229
        %v1231 = vsel %vm249, %v1159, 0.0
        %1232 = vadd.xlane.f32.xlu0 %v1231
        %v1233 = vpop.xlane.xlu0 %1232
        %v1234 = vsel %vm249, %v1160, 0.0
        %1235 = vadd.xlane.f32.xlu0 %v1234
        %v1236 = vpop.xlane.xlu0 %1235
        %v1237 = vsel %vm249, %v1161, 0.0
        %1238 = vadd.xlane.f32.xlu0 %v1237
        %v1239 = vpop.xlane.xlu0 %1238
        %v1240 = vsel %vm249, %v1162, 0.0
        %1241 = vadd.xlane.f32.xlu0 %v1240
        %v1242 = vpop.xlane.xlu0 %1241
        %v1243 = vsel %vm249, %v1163, 0.0
        %1244 = vadd.xlane.f32.xlu0 %v1243
        %v1245 = vpop.xlane.xlu0 %1244
        %v1246 = vsel %vm249, %v1164, 0.0
        %1247 = vadd.xlane.f32.xlu0 %v1246
        %v1248 = vpop.xlane.xlu0 %1247
        %v1249 = vsel %vm249, %v1165, 0.0
        %1250 = vadd.xlane.f32.xlu0 %v1249
        %v1251 = vpop.xlane.xlu0 %1250
        %v1252 = vsel %vm249, %v1166, 0.0
        %1253 = vadd.xlane.f32.xlu0 %v1252
        %v1254 = vpop.xlane.xlu0 %1253
        %v1255 = vsel %vm249, %v1167, 0.0
        %1256 = vadd.xlane.f32.xlu0 %v1255
        %v1257 = vpop.xlane.xlu0 %1256
        %v1258 = vsel %vm249, %v1168, 0.0
        %1259 = vadd.xlane.f32.xlu0 %v1258
        %v1260 = vpop.xlane.xlu0 %1259
        %v1261 = vsel %vm249, %v1169, 0.0
        %1262 = vadd.xlane.f32.xlu0 %v1261
        %v1263 = vpop.xlane.xlu0 %1262
        %v1264 = vsel %vm249, %v1170, 0.0
        %1265 = vadd.xlane.f32.xlu0 %v1264
        %v1266 = vpop.xlane.xlu0 %1265
        %v1267 = vadd.f32 %v706, %v1173
        %v1268 = vadd.f32 %v707, %v1176
        %v1269 = vadd.f32 %v708, %v1179
        %v1270 = vadd.f32 %v709, %v1182
        %v1271 = vadd.f32 %v710, %v1185
        %v1272 = vadd.f32 %v711, %v1188
        %v1273 = vadd.f32 %v712, %v1191
        %v1274 = vadd.f32 %v713, %v1194
        %v1275 = vadd.f32 %v714, %v1197
        %v1276 = vadd.f32 %v715, %v1200
        %v1277 = vadd.f32 %v716, %v1203
        %v1278 = vadd.f32 %v717, %v1206
        %v1279 = vadd.f32 %v718, %v1209
        %v1280 = vadd.f32 %v719, %v1212
        %v1281 = vadd.f32 %v720, %v1215
        %v1282 = vadd.f32 %v721, %v1218
        %v1283 = vadd.f32 %v722, %v1221
        %v1284 = vadd.f32 %v723, %v1224
        %v1285 = vadd.f32 %v724, %v1227
        %v1286 = vadd.f32 %v725, %v1230
        %v1287 = vadd.f32 %v726, %v1233
        %v1288 = vadd.f32 %v727, %v1236
        %v1289 = vadd.f32 %v728, %v1239
        %v1290 = vadd.f32 %v729, %v1242
        %v1291 = vadd.f32 %v730, %v1245
        %v1292 = vadd.f32 %v731, %v1248
        %v1293 = vadd.f32 %v732, %v1251
        %v1294 = vadd.f32 %v733, %v1254
        %v1295 = vadd.f32 %v734, %v1257
        %v1296 = vadd.f32 %v735, %v1260
        %v1297 = vadd.f32 %v736, %v1263
        %v1298 = vadd.f32 %v737, %v1266
        %s1299 = sadd.s32 %s176, 2
        %s1300 = scalar_lea.vmem %s0, %s1299
        %v1301 = vld [vmem:[%s1300] sm:$0xff]
        %v1302 = vld [vmem:[%s1300 + $0x8] sm:$0xff]
        %v1303 = vld [vmem:[%s1300 + $0x10] sm:$0xff]
        %v1304 = vld [vmem:[%s1300 + $0x18] sm:$0xff]
        %v1305 = vld [vmem:[%s1300 + $0x20] sm:$0xff]
        %v1306 = vld [vmem:[%s1300 + $0x28] sm:$0xff]
        %v1307 = vld [vmem:[%s1300 + $0x30] sm:$0xff]
        %v1308 = vld [vmem:[%s1300 + $0x38] sm:$0xff]
        %v1309 = vld [vmem:[%s1300 + $0x40] sm:$0xff]
        %v1310 = vld [vmem:[%s1300 + $0x48] sm:$0xff]
        %v1311 = vld [vmem:[%s1300 + $0x50] sm:$0xff]
        %v1312 = vld [vmem:[%s1300 + $0x58] sm:$0xff]
        %v1313 = vld [vmem:[%s1300 + $0x60] sm:$0xff]
        %v1314 = vld [vmem:[%s1300 + $0x68] sm:$0xff]
        %v1315 = vld [vmem:[%s1300 + $0x70] sm:$0xff]
        %v1316 = vld [vmem:[%s1300 + $0x78] sm:$0xff]
        %v1317 = vld [vmem:[%s1300 + $0x188] sm:$0xff]
        %v1318 = vld [vmem:[%s1300 + $0x190] sm:$0xff]
        %v1319 = vld [vmem:[%s1300 + $0x198] sm:$0xff]
        %v1320 = vld [vmem:[%s1300 + $0x1a0] sm:$0xff]
        %v1321 = vld [vmem:[%s1300 + $0x1a8] sm:$0xff]
        %v1322 = vld [vmem:[%s1300 + $0x1b0] sm:$0xff]
        %v1323 = vld [vmem:[%s1300 + $0x1b8] sm:$0xff]
        %v1324 = vld [vmem:[%s1300 + $0x1c0] sm:$0xff]
        %v1325 = vld [vmem:[%s1300 + $0x1c8] sm:$0xff]
        %v1326 = vld [vmem:[%s1300 + $0x1d0] sm:$0xff]
        %v1327 = vld [vmem:[%s1300 + $0x1d8] sm:$0xff]
        %v1328 = vld [vmem:[%s1300 + $0x1e0] sm:$0xff]
        %v1329 = vld [vmem:[%s1300 + $0x1e8] sm:$0xff]
        %v1330 = vld [vmem:[%s1300 + $0x1f0] sm:$0xff]
        %v1331 = vld [vmem:[%s1300 + $0x1f8] sm:$0xff]
        %v1332 = vld [vmem:[%s1300 + $0x200] sm:$0xff]
        %v1333 = vld [vmem:[%s1 + $0x2] sm:$0x1]
        %v1334 = vld [vmem:[%s2 + $0x2] sm:$0x1]
        %v1335 = vld [vmem:[%s3 + $0x2] sm:$0x1]
        %v1336 = vlaneseq
        %v1337 = vshrl.u32 %v1336, 7
        %v1338 = vsub.s32 0, %v1337
        %v1339 = vrot.slane %v1333, %v1338
        %v1340 = vmul.f32 %v1301, %v1339
        %v1341 = vmul.f32 %v1302, %v1339
        %v1342 = vmul.f32 %v1303, %v1339
        %v1343 = vmul.f32 %v1304, %v1339
        %v1344 = vmul.f32 %v1305, %v1339
        %v1345 = vmul.f32 %v1306, %v1339
        %v1346 = vmul.f32 %v1307, %v1339
        %v1347 = vmul.f32 %v1308, %v1339
        %v1348 = vmul.f32 %v1309, %v1339
        %v1349 = vmul.f32 %v1310, %v1339
        %v1350 = vmul.f32 %v1311, %v1339
        %v1351 = vmul.f32 %v1312, %v1339
        %v1352 = vmul.f32 %v1313, %v1339
        %v1353 = vmul.f32 %v1314, %v1339
        %v1354 = vmul.f32 %v1315, %v1339
        %v1355 = vmul.f32 %v1316, %v1339
        %v1356 = vmul.f32 %v1317, %v1339
        %v1357 = vmul.f32 %v1318, %v1339
        %v1358 = vmul.f32 %v1319, %v1339
        %v1359 = vmul.f32 %v1320, %v1339
        %v1360 = vmul.f32 %v1321, %v1339
        %v1361 = vmul.f32 %v1322, %v1339
        %v1362 = vmul.f32 %v1323, %v1339
        %v1363 = vmul.f32 %v1324, %v1339
        %v1364 = vmul.f32 %v1325, %v1339
        %v1365 = vmul.f32 %v1326, %v1339
        %v1366 = vmul.f32 %v1327, %v1339
        %v1367 = vmul.f32 %v1328, %v1339
        %v1368 = vmul.f32 %v1329, %v1339
        %v1369 = vmul.f32 %v1330, %v1339
        %v1370 = vmul.f32 %v1331, %v1339
        %v1371 = vmul.f32 %v1332, %v1339
        %v1372 = vsel %vm249, %v1340, 0.0
        %1373 = vadd.xlane.f32.xlu0 %v1372
        %v1374 = vpop.xlane.xlu0 %1373
        %v1375 = vsel %vm249, %v1341, 0.0
        %1376 = vadd.xlane.f32.xlu0 %v1375
        %v1377 = vpop.xlane.xlu0 %1376
        %v1378 = vsel %vm249, %v1342, 0.0
        %1379 = vadd.xlane.f32.xlu0 %v1378
        %v1380 = vpop.xlane.xlu0 %1379
        %v1381 = vsel %vm249, %v1343, 0.0
        %1382 = vadd.xlane.f32.xlu0 %v1381
        %v1383 = vpop.xlane.xlu0 %1382
        %v1384 = vsel %vm249, %v1344, 0.0
        %1385 = vadd.xlane.f32.xlu0 %v1384
        %v1386 = vpop.xlane.xlu0 %1385
        %v1387 = vsel %vm249, %v1345, 0.0
        %1388 = vadd.xlane.f32.xlu0 %v1387
        %v1389 = vpop.xlane.xlu0 %1388
        %v1390 = vsel %vm249, %v1346, 0.0
        %1391 = vadd.xlane.f32.xlu0 %v1390
        %v1392 = vpop.xlane.xlu0 %1391
        %v1393 = vsel %vm249, %v1347, 0.0
        %1394 = vadd.xlane.f32.xlu0 %v1393
        %v1395 = vpop.xlane.xlu0 %1394
        %v1396 = vsel %vm249, %v1348, 0.0
        %1397 = vadd.xlane.f32.xlu0 %v1396
        %v1398 = vpop.xlane.xlu0 %1397
        %v1399 = vsel %vm249, %v1349, 0.0
        %1400 = vadd.xlane.f32.xlu0 %v1399
        %v1401 = vpop.xlane.xlu0 %1400
        %v1402 = vsel %vm249, %v1350, 0.0
        %1403 = vadd.xlane.f32.xlu0 %v1402
        %v1404 = vpop.xlane.xlu0 %1403
        %v1405 = vsel %vm249, %v1351, 0.0
        %1406 = vadd.xlane.f32.xlu0 %v1405
        %v1407 = vpop.xlane.xlu0 %1406
        %v1408 = vsel %vm249, %v1352, 0.0
        %1409 = vadd.xlane.f32.xlu0 %v1408
        %v1410 = vpop.xlane.xlu0 %1409
        %v1411 = vsel %vm249, %v1353, 0.0
        %1412 = vadd.xlane.f32.xlu0 %v1411
        %v1413 = vpop.xlane.xlu0 %1412
        %v1414 = vsel %vm249, %v1354, 0.0
        %1415 = vadd.xlane.f32.xlu0 %v1414
        %v1416 = vpop.xlane.xlu0 %1415
        %v1417 = vsel %vm249, %v1355, 0.0
        %1418 = vadd.xlane.f32.xlu0 %v1417
        %v1419 = vpop.xlane.xlu0 %1418
        %v1420 = vsel %vm249, %v1356, 0.0
        %1421 = vadd.xlane.f32.xlu0 %v1420
        %v1422 = vpop.xlane.xlu0 %1421
        %v1423 = vsel %vm249, %v1357, 0.0
        %1424 = vadd.xlane.f32.xlu0 %v1423
        %v1425 = vpop.xlane.xlu0 %1424
        %v1426 = vsel %vm249, %v1358, 0.0
        %1427 = vadd.xlane.f32.xlu0 %v1426
        %v1428 = vpop.xlane.xlu0 %1427
        %v1429 = vsel %vm249, %v1359, 0.0
        %1430 = vadd.xlane.f32.xlu0 %v1429
        %v1431 = vpop.xlane.xlu0 %1430
        %v1432 = vsel %vm249, %v1360, 0.0
        %1433 = vadd.xlane.f32.xlu0 %v1432
        %v1434 = vpop.xlane.xlu0 %1433
        %v1435 = vsel %vm249, %v1361, 0.0
        %1436 = vadd.xlane.f32.xlu0 %v1435
        %v1437 = vpop.xlane.xlu0 %1436
        %v1438 = vsel %vm249, %v1362, 0.0
        %1439 = vadd.xlane.f32.xlu0 %v1438
        %v1440 = vpop.xlane.xlu0 %1439
        %v1441 = vsel %vm249, %v1363, 0.0
        %1442 = vadd.xlane.f32.xlu0 %v1441
        %v1443 = vpop.xlane.xlu0 %1442
        %v1444 = vsel %vm249, %v1364, 0.0
        %1445 = vadd.xlane.f32.xlu0 %v1444
        %v1446 = vpop.xlane.xlu0 %1445
        %v1447 = vsel %vm249, %v1365, 0.0
        %1448 = vadd.xlane.f32.xlu0 %v1447
        %v1449 = vpop.xlane.xlu0 %1448
        %v1450 = vsel %vm249, %v1366, 0.0
        %1451 = vadd.xlane.f32.xlu0 %v1450
        %v1452 = vpop.xlane.xlu0 %1451
        %v1453 = vsel %vm249, %v1367, 0.0
        %1454 = vadd.xlane.f32.xlu0 %v1453
        %v1455 = vpop.xlane.xlu0 %1454
        %v1456 = vsel %vm249, %v1368, 0.0
        %1457 = vadd.xlane.f32.xlu0 %v1456
        %v1458 = vpop.xlane.xlu0 %1457
        %v1459 = vsel %vm249, %v1369, 0.0
        %1460 = vadd.xlane.f32.xlu0 %v1459
        %v1461 = vpop.xlane.xlu0 %1460
        %v1462 = vsel %vm249, %v1370, 0.0
        %1463 = vadd.xlane.f32.xlu0 %v1462
        %v1464 = vpop.xlane.xlu0 %1463
        %v1465 = vsel %vm249, %v1371, 0.0
        %1466 = vadd.xlane.f32.xlu0 %v1465
        %v1467 = vpop.xlane.xlu0 %1466
        %v1468 = vadd.f32 %v907, %v1374
        %v1469 = vadd.f32 %v908, %v1377
        %v1470 = vadd.f32 %v909, %v1380
        %v1471 = vadd.f32 %v910, %v1383
        %v1472 = vadd.f32 %v911, %v1386
        %v1473 = vadd.f32 %v912, %v1389
        %v1474 = vadd.f32 %v913, %v1392
        %v1475 = vadd.f32 %v914, %v1395
        %v1476 = vadd.f32 %v915, %v1398
        %v1477 = vadd.f32 %v916, %v1401
        %v1478 = vadd.f32 %v917, %v1404
        %v1479 = vadd.f32 %v918, %v1407
        %v1480 = vadd.f32 %v919, %v1410
        %v1481 = vadd.f32 %v920, %v1413
        %v1482 = vadd.f32 %v921, %v1416
        %v1483 = vadd.f32 %v922, %v1419
        %v1484 = vadd.f32 %v923, %v1422
        %v1485 = vadd.f32 %v924, %v1425
        %v1486 = vadd.f32 %v925, %v1428
        %v1487 = vadd.f32 %v926, %v1431
        %v1488 = vadd.f32 %v927, %v1434
        %v1489 = vadd.f32 %v928, %v1437
        %v1490 = vadd.f32 %v929, %v1440
        %v1491 = vadd.f32 %v930, %v1443
        %v1492 = vadd.f32 %v931, %v1446
        %v1493 = vadd.f32 %v932, %v1449
        %v1494 = vadd.f32 %v933, %v1452
        %v1495 = vadd.f32 %v934, %v1455
        %v1496 = vadd.f32 %v935, %v1458
        %v1497 = vadd.f32 %v936, %v1461
        %v1498 = vadd.f32 %v937, %v1464
        %v1499 = vadd.f32 %v938, %v1467
        %v1500 = vmul.f32 %v1301, %v1301
        %v1501 = vmul.f32 %v1302, %v1302
        %v1502 = vmul.f32 %v1303, %v1303
        %v1503 = vmul.f32 %v1304, %v1304
        %v1504 = vmul.f32 %v1305, %v1305
        %v1505 = vmul.f32 %v1306, %v1306
        %v1506 = vmul.f32 %v1307, %v1307
        %v1507 = vmul.f32 %v1308, %v1308
        %v1508 = vmul.f32 %v1309, %v1309
        %v1509 = vmul.f32 %v1310, %v1310
        %v1510 = vmul.f32 %v1311, %v1311
        %v1511 = vmul.f32 %v1312, %v1312
        %v1512 = vmul.f32 %v1313, %v1313
        %v1513 = vmul.f32 %v1314, %v1314
        %v1514 = vmul.f32 %v1315, %v1315
        %v1515 = vmul.f32 %v1316, %v1316
        %v1516 = vmul.f32 %v1317, %v1317
        %v1517 = vmul.f32 %v1318, %v1318
        %v1518 = vmul.f32 %v1319, %v1319
        %v1519 = vmul.f32 %v1320, %v1320
        %v1520 = vmul.f32 %v1321, %v1321
        %v1521 = vmul.f32 %v1322, %v1322
        %v1522 = vmul.f32 %v1323, %v1323
        %v1523 = vmul.f32 %v1324, %v1324
        %v1524 = vmul.f32 %v1325, %v1325
        %v1525 = vmul.f32 %v1326, %v1326
        %v1526 = vmul.f32 %v1327, %v1327
        %v1527 = vmul.f32 %v1328, %v1328
        %v1528 = vmul.f32 %v1329, %v1329
        %v1529 = vmul.f32 %v1330, %v1330
        %v1530 = vmul.f32 %v1331, %v1331
        %v1531 = vmul.f32 %v1332, %v1332
        %v1532 = vlaneseq
        %v1533 = vshrl.u32 %v1532, 7
        %v1534 = vsub.s32 0, %v1533
        %v1535 = vrot.slane %v1334, %v1534
        %v1536 = vmul.f32 %v1500, %v1535
        %v1537 = vmul.f32 %v1501, %v1535
        %v1538 = vmul.f32 %v1502, %v1535
        %v1539 = vmul.f32 %v1503, %v1535
        %v1540 = vmul.f32 %v1504, %v1535
        %v1541 = vmul.f32 %v1505, %v1535
        %v1542 = vmul.f32 %v1506, %v1535
        %v1543 = vmul.f32 %v1507, %v1535
        %v1544 = vmul.f32 %v1508, %v1535
        %v1545 = vmul.f32 %v1509, %v1535
        %v1546 = vmul.f32 %v1510, %v1535
        %v1547 = vmul.f32 %v1511, %v1535
        %v1548 = vmul.f32 %v1512, %v1535
        %v1549 = vmul.f32 %v1513, %v1535
        %v1550 = vmul.f32 %v1514, %v1535
        %v1551 = vmul.f32 %v1515, %v1535
        %v1552 = vmul.f32 %v1516, %v1535
        %v1553 = vmul.f32 %v1517, %v1535
        %v1554 = vmul.f32 %v1518, %v1535
        %v1555 = vmul.f32 %v1519, %v1535
        %v1556 = vmul.f32 %v1520, %v1535
        %v1557 = vmul.f32 %v1521, %v1535
        %v1558 = vmul.f32 %v1522, %v1535
        %v1559 = vmul.f32 %v1523, %v1535
        %v1560 = vmul.f32 %v1524, %v1535
        %v1561 = vmul.f32 %v1525, %v1535
        %v1562 = vmul.f32 %v1526, %v1535
        %v1563 = vmul.f32 %v1527, %v1535
        %v1564 = vmul.f32 %v1528, %v1535
        %v1565 = vmul.f32 %v1529, %v1535
        %v1566 = vmul.f32 %v1530, %v1535
        %v1567 = vmul.f32 %v1531, %v1535
        %v1568 = vsel %vm249, %v1536, 0.0
        %1569 = vadd.xlane.f32.xlu0 %v1568
        %v1570 = vpop.xlane.xlu0 %1569
        %v1571 = vsel %vm249, %v1537, 0.0
        %1572 = vadd.xlane.f32.xlu0 %v1571
        %v1573 = vpop.xlane.xlu0 %1572
        %v1574 = vsel %vm249, %v1538, 0.0
        %1575 = vadd.xlane.f32.xlu0 %v1574
        %v1576 = vpop.xlane.xlu0 %1575
        %v1577 = vsel %vm249, %v1539, 0.0
        %1578 = vadd.xlane.f32.xlu0 %v1577
        %v1579 = vpop.xlane.xlu0 %1578
        %v1580 = vsel %vm249, %v1540, 0.0
        %1581 = vadd.xlane.f32.xlu0 %v1580
        %v1582 = vpop.xlane.xlu0 %1581
        %v1583 = vsel %vm249, %v1541, 0.0
        %1584 = vadd.xlane.f32.xlu0 %v1583
        %v1585 = vpop.xlane.xlu0 %1584
        %v1586 = vsel %vm249, %v1542, 0.0
        %1587 = vadd.xlane.f32.xlu0 %v1586
        %v1588 = vpop.xlane.xlu0 %1587
        %v1589 = vsel %vm249, %v1543, 0.0
        %1590 = vadd.xlane.f32.xlu0 %v1589
        %v1591 = vpop.xlane.xlu0 %1590
        %v1592 = vsel %vm249, %v1544, 0.0
        %1593 = vadd.xlane.f32.xlu0 %v1592
        %v1594 = vpop.xlane.xlu0 %1593
        %v1595 = vsel %vm249, %v1545, 0.0
        %1596 = vadd.xlane.f32.xlu0 %v1595
        %v1597 = vpop.xlane.xlu0 %1596
        %v1598 = vsel %vm249, %v1546, 0.0
        %1599 = vadd.xlane.f32.xlu0 %v1598
        %v1600 = vpop.xlane.xlu0 %1599
        %v1601 = vsel %vm249, %v1547, 0.0
        %1602 = vadd.xlane.f32.xlu0 %v1601
        %v1603 = vpop.xlane.xlu0 %1602
        %v1604 = vsel %vm249, %v1548, 0.0
        %1605 = vadd.xlane.f32.xlu0 %v1604
        %v1606 = vpop.xlane.xlu0 %1605
        %v1607 = vsel %vm249, %v1549, 0.0
        %1608 = vadd.xlane.f32.xlu0 %v1607
        %v1609 = vpop.xlane.xlu0 %1608
        %v1610 = vsel %vm249, %v1550, 0.0
        %1611 = vadd.xlane.f32.xlu0 %v1610
        %v1612 = vpop.xlane.xlu0 %1611
        %v1613 = vsel %vm249, %v1551, 0.0
        %1614 = vadd.xlane.f32.xlu0 %v1613
        %v1615 = vpop.xlane.xlu0 %1614
        %v1616 = vsel %vm249, %v1552, 0.0
        %1617 = vadd.xlane.f32.xlu0 %v1616
        %v1618 = vpop.xlane.xlu0 %1617
        %v1619 = vsel %vm249, %v1553, 0.0
        %1620 = vadd.xlane.f32.xlu0 %v1619
        %v1621 = vpop.xlane.xlu0 %1620
        %v1622 = vsel %vm249, %v1554, 0.0
        %1623 = vadd.xlane.f32.xlu0 %v1622
        %v1624 = vpop.xlane.xlu0 %1623
        %v1625 = vsel %vm249, %v1555, 0.0
        %1626 = vadd.xlane.f32.xlu0 %v1625
        %v1627 = vpop.xlane.xlu0 %1626
        %v1628 = vsel %vm249, %v1556, 0.0
        %1629 = vadd.xlane.f32.xlu0 %v1628
        %v1630 = vpop.xlane.xlu0 %1629
        %v1631 = vsel %vm249, %v1557, 0.0
        %1632 = vadd.xlane.f32.xlu0 %v1631
        %v1633 = vpop.xlane.xlu0 %1632
        %v1634 = vsel %vm249, %v1558, 0.0
        %1635 = vadd.xlane.f32.xlu0 %v1634
        %v1636 = vpop.xlane.xlu0 %1635
        %v1637 = vsel %vm249, %v1559, 0.0
        %1638 = vadd.xlane.f32.xlu0 %v1637
        %v1639 = vpop.xlane.xlu0 %1638
        %v1640 = vsel %vm249, %v1560, 0.0
        %1641 = vadd.xlane.f32.xlu0 %v1640
        %v1642 = vpop.xlane.xlu0 %1641
        %v1643 = vsel %vm249, %v1561, 0.0
        %1644 = vadd.xlane.f32.xlu0 %v1643
        %v1645 = vpop.xlane.xlu0 %1644
        %v1646 = vsel %vm249, %v1562, 0.0
        %1647 = vadd.xlane.f32.xlu0 %v1646
        %v1648 = vpop.xlane.xlu0 %1647
        %v1649 = vsel %vm249, %v1563, 0.0
        %1650 = vadd.xlane.f32.xlu0 %v1649
        %v1651 = vpop.xlane.xlu0 %1650
        %v1652 = vsel %vm249, %v1564, 0.0
        %1653 = vadd.xlane.f32.xlu0 %v1652
        %v1654 = vpop.xlane.xlu0 %1653
        %v1655 = vsel %vm249, %v1565, 0.0
        %1656 = vadd.xlane.f32.xlu0 %v1655
        %v1657 = vpop.xlane.xlu0 %1656
        %v1658 = vsel %vm249, %v1566, 0.0
        %1659 = vadd.xlane.f32.xlu0 %v1658
        %v1660 = vpop.xlane.xlu0 %1659
        %v1661 = vsel %vm249, %v1567, 0.0
        %1662 = vadd.xlane.f32.xlu0 %v1661
        %v1663 = vpop.xlane.xlu0 %1662
        %v1664 = vadd.f32 %v1103, %v1570
        %v1665 = vadd.f32 %v1104, %v1573
        %v1666 = vadd.f32 %v1105, %v1576
        %v1667 = vadd.f32 %v1106, %v1579
        %v1668 = vadd.f32 %v1107, %v1582
        %v1669 = vadd.f32 %v1108, %v1585
        %v1670 = vadd.f32 %v1109, %v1588
        %v1671 = vadd.f32 %v1110, %v1591
        %v1672 = vadd.f32 %v1111, %v1594
        %v1673 = vadd.f32 %v1112, %v1597
        %v1674 = vadd.f32 %v1113, %v1600
        %v1675 = vadd.f32 %v1114, %v1603
        %v1676 = vadd.f32 %v1115, %v1606
        %v1677 = vadd.f32 %v1116, %v1609
        %v1678 = vadd.f32 %v1117, %v1612
        %v1679 = vadd.f32 %v1118, %v1615
        %v1680 = vadd.f32 %v1119, %v1618
        %v1681 = vadd.f32 %v1120, %v1621
        %v1682 = vadd.f32 %v1121, %v1624
        %v1683 = vadd.f32 %v1122, %v1627
        %v1684 = vadd.f32 %v1123, %v1630
        %v1685 = vadd.f32 %v1124, %v1633
        %v1686 = vadd.f32 %v1125, %v1636
        %v1687 = vadd.f32 %v1126, %v1639
        %v1688 = vadd.f32 %v1127, %v1642
        %v1689 = vadd.f32 %v1128, %v1645
        %v1690 = vadd.f32 %v1129, %v1648
        %v1691 = vadd.f32 %v1130, %v1651
        %v1692 = vadd.f32 %v1131, %v1654
        %v1693 = vadd.f32 %v1132, %v1657
        %v1694 = vadd.f32 %v1133, %v1660
        %v1695 = vadd.f32 %v1134, %v1663
        %v1696 = vlaneseq
        %v1697 = vshrl.u32 %v1696, 7
        %v1698 = vsub.s32 0, %v1697
        %v1699 = vrot.slane %v1335, %v1698
        %v1700 = vmul.f32 %v1301, %v1699
        %v1701 = vmul.f32 %v1302, %v1699
        %v1702 = vmul.f32 %v1303, %v1699
        %v1703 = vmul.f32 %v1304, %v1699
        %v1704 = vmul.f32 %v1305, %v1699
        %v1705 = vmul.f32 %v1306, %v1699
        %v1706 = vmul.f32 %v1307, %v1699
        %v1707 = vmul.f32 %v1308, %v1699
        %v1708 = vmul.f32 %v1309, %v1699
        %v1709 = vmul.f32 %v1310, %v1699
        %v1710 = vmul.f32 %v1311, %v1699
        %v1711 = vmul.f32 %v1312, %v1699
        %v1712 = vmul.f32 %v1313, %v1699
        %v1713 = vmul.f32 %v1314, %v1699
        %v1714 = vmul.f32 %v1315, %v1699
        %v1715 = vmul.f32 %v1316, %v1699
        %v1716 = vmul.f32 %v1317, %v1699
        %v1717 = vmul.f32 %v1318, %v1699
        %v1718 = vmul.f32 %v1319, %v1699
        %v1719 = vmul.f32 %v1320, %v1699
        %v1720 = vmul.f32 %v1321, %v1699
        %v1721 = vmul.f32 %v1322, %v1699
        %v1722 = vmul.f32 %v1323, %v1699
        %v1723 = vmul.f32 %v1324, %v1699
        %v1724 = vmul.f32 %v1325, %v1699
        %v1725 = vmul.f32 %v1326, %v1699
        %v1726 = vmul.f32 %v1327, %v1699
        %v1727 = vmul.f32 %v1328, %v1699
        %v1728 = vmul.f32 %v1329, %v1699
        %v1729 = vmul.f32 %v1330, %v1699
        %v1730 = vmul.f32 %v1331, %v1699
        %v1731 = vmul.f32 %v1332, %v1699
        %v1732 = vsel %vm249, %v1700, 0.0
        %1733 = vadd.xlane.f32.xlu0 %v1732
        %v1734 = vpop.xlane.xlu0 %1733
        %v1735 = vsel %vm249, %v1701, 0.0
        %1736 = vadd.xlane.f32.xlu0 %v1735
        %v1737 = vpop.xlane.xlu0 %1736
        %v1738 = vsel %vm249, %v1702, 0.0
        %1739 = vadd.xlane.f32.xlu0 %v1738
        %v1740 = vpop.xlane.xlu0 %1739
        %v1741 = vsel %vm249, %v1703, 0.0
        %1742 = vadd.xlane.f32.xlu0 %v1741
        %v1743 = vpop.xlane.xlu0 %1742
        %v1744 = vsel %vm249, %v1704, 0.0
        %1745 = vadd.xlane.f32.xlu0 %v1744
        %v1746 = vpop.xlane.xlu0 %1745
        %v1747 = vsel %vm249, %v1705, 0.0
        %1748 = vadd.xlane.f32.xlu0 %v1747
        %v1749 = vpop.xlane.xlu0 %1748
        %v1750 = vsel %vm249, %v1706, 0.0
        %1751 = vadd.xlane.f32.xlu0 %v1750
        %v1752 = vpop.xlane.xlu0 %1751
        %v1753 = vsel %vm249, %v1707, 0.0
        %1754 = vadd.xlane.f32.xlu0 %v1753
        %v1755 = vpop.xlane.xlu0 %1754
        %v1756 = vsel %vm249, %v1708, 0.0
        %1757 = vadd.xlane.f32.xlu0 %v1756
        %v1758 = vpop.xlane.xlu0 %1757
        %v1759 = vsel %vm249, %v1709, 0.0
        %1760 = vadd.xlane.f32.xlu0 %v1759
        %v1761 = vpop.xlane.xlu0 %1760
        %v1762 = vsel %vm249, %v1710, 0.0
        %1763 = vadd.xlane.f32.xlu0 %v1762
        %v1764 = vpop.xlane.xlu0 %1763
        %v1765 = vsel %vm249, %v1711, 0.0
        %1766 = vadd.xlane.f32.xlu0 %v1765
        %v1767 = vpop.xlane.xlu0 %1766
        %v1768 = vsel %vm249, %v1712, 0.0
        %1769 = vadd.xlane.f32.xlu0 %v1768
        %v1770 = vpop.xlane.xlu0 %1769
        %v1771 = vsel %vm249, %v1713, 0.0
        %1772 = vadd.xlane.f32.xlu0 %v1771
        %v1773 = vpop.xlane.xlu0 %1772
        %v1774 = vsel %vm249, %v1714, 0.0
        %1775 = vadd.xlane.f32.xlu0 %v1774
        %v1776 = vpop.xlane.xlu0 %1775
        %v1777 = vsel %vm249, %v1715, 0.0
        %1778 = vadd.xlane.f32.xlu0 %v1777
        %v1779 = vpop.xlane.xlu0 %1778
        %v1780 = vsel %vm249, %v1716, 0.0
        %1781 = vadd.xlane.f32.xlu0 %v1780
        %v1782 = vpop.xlane.xlu0 %1781
        %v1783 = vsel %vm249, %v1717, 0.0
        %1784 = vadd.xlane.f32.xlu0 %v1783
        %v1785 = vpop.xlane.xlu0 %1784
        %v1786 = vsel %vm249, %v1718, 0.0
        %1787 = vadd.xlane.f32.xlu0 %v1786
        %v1788 = vpop.xlane.xlu0 %1787
        %v1789 = vsel %vm249, %v1719, 0.0
        %1790 = vadd.xlane.f32.xlu0 %v1789
        %v1791 = vpop.xlane.xlu0 %1790
        %v1792 = vsel %vm249, %v1720, 0.0
        %1793 = vadd.xlane.f32.xlu0 %v1792
        %v1794 = vpop.xlane.xlu0 %1793
        %v1795 = vsel %vm249, %v1721, 0.0
        %1796 = vadd.xlane.f32.xlu0 %v1795
        %v1797 = vpop.xlane.xlu0 %1796
        %v1798 = vsel %vm249, %v1722, 0.0
        %1799 = vadd.xlane.f32.xlu0 %v1798
        %v1800 = vpop.xlane.xlu0 %1799
        %v1801 = vsel %vm249, %v1723, 0.0
        %1802 = vadd.xlane.f32.xlu0 %v1801
        %v1803 = vpop.xlane.xlu0 %1802
        %v1804 = vsel %vm249, %v1724, 0.0
        %1805 = vadd.xlane.f32.xlu0 %v1804
        %v1806 = vpop.xlane.xlu0 %1805
        %v1807 = vsel %vm249, %v1725, 0.0
        %1808 = vadd.xlane.f32.xlu0 %v1807
        %v1809 = vpop.xlane.xlu0 %1808
        %v1810 = vsel %vm249, %v1726, 0.0
        %1811 = vadd.xlane.f32.xlu0 %v1810
        %v1812 = vpop.xlane.xlu0 %1811
        %v1813 = vsel %vm249, %v1727, 0.0
        %1814 = vadd.xlane.f32.xlu0 %v1813
        %v1815 = vpop.xlane.xlu0 %1814
        %v1816 = vsel %vm249, %v1728, 0.0
        %1817 = vadd.xlane.f32.xlu0 %v1816
        %v1818 = vpop.xlane.xlu0 %1817
        %v1819 = vsel %vm249, %v1729, 0.0
        %1820 = vadd.xlane.f32.xlu0 %v1819
        %v1821 = vpop.xlane.xlu0 %1820
        %v1822 = vsel %vm249, %v1730, 0.0
        %1823 = vadd.xlane.f32.xlu0 %v1822
        %v1824 = vpop.xlane.xlu0 %1823
        %v1825 = vsel %vm249, %v1731, 0.0
        %1826 = vadd.xlane.f32.xlu0 %v1825
        %v1827 = vpop.xlane.xlu0 %1826
        %v1828 = vadd.f32 %v1267, %v1734
        %v1829 = vadd.f32 %v1268, %v1737
        %v1830 = vadd.f32 %v1269, %v1740
        %v1831 = vadd.f32 %v1270, %v1743
        %v1832 = vadd.f32 %v1271, %v1746
        %v1833 = vadd.f32 %v1272, %v1749
        %v1834 = vadd.f32 %v1273, %v1752
        %v1835 = vadd.f32 %v1274, %v1755
        %v1836 = vadd.f32 %v1275, %v1758
        %v1837 = vadd.f32 %v1276, %v1761
        %v1838 = vadd.f32 %v1277, %v1764
        %v1839 = vadd.f32 %v1278, %v1767
        %v1840 = vadd.f32 %v1279, %v1770
        %v1841 = vadd.f32 %v1280, %v1773
        %v1842 = vadd.f32 %v1281, %v1776
        %v1843 = vadd.f32 %v1282, %v1779
        %v1844 = vadd.f32 %v1283, %v1782
        %v1845 = vadd.f32 %v1284, %v1785
        %v1846 = vadd.f32 %v1285, %v1788
        %v1847 = vadd.f32 %v1286, %v1791
        %v1848 = vadd.f32 %v1287, %v1794
        %v1849 = vadd.f32 %v1288, %v1797
        %v1850 = vadd.f32 %v1289, %v1800
        %v1851 = vadd.f32 %v1290, %v1803
        %v1852 = vadd.f32 %v1291, %v1806
        %v1853 = vadd.f32 %v1292, %v1809
        %v1854 = vadd.f32 %v1293, %v1812
        %v1855 = vadd.f32 %v1294, %v1815
        %v1856 = vadd.f32 %v1295, %v1818
        %v1857 = vadd.f32 %v1296, %v1821
        %v1858 = vadd.f32 %v1297, %v1824
        %v1859 = vadd.f32 %v1298, %v1827
        %s1860 = sadd.s32 %s176, 3
        %s1861 = scalar_lea.vmem %s0, %s1860
        %v1862 = vld [vmem:[%s1861] sm:$0xff]
        %v1863 = vld [vmem:[%s1861 + $0x8] sm:$0xff]
        %v1864 = vld [vmem:[%s1861 + $0x10] sm:$0xff]
        %v1865 = vld [vmem:[%s1861 + $0x18] sm:$0xff]
        %v1866 = vld [vmem:[%s1861 + $0x20] sm:$0xff]
        %v1867 = vld [vmem:[%s1861 + $0x28] sm:$0xff]
        %v1868 = vld [vmem:[%s1861 + $0x30] sm:$0xff]
        %v1869 = vld [vmem:[%s1861 + $0x38] sm:$0xff]
        %v1870 = vld [vmem:[%s1861 + $0x40] sm:$0xff]
        %v1871 = vld [vmem:[%s1861 + $0x48] sm:$0xff]
        %v1872 = vld [vmem:[%s1861 + $0x50] sm:$0xff]
        %v1873 = vld [vmem:[%s1861 + $0x58] sm:$0xff]
        %v1874 = vld [vmem:[%s1861 + $0x60] sm:$0xff]
        %v1875 = vld [vmem:[%s1861 + $0x68] sm:$0xff]
        %v1876 = vld [vmem:[%s1861 + $0x70] sm:$0xff]
        %v1877 = vld [vmem:[%s1861 + $0x78] sm:$0xff]
        %v1878 = vld [vmem:[%s1861 + $0x188] sm:$0xff]
        %v1879 = vld [vmem:[%s1861 + $0x190] sm:$0xff]
        %v1880 = vld [vmem:[%s1861 + $0x198] sm:$0xff]
        %v1881 = vld [vmem:[%s1861 + $0x1a0] sm:$0xff]
        %v1882 = vld [vmem:[%s1861 + $0x1a8] sm:$0xff]
        %v1883 = vld [vmem:[%s1861 + $0x1b0] sm:$0xff]
        %v1884 = vld [vmem:[%s1861 + $0x1b8] sm:$0xff]
        %v1885 = vld [vmem:[%s1861 + $0x1c0] sm:$0xff]
        %v1886 = vld [vmem:[%s1861 + $0x1c8] sm:$0xff]
        %v1887 = vld [vmem:[%s1861 + $0x1d0] sm:$0xff]
        %v1888 = vld [vmem:[%s1861 + $0x1d8] sm:$0xff]
        %v1889 = vld [vmem:[%s1861 + $0x1e0] sm:$0xff]
        %v1890 = vld [vmem:[%s1861 + $0x1e8] sm:$0xff]
        %v1891 = vld [vmem:[%s1861 + $0x1f0] sm:$0xff]
        %v1892 = vld [vmem:[%s1861 + $0x1f8] sm:$0xff]
        %v1893 = vld [vmem:[%s1861 + $0x200] sm:$0xff]
        %v1894 = vld [vmem:[%s1 + $0x3] sm:$0x1]
        %v1895 = vld [vmem:[%s2 + $0x3] sm:$0x1]
        %v1896 = vld [vmem:[%s3 + $0x3] sm:$0x1]
        %v1897 = vlaneseq
        %v1898 = vshrl.u32 %v1897, 7
        %v1899 = vsub.s32 0, %v1898
        %v1900 = vrot.slane %v1894, %v1899
        %v1901 = vmul.f32 %v1862, %v1900
        %v1902 = vmul.f32 %v1863, %v1900
        %v1903 = vmul.f32 %v1864, %v1900
        %v1904 = vmul.f32 %v1865, %v1900
        %v1905 = vmul.f32 %v1866, %v1900
        %v1906 = vmul.f32 %v1867, %v1900
        %v1907 = vmul.f32 %v1868, %v1900
        %v1908 = vmul.f32 %v1869, %v1900
        %v1909 = vmul.f32 %v1870, %v1900
        %v1910 = vmul.f32 %v1871, %v1900
        %v1911 = vmul.f32 %v1872, %v1900
        %v1912 = vmul.f32 %v1873, %v1900
        %v1913 = vmul.f32 %v1874, %v1900
        %v1914 = vmul.f32 %v1875, %v1900
        %v1915 = vmul.f32 %v1876, %v1900
        %v1916 = vmul.f32 %v1877, %v1900
        %v1917 = vmul.f32 %v1878, %v1900
        %v1918 = vmul.f32 %v1879, %v1900
        %v1919 = vmul.f32 %v1880, %v1900
        %v1920 = vmul.f32 %v1881, %v1900
        %v1921 = vmul.f32 %v1882, %v1900
        %v1922 = vmul.f32 %v1883, %v1900
        %v1923 = vmul.f32 %v1884, %v1900
        %v1924 = vmul.f32 %v1885, %v1900
        %v1925 = vmul.f32 %v1886, %v1900
        %v1926 = vmul.f32 %v1887, %v1900
        %v1927 = vmul.f32 %v1888, %v1900
        %v1928 = vmul.f32 %v1889, %v1900
        %v1929 = vmul.f32 %v1890, %v1900
        %v1930 = vmul.f32 %v1891, %v1900
        %v1931 = vmul.f32 %v1892, %v1900
        %v1932 = vmul.f32 %v1893, %v1900
        %v1933 = vsel %vm249, %v1901, 0.0
        %1934 = vadd.xlane.f32.xlu0 %v1933
        %v1935 = vpop.xlane.xlu0 %1934
        %v1936 = vsel %vm249, %v1902, 0.0
        %1937 = vadd.xlane.f32.xlu0 %v1936
        %v1938 = vpop.xlane.xlu0 %1937
        %v1939 = vsel %vm249, %v1903, 0.0
        %1940 = vadd.xlane.f32.xlu0 %v1939
        %v1941 = vpop.xlane.xlu0 %1940
        %v1942 = vsel %vm249, %v1904, 0.0
        %1943 = vadd.xlane.f32.xlu0 %v1942
        %v1944 = vpop.xlane.xlu0 %1943
        %v1945 = vsel %vm249, %v1905, 0.0
        %1946 = vadd.xlane.f32.xlu0 %v1945
        %v1947 = vpop.xlane.xlu0 %1946
        %v1948 = vsel %vm249, %v1906, 0.0
        %1949 = vadd.xlane.f32.xlu0 %v1948
        %v1950 = vpop.xlane.xlu0 %1949
        %v1951 = vsel %vm249, %v1907, 0.0
        %1952 = vadd.xlane.f32.xlu0 %v1951
        %v1953 = vpop.xlane.xlu0 %1952
        %v1954 = vsel %vm249, %v1908, 0.0
        %1955 = vadd.xlane.f32.xlu0 %v1954
        %v1956 = vpop.xlane.xlu0 %1955
        %v1957 = vsel %vm249, %v1909, 0.0
        %1958 = vadd.xlane.f32.xlu0 %v1957
        %v1959 = vpop.xlane.xlu0 %1958
        %v1960 = vsel %vm249, %v1910, 0.0
        %1961 = vadd.xlane.f32.xlu0 %v1960
        %v1962 = vpop.xlane.xlu0 %1961
        %v1963 = vsel %vm249, %v1911, 0.0
        %1964 = vadd.xlane.f32.xlu0 %v1963
        %v1965 = vpop.xlane.xlu0 %1964
        %v1966 = vsel %vm249, %v1912, 0.0
        %1967 = vadd.xlane.f32.xlu0 %v1966
        %v1968 = vpop.xlane.xlu0 %1967
        %v1969 = vsel %vm249, %v1913, 0.0
        %1970 = vadd.xlane.f32.xlu0 %v1969
        %v1971 = vpop.xlane.xlu0 %1970
        %v1972 = vsel %vm249, %v1914, 0.0
        %1973 = vadd.xlane.f32.xlu0 %v1972
        %v1974 = vpop.xlane.xlu0 %1973
        %v1975 = vsel %vm249, %v1915, 0.0
        %1976 = vadd.xlane.f32.xlu0 %v1975
        %v1977 = vpop.xlane.xlu0 %1976
        %v1978 = vsel %vm249, %v1916, 0.0
        %1979 = vadd.xlane.f32.xlu0 %v1978
        %v1980 = vpop.xlane.xlu0 %1979
        %v1981 = vsel %vm249, %v1917, 0.0
        %1982 = vadd.xlane.f32.xlu0 %v1981
        %v1983 = vpop.xlane.xlu0 %1982
        %v1984 = vsel %vm249, %v1918, 0.0
        %1985 = vadd.xlane.f32.xlu0 %v1984
        %v1986 = vpop.xlane.xlu0 %1985
        %v1987 = vsel %vm249, %v1919, 0.0
        %1988 = vadd.xlane.f32.xlu0 %v1987
        %v1989 = vpop.xlane.xlu0 %1988
        %v1990 = vsel %vm249, %v1920, 0.0
        %1991 = vadd.xlane.f32.xlu0 %v1990
        %v1992 = vpop.xlane.xlu0 %1991
        %v1993 = vsel %vm249, %v1921, 0.0
        %1994 = vadd.xlane.f32.xlu0 %v1993
        %v1995 = vpop.xlane.xlu0 %1994
        %v1996 = vsel %vm249, %v1922, 0.0
        %1997 = vadd.xlane.f32.xlu0 %v1996
        %v1998 = vpop.xlane.xlu0 %1997
        %v1999 = vsel %vm249, %v1923, 0.0
        %2000 = vadd.xlane.f32.xlu0 %v1999
        %v2001 = vpop.xlane.xlu0 %2000
        %v2002 = vsel %vm249, %v1924, 0.0
        %2003 = vadd.xlane.f32.xlu0 %v2002
        %v2004 = vpop.xlane.xlu0 %2003
        %v2005 = vsel %vm249, %v1925, 0.0
        %2006 = vadd.xlane.f32.xlu0 %v2005
        %v2007 = vpop.xlane.xlu0 %2006
        %v2008 = vsel %vm249, %v1926, 0.0
        %2009 = vadd.xlane.f32.xlu0 %v2008
        %v2010 = vpop.xlane.xlu0 %2009
        %v2011 = vsel %vm249, %v1927, 0.0
        %2012 = vadd.xlane.f32.xlu0 %v2011
        %v2013 = vpop.xlane.xlu0 %2012
        %v2014 = vsel %vm249, %v1928, 0.0
        %2015 = vadd.xlane.f32.xlu0 %v2014
        %v2016 = vpop.xlane.xlu0 %2015
        %v2017 = vsel %vm249, %v1929, 0.0
        %2018 = vadd.xlane.f32.xlu0 %v2017
        %v2019 = vpop.xlane.xlu0 %2018
        %v2020 = vsel %vm249, %v1930, 0.0
        %2021 = vadd.xlane.f32.xlu0 %v2020
        %v2022 = vpop.xlane.xlu0 %2021
        %v2023 = vsel %vm249, %v1931, 0.0
        %2024 = vadd.xlane.f32.xlu0 %v2023
        %v2025 = vpop.xlane.xlu0 %2024
        %v2026 = vsel %vm249, %v1932, 0.0
        %2027 = vadd.xlane.f32.xlu0 %v2026
        %v2028 = vpop.xlane.xlu0 %2027
        %v2029 = vadd.f32 %v1468, %v1935
        %v2030 = vadd.f32 %v1469, %v1938
        %v2031 = vadd.f32 %v1470, %v1941
        %v2032 = vadd.f32 %v1471, %v1944
        %v2033 = vadd.f32 %v1472, %v1947
        %v2034 = vadd.f32 %v1473, %v1950
        %v2035 = vadd.f32 %v1474, %v1953
        %v2036 = vadd.f32 %v1475, %v1956
        %v2037 = vadd.f32 %v1476, %v1959
        %v2038 = vadd.f32 %v1477, %v1962
        %v2039 = vadd.f32 %v1478, %v1965
        %v2040 = vadd.f32 %v1479, %v1968
        %v2041 = vadd.f32 %v1480, %v1971
        %v2042 = vadd.f32 %v1481, %v1974
        %v2043 = vadd.f32 %v1482, %v1977
        %v2044 = vadd.f32 %v1483, %v1980
        %v2045 = vadd.f32 %v1484, %v1983
        %v2046 = vadd.f32 %v1485, %v1986
        %v2047 = vadd.f32 %v1486, %v1989
        %v2048 = vadd.f32 %v1487, %v1992
        %v2049 = vadd.f32 %v1488, %v1995
        %v2050 = vadd.f32 %v1489, %v1998
        %v2051 = vadd.f32 %v1490, %v2001
        %v2052 = vadd.f32 %v1491, %v2004
        %v2053 = vadd.f32 %v1492, %v2007
        %v2054 = vadd.f32 %v1493, %v2010
        %v2055 = vadd.f32 %v1494, %v2013
        %v2056 = vadd.f32 %v1495, %v2016
        %v2057 = vadd.f32 %v1496, %v2019
        %v2058 = vadd.f32 %v1497, %v2022
        %v2059 = vadd.f32 %v1498, %v2025
        %v2060 = vadd.f32 %v1499, %v2028
        %v2061 = vmul.f32 %v1862, %v1862
        %v2062 = vmul.f32 %v1863, %v1863
        %v2063 = vmul.f32 %v1864, %v1864
        %v2064 = vmul.f32 %v1865, %v1865
        %v2065 = vmul.f32 %v1866, %v1866
        %v2066 = vmul.f32 %v1867, %v1867
        %v2067 = vmul.f32 %v1868, %v1868
        %v2068 = vmul.f32 %v1869, %v1869
        %v2069 = vmul.f32 %v1870, %v1870
        %v2070 = vmul.f32 %v1871, %v1871
        %v2071 = vmul.f32 %v1872, %v1872
        %v2072 = vmul.f32 %v1873, %v1873
        %v2073 = vmul.f32 %v1874, %v1874
        %v2074 = vmul.f32 %v1875, %v1875
        %v2075 = vmul.f32 %v1876, %v1876
        %v2076 = vmul.f32 %v1877, %v1877
        %v2077 = vmul.f32 %v1878, %v1878
        %v2078 = vmul.f32 %v1879, %v1879
        %v2079 = vmul.f32 %v1880, %v1880
        %v2080 = vmul.f32 %v1881, %v1881
        %v2081 = vmul.f32 %v1882, %v1882
        %v2082 = vmul.f32 %v1883, %v1883
        %v2083 = vmul.f32 %v1884, %v1884
        %v2084 = vmul.f32 %v1885, %v1885
        %v2085 = vmul.f32 %v1886, %v1886
        %v2086 = vmul.f32 %v1887, %v1887
        %v2087 = vmul.f32 %v1888, %v1888
        %v2088 = vmul.f32 %v1889, %v1889
        %v2089 = vmul.f32 %v1890, %v1890
        %v2090 = vmul.f32 %v1891, %v1891
        %v2091 = vmul.f32 %v1892, %v1892
        %v2092 = vmul.f32 %v1893, %v1893
        %v2093 = vlaneseq
        %v2094 = vshrl.u32 %v2093, 7
        %v2095 = vsub.s32 0, %v2094
        %v2096 = vrot.slane %v1895, %v2095
        %v2097 = vmul.f32 %v2061, %v2096
        %v2098 = vmul.f32 %v2062, %v2096
        %v2099 = vmul.f32 %v2063, %v2096
        %v2100 = vmul.f32 %v2064, %v2096
        %v2101 = vmul.f32 %v2065, %v2096
        %v2102 = vmul.f32 %v2066, %v2096
        %v2103 = vmul.f32 %v2067, %v2096
        %v2104 = vmul.f32 %v2068, %v2096
        %v2105 = vmul.f32 %v2069, %v2096
        %v2106 = vmul.f32 %v2070, %v2096
        %v2107 = vmul.f32 %v2071, %v2096
        %v2108 = vmul.f32 %v2072, %v2096
        %v2109 = vmul.f32 %v2073, %v2096
        %v2110 = vmul.f32 %v2074, %v2096
        %v2111 = vmul.f32 %v2075, %v2096
        %v2112 = vmul.f32 %v2076, %v2096
        %v2113 = vmul.f32 %v2077, %v2096
        %v2114 = vmul.f32 %v2078, %v2096
        %v2115 = vmul.f32 %v2079, %v2096
        %v2116 = vmul.f32 %v2080, %v2096
        %v2117 = vmul.f32 %v2081, %v2096
        %v2118 = vmul.f32 %v2082, %v2096
        %v2119 = vmul.f32 %v2083, %v2096
        %v2120 = vmul.f32 %v2084, %v2096
        %v2121 = vmul.f32 %v2085, %v2096
        %v2122 = vmul.f32 %v2086, %v2096
        %v2123 = vmul.f32 %v2087, %v2096
        %v2124 = vmul.f32 %v2088, %v2096
        %v2125 = vmul.f32 %v2089, %v2096
        %v2126 = vmul.f32 %v2090, %v2096
        %v2127 = vmul.f32 %v2091, %v2096
        %v2128 = vmul.f32 %v2092, %v2096
        %v2129 = vsel %vm249, %v2097, 0.0
        %2130 = vadd.xlane.f32.xlu0 %v2129
        %v2131 = vpop.xlane.xlu0 %2130
        %v2132 = vsel %vm249, %v2098, 0.0
        %2133 = vadd.xlane.f32.xlu0 %v2132
        %v2134 = vpop.xlane.xlu0 %2133
        %v2135 = vsel %vm249, %v2099, 0.0
        %2136 = vadd.xlane.f32.xlu0 %v2135
        %v2137 = vpop.xlane.xlu0 %2136
        %v2138 = vsel %vm249, %v2100, 0.0
        %2139 = vadd.xlane.f32.xlu0 %v2138
        %v2140 = vpop.xlane.xlu0 %2139
        %v2141 = vsel %vm249, %v2101, 0.0
        %2142 = vadd.xlane.f32.xlu0 %v2141
        %v2143 = vpop.xlane.xlu0 %2142
        %v2144 = vsel %vm249, %v2102, 0.0
        %2145 = vadd.xlane.f32.xlu0 %v2144
        %v2146 = vpop.xlane.xlu0 %2145
        %v2147 = vsel %vm249, %v2103, 0.0
        %2148 = vadd.xlane.f32.xlu0 %v2147
        %v2149 = vpop.xlane.xlu0 %2148
        %v2150 = vsel %vm249, %v2104, 0.0
        %2151 = vadd.xlane.f32.xlu0 %v2150
        %v2152 = vpop.xlane.xlu0 %2151
        %v2153 = vsel %vm249, %v2105, 0.0
        %2154 = vadd.xlane.f32.xlu0 %v2153
        %v2155 = vpop.xlane.xlu0 %2154
        %v2156 = vsel %vm249, %v2106, 0.0
        %2157 = vadd.xlane.f32.xlu0 %v2156
        %v2158 = vpop.xlane.xlu0 %2157
        %v2159 = vsel %vm249, %v2107, 0.0
        %2160 = vadd.xlane.f32.xlu0 %v2159
        %v2161 = vpop.xlane.xlu0 %2160
        %v2162 = vsel %vm249, %v2108, 0.0
        %2163 = vadd.xlane.f32.xlu0 %v2162
        %v2164 = vpop.xlane.xlu0 %2163
        %v2165 = vsel %vm249, %v2109, 0.0
        %2166 = vadd.xlane.f32.xlu0 %v2165
        %v2167 = vpop.xlane.xlu0 %2166
        %v2168 = vsel %vm249, %v2110, 0.0
        %2169 = vadd.xlane.f32.xlu0 %v2168
        %v2170 = vpop.xlane.xlu0 %2169
        %v2171 = vsel %vm249, %v2111, 0.0
        %2172 = vadd.xlane.f32.xlu0 %v2171
        %v2173 = vpop.xlane.xlu0 %2172
        %v2174 = vsel %vm249, %v2112, 0.0
        %2175 = vadd.xlane.f32.xlu0 %v2174
        %v2176 = vpop.xlane.xlu0 %2175
        %v2177 = vsel %vm249, %v2113, 0.0
        %2178 = vadd.xlane.f32.xlu0 %v2177
        %v2179 = vpop.xlane.xlu0 %2178
        %v2180 = vsel %vm249, %v2114, 0.0
        %2181 = vadd.xlane.f32.xlu0 %v2180
        %v2182 = vpop.xlane.xlu0 %2181
        %v2183 = vsel %vm249, %v2115, 0.0
        %2184 = vadd.xlane.f32.xlu0 %v2183
        %v2185 = vpop.xlane.xlu0 %2184
        %v2186 = vsel %vm249, %v2116, 0.0
        %2187 = vadd.xlane.f32.xlu0 %v2186
        %v2188 = vpop.xlane.xlu0 %2187
        %v2189 = vsel %vm249, %v2117, 0.0
        %2190 = vadd.xlane.f32.xlu0 %v2189
        %v2191 = vpop.xlane.xlu0 %2190
        %v2192 = vsel %vm249, %v2118, 0.0
        %2193 = vadd.xlane.f32.xlu0 %v2192
        %v2194 = vpop.xlane.xlu0 %2193
        %v2195 = vsel %vm249, %v2119, 0.0
        %2196 = vadd.xlane.f32.xlu0 %v2195
        %v2197 = vpop.xlane.xlu0 %2196
        %v2198 = vsel %vm249, %v2120, 0.0
        %2199 = vadd.xlane.f32.xlu0 %v2198
        %v2200 = vpop.xlane.xlu0 %2199
        %v2201 = vsel %vm249, %v2121, 0.0
        %2202 = vadd.xlane.f32.xlu0 %v2201
        %v2203 = vpop.xlane.xlu0 %2202
        %v2204 = vsel %vm249, %v2122, 0.0
        %2205 = vadd.xlane.f32.xlu0 %v2204
        %v2206 = vpop.xlane.xlu0 %2205
        %v2207 = vsel %vm249, %v2123, 0.0
        %2208 = vadd.xlane.f32.xlu0 %v2207
        %v2209 = vpop.xlane.xlu0 %2208
        %v2210 = vsel %vm249, %v2124, 0.0
        %2211 = vadd.xlane.f32.xlu0 %v2210
        %v2212 = vpop.xlane.xlu0 %2211
        %v2213 = vsel %vm249, %v2125, 0.0
        %2214 = vadd.xlane.f32.xlu0 %v2213
        %v2215 = vpop.xlane.xlu0 %2214
        %v2216 = vsel %vm249, %v2126, 0.0
        %2217 = vadd.xlane.f32.xlu0 %v2216
        %v2218 = vpop.xlane.xlu0 %2217
        %v2219 = vsel %vm249, %v2127, 0.0
        %2220 = vadd.xlane.f32.xlu0 %v2219
        %v2221 = vpop.xlane.xlu0 %2220
        %v2222 = vsel %vm249, %v2128, 0.0
        %2223 = vadd.xlane.f32.xlu0 %v2222
        %v2224 = vpop.xlane.xlu0 %2223
        %v2225 = vadd.f32 %v1664, %v2131
        %v2226 = vadd.f32 %v1665, %v2134
        %v2227 = vadd.f32 %v1666, %v2137
        %v2228 = vadd.f32 %v1667, %v2140
        %v2229 = vadd.f32 %v1668, %v2143
        %v2230 = vadd.f32 %v1669, %v2146
        %v2231 = vadd.f32 %v1670, %v2149
        %v2232 = vadd.f32 %v1671, %v2152
        %v2233 = vadd.f32 %v1672, %v2155
        %v2234 = vadd.f32 %v1673, %v2158
        %v2235 = vadd.f32 %v1674, %v2161
        %v2236 = vadd.f32 %v1675, %v2164
        %v2237 = vadd.f32 %v1676, %v2167
        %v2238 = vadd.f32 %v1677, %v2170
        %v2239 = vadd.f32 %v1678, %v2173
        %v2240 = vadd.f32 %v1679, %v2176
        %v2241 = vadd.f32 %v1680, %v2179
        %v2242 = vadd.f32 %v1681, %v2182
        %v2243 = vadd.f32 %v1682, %v2185
        %v2244 = vadd.f32 %v1683, %v2188
        %v2245 = vadd.f32 %v1684, %v2191
        %v2246 = vadd.f32 %v1685, %v2194
        %v2247 = vadd.f32 %v1686, %v2197
        %v2248 = vadd.f32 %v1687, %v2200
        %v2249 = vadd.f32 %v1688, %v2203
        %v2250 = vadd.f32 %v1689, %v2206
        %v2251 = vadd.f32 %v1690, %v2209
        %v2252 = vadd.f32 %v1691, %v2212
        %v2253 = vadd.f32 %v1692, %v2215
        %v2254 = vadd.f32 %v1693, %v2218
        %v2255 = vadd.f32 %v1694, %v2221
        %v2256 = vadd.f32 %v1695, %v2224
        %v2257 = vlaneseq
        %v2258 = vshrl.u32 %v2257, 7
        %v2259 = vsub.s32 0, %v2258
        %v2260 = vrot.slane %v1896, %v2259
        %v2261 = vmul.f32 %v1862, %v2260
        %v2262 = vmul.f32 %v1863, %v2260
        %v2263 = vmul.f32 %v1864, %v2260
        %v2264 = vmul.f32 %v1865, %v2260
        %v2265 = vmul.f32 %v1866, %v2260
        %v2266 = vmul.f32 %v1867, %v2260
        %v2267 = vmul.f32 %v1868, %v2260
        %v2268 = vmul.f32 %v1869, %v2260
        %v2269 = vmul.f32 %v1870, %v2260
        %v2270 = vmul.f32 %v1871, %v2260
        %v2271 = vmul.f32 %v1872, %v2260
        %v2272 = vmul.f32 %v1873, %v2260
        %v2273 = vmul.f32 %v1874, %v2260
        %v2274 = vmul.f32 %v1875, %v2260
        %v2275 = vmul.f32 %v1876, %v2260
        %v2276 = vmul.f32 %v1877, %v2260
        %v2277 = vmul.f32 %v1878, %v2260
        %v2278 = vmul.f32 %v1879, %v2260
        %v2279 = vmul.f32 %v1880, %v2260
        %v2280 = vmul.f32 %v1881, %v2260
        %v2281 = vmul.f32 %v1882, %v2260
        %v2282 = vmul.f32 %v1883, %v2260
        %v2283 = vmul.f32 %v1884, %v2260
        %v2284 = vmul.f32 %v1885, %v2260
        %v2285 = vmul.f32 %v1886, %v2260
        %v2286 = vmul.f32 %v1887, %v2260
        %v2287 = vmul.f32 %v1888, %v2260
        %v2288 = vmul.f32 %v1889, %v2260
        %v2289 = vmul.f32 %v1890, %v2260
        %v2290 = vmul.f32 %v1891, %v2260
        %v2291 = vmul.f32 %v1892, %v2260
        %v2292 = vmul.f32 %v1893, %v2260
        %v2293 = vsel %vm249, %v2261, 0.0
        %2294 = vadd.xlane.f32.xlu0 %v2293
        %v2295 = vpop.xlane.xlu0 %2294
        %v2296 = vsel %vm249, %v2262, 0.0
        %2297 = vadd.xlane.f32.xlu0 %v2296
        %v2298 = vpop.xlane.xlu0 %2297
        %v2299 = vsel %vm249, %v2263, 0.0
        %2300 = vadd.xlane.f32.xlu0 %v2299
        %v2301 = vpop.xlane.xlu0 %2300
        %v2302 = vsel %vm249, %v2264, 0.0
        %2303 = vadd.xlane.f32.xlu0 %v2302
        %v2304 = vpop.xlane.xlu0 %2303
        %v2305 = vsel %vm249, %v2265, 0.0
        %2306 = vadd.xlane.f32.xlu0 %v2305
        %v2307 = vpop.xlane.xlu0 %2306
        %v2308 = vsel %vm249, %v2266, 0.0
        %2309 = vadd.xlane.f32.xlu0 %v2308
        %v2310 = vpop.xlane.xlu0 %2309
        %v2311 = vsel %vm249, %v2267, 0.0
        %2312 = vadd.xlane.f32.xlu0 %v2311
        %v2313 = vpop.xlane.xlu0 %2312
        %v2314 = vsel %vm249, %v2268, 0.0
        %2315 = vadd.xlane.f32.xlu0 %v2314
        %v2316 = vpop.xlane.xlu0 %2315
        %v2317 = vsel %vm249, %v2269, 0.0
        %2318 = vadd.xlane.f32.xlu0 %v2317
        %v2319 = vpop.xlane.xlu0 %2318
        %v2320 = vsel %vm249, %v2270, 0.0
        %2321 = vadd.xlane.f32.xlu0 %v2320
        %v2322 = vpop.xlane.xlu0 %2321
        %v2323 = vsel %vm249, %v2271, 0.0
        %2324 = vadd.xlane.f32.xlu0 %v2323
        %v2325 = vpop.xlane.xlu0 %2324
        %v2326 = vsel %vm249, %v2272, 0.0
        %2327 = vadd.xlane.f32.xlu0 %v2326
        %v2328 = vpop.xlane.xlu0 %2327
        %v2329 = vsel %vm249, %v2273, 0.0
        %2330 = vadd.xlane.f32.xlu0 %v2329
        %v2331 = vpop.xlane.xlu0 %2330
        %v2332 = vsel %vm249, %v2274, 0.0
        %2333 = vadd.xlane.f32.xlu0 %v2332
        %v2334 = vpop.xlane.xlu0 %2333
        %v2335 = vsel %vm249, %v2275, 0.0
        %2336 = vadd.xlane.f32.xlu0 %v2335
        %v2337 = vpop.xlane.xlu0 %2336
        %v2338 = vsel %vm249, %v2276, 0.0
        %2339 = vadd.xlane.f32.xlu0 %v2338
        %v2340 = vpop.xlane.xlu0 %2339
        %v2341 = vsel %vm249, %v2277, 0.0
        %2342 = vadd.xlane.f32.xlu0 %v2341
        %v2343 = vpop.xlane.xlu0 %2342
        %v2344 = vsel %vm249, %v2278, 0.0
        %2345 = vadd.xlane.f32.xlu0 %v2344
        %v2346 = vpop.xlane.xlu0 %2345
        %v2347 = vsel %vm249, %v2279, 0.0
        %2348 = vadd.xlane.f32.xlu0 %v2347
        %v2349 = vpop.xlane.xlu0 %2348
        %v2350 = vsel %vm249, %v2280, 0.0
        %2351 = vadd.xlane.f32.xlu0 %v2350
        %v2352 = vpop.xlane.xlu0 %2351
        %v2353 = vsel %vm249, %v2281, 0.0
        %2354 = vadd.xlane.f32.xlu0 %v2353
        %v2355 = vpop.xlane.xlu0 %2354
        %v2356 = vsel %vm249, %v2282, 0.0
        %2357 = vadd.xlane.f32.xlu0 %v2356
        %v2358 = vpop.xlane.xlu0 %2357
        %v2359 = vsel %vm249, %v2283, 0.0
        %2360 = vadd.xlane.f32.xlu0 %v2359
        %v2361 = vpop.xlane.xlu0 %2360
        %v2362 = vsel %vm249, %v2284, 0.0
        %2363 = vadd.xlane.f32.xlu0 %v2362
        %v2364 = vpop.xlane.xlu0 %2363
        %v2365 = vsel %vm249, %v2285, 0.0
        %2366 = vadd.xlane.f32.xlu0 %v2365
        %v2367 = vpop.xlane.xlu0 %2366
        %v2368 = vsel %vm249, %v2286, 0.0
        %2369 = vadd.xlane.f32.xlu0 %v2368
        %v2370 = vpop.xlane.xlu0 %2369
        %v2371 = vsel %vm249, %v2287, 0.0
        %2372 = vadd.xlane.f32.xlu0 %v2371
        %v2373 = vpop.xlane.xlu0 %2372
        %v2374 = vsel %vm249, %v2288, 0.0
        %2375 = vadd.xlane.f32.xlu0 %v2374
        %v2376 = vpop.xlane.xlu0 %2375
        %v2377 = vsel %vm249, %v2289, 0.0
        %2378 = vadd.xlane.f32.xlu0 %v2377
        %v2379 = vpop.xlane.xlu0 %2378
        %v2380 = vsel %vm249, %v2290, 0.0
        %2381 = vadd.xlane.f32.xlu0 %v2380
        %v2382 = vpop.xlane.xlu0 %2381
        %v2383 = vsel %vm249, %v2291, 0.0
        %2384 = vadd.xlane.f32.xlu0 %v2383
        %v2385 = vpop.xlane.xlu0 %2384
        %v2386 = vsel %vm249, %v2292, 0.0
        %2387 = vadd.xlane.f32.xlu0 %v2386
        %v2388 = vpop.xlane.xlu0 %2387
        %v2389 = vadd.f32 %v1828, %v2295
        %v2390 = vadd.f32 %v1829, %v2298
        %v2391 = vadd.f32 %v1830, %v2301
        %v2392 = vadd.f32 %v1831, %v2304
        %v2393 = vadd.f32 %v1832, %v2307
        %v2394 = vadd.f32 %v1833, %v2310
        %v2395 = vadd.f32 %v1834, %v2313
        %v2396 = vadd.f32 %v1835, %v2316
        %v2397 = vadd.f32 %v1836, %v2319
        %v2398 = vadd.f32 %v1837, %v2322
        %v2399 = vadd.f32 %v1838, %v2325
        %v2400 = vadd.f32 %v1839, %v2328
        %v2401 = vadd.f32 %v1840, %v2331
        %v2402 = vadd.f32 %v1841, %v2334
        %v2403 = vadd.f32 %v1842, %v2337
        %v2404 = vadd.f32 %v1843, %v2340
        %v2405 = vadd.f32 %v1844, %v2343
        %v2406 = vadd.f32 %v1845, %v2346
        %v2407 = vadd.f32 %v1846, %v2349
        %v2408 = vadd.f32 %v1847, %v2352
        %v2409 = vadd.f32 %v1848, %v2355
        %v2410 = vadd.f32 %v1849, %v2358
        %v2411 = vadd.f32 %v1850, %v2361
        %v2412 = vadd.f32 %v1851, %v2364
        %v2413 = vadd.f32 %v1852, %v2367
        %v2414 = vadd.f32 %v1853, %v2370
        %v2415 = vadd.f32 %v1854, %v2373
        %v2416 = vadd.f32 %v1855, %v2376
        %v2417 = vadd.f32 %v1856, %v2379
        %v2418 = vadd.f32 %v1857, %v2382
        %v2419 = vadd.f32 %v1858, %v2385
        %v2420 = vadd.f32 %v1859, %v2388
        %v2421 = vmul.f32 %v2225, 256.0
        %v2422 = vmul.f32 %v2226, 256.0
        %v2423 = vmul.f32 %v2227, 256.0
        %v2424 = vmul.f32 %v2228, 256.0
        %v2425 = vmul.f32 %v2229, 256.0
        %v2426 = vmul.f32 %v2230, 256.0
        %v2427 = vmul.f32 %v2231, 256.0
        %v2428 = vmul.f32 %v2232, 256.0
        %v2429 = vmul.f32 %v2233, 256.0
        %v2430 = vmul.f32 %v2234, 256.0
        %v2431 = vmul.f32 %v2235, 256.0
        %v2432 = vmul.f32 %v2236, 256.0
        %v2433 = vmul.f32 %v2237, 256.0
        %v2434 = vmul.f32 %v2238, 256.0
        %v2435 = vmul.f32 %v2239, 256.0
        %v2436 = vmul.f32 %v2240, 256.0
        %v2437 = vmul.f32 %v2241, 256.0
        %v2438 = vmul.f32 %v2242, 256.0
        %v2439 = vmul.f32 %v2243, 256.0
        %v2440 = vmul.f32 %v2244, 256.0
        %v2441 = vmul.f32 %v2245, 256.0
        %v2442 = vmul.f32 %v2246, 256.0
        %v2443 = vmul.f32 %v2247, 256.0
        %v2444 = vmul.f32 %v2248, 256.0
        %v2445 = vmul.f32 %v2249, 256.0
        %v2446 = vmul.f32 %v2250, 256.0
        %v2447 = vmul.f32 %v2251, 256.0
        %v2448 = vmul.f32 %v2252, 256.0
        %v2449 = vmul.f32 %v2253, 256.0
        %v2450 = vmul.f32 %v2254, 256.0
        %v2451 = vmul.f32 %v2255, 256.0
        %v2452 = vmul.f32 %v2256, 256.0
        %v2453 = vmul.f32 %v2029, %v2029
        %v2454 = vmul.f32 %v2030, %v2030
        %v2455 = vmul.f32 %v2031, %v2031
        %v2456 = vmul.f32 %v2032, %v2032
        %v2457 = vmul.f32 %v2033, %v2033
        %v2458 = vmul.f32 %v2034, %v2034
        %v2459 = vmul.f32 %v2035, %v2035
        %v2460 = vmul.f32 %v2036, %v2036
        %v2461 = vmul.f32 %v2037, %v2037
        %v2462 = vmul.f32 %v2038, %v2038
        %v2463 = vmul.f32 %v2039, %v2039
        %v2464 = vmul.f32 %v2040, %v2040
        %v2465 = vmul.f32 %v2041, %v2041
        %v2466 = vmul.f32 %v2042, %v2042
        %v2467 = vmul.f32 %v2043, %v2043
        %v2468 = vmul.f32 %v2044, %v2044
        %v2469 = vmul.f32 %v2045, %v2045
        %v2470 = vmul.f32 %v2046, %v2046
        %v2471 = vmul.f32 %v2047, %v2047
        %v2472 = vmul.f32 %v2048, %v2048
        %v2473 = vmul.f32 %v2049, %v2049
        %v2474 = vmul.f32 %v2050, %v2050
        %v2475 = vmul.f32 %v2051, %v2051
        %v2476 = vmul.f32 %v2052, %v2052
        %v2477 = vmul.f32 %v2053, %v2053
        %v2478 = vmul.f32 %v2054, %v2054
        %v2479 = vmul.f32 %v2055, %v2055
        %v2480 = vmul.f32 %v2056, %v2056
        %v2481 = vmul.f32 %v2057, %v2057
        %v2482 = vmul.f32 %v2058, %v2058
        %v2483 = vmul.f32 %v2059, %v2059
        %v2484 = vmul.f32 %v2060, %v2060
        %v2485 = vadd.f32 %v2421, %v2453
        %v2486 = vadd.f32 %v2422, %v2454
        %v2487 = vadd.f32 %v2423, %v2455
        %v2488 = vadd.f32 %v2424, %v2456
        %v2489 = vadd.f32 %v2425, %v2457
        %v2490 = vadd.f32 %v2426, %v2458
        %v2491 = vadd.f32 %v2427, %v2459
        %v2492 = vadd.f32 %v2428, %v2460
        %v2493 = vadd.f32 %v2429, %v2461
        %v2494 = vadd.f32 %v2430, %v2462
        %v2495 = vadd.f32 %v2431, %v2463
        %v2496 = vadd.f32 %v2432, %v2464
        %v2497 = vadd.f32 %v2433, %v2465
        %v2498 = vadd.f32 %v2434, %v2466
        %v2499 = vadd.f32 %v2435, %v2467
        %v2500 = vadd.f32 %v2436, %v2468
        %v2501 = vadd.f32 %v2437, %v2469
        %v2502 = vadd.f32 %v2438, %v2470
        %v2503 = vadd.f32 %v2439, %v2471
        %v2504 = vadd.f32 %v2440, %v2472
        %v2505 = vadd.f32 %v2441, %v2473
        %v2506 = vadd.f32 %v2442, %v2474
        %v2507 = vadd.f32 %v2443, %v2475
        %v2508 = vadd.f32 %v2444, %v2476
        %v2509 = vadd.f32 %v2445, %v2477
        %v2510 = vadd.f32 %v2446, %v2478
        %v2511 = vadd.f32 %v2447, %v2479
        %v2512 = vadd.f32 %v2448, %v2480
        %v2513 = vadd.f32 %v2449, %v2481
        %v2514 = vadd.f32 %v2450, %v2482
        %v2515 = vadd.f32 %v2451, %v2483
        %v2516 = vadd.f32 %v2452, %v2484
        %v2517 = vmul.f32 %v2389, %v2389
        %v2518 = vmul.f32 %v2390, %v2390
        %v2519 = vmul.f32 %v2391, %v2391
        %v2520 = vmul.f32 %v2392, %v2392
        %v2521 = vmul.f32 %v2393, %v2393
        %v2522 = vmul.f32 %v2394, %v2394
        %v2523 = vmul.f32 %v2395, %v2395
        %v2524 = vmul.f32 %v2396, %v2396
        %v2525 = vmul.f32 %v2397, %v2397
        %v2526 = vmul.f32 %v2398, %v2398
        %v2527 = vmul.f32 %v2399, %v2399
        %v2528 = vmul.f32 %v2400, %v2400
        %v2529 = vmul.f32 %v2401, %v2401
        %v2530 = vmul.f32 %v2402, %v2402
        %v2531 = vmul.f32 %v2403, %v2403
        %v2532 = vmul.f32 %v2404, %v2404
        %v2533 = vmul.f32 %v2405, %v2405
        %v2534 = vmul.f32 %v2406, %v2406
        %v2535 = vmul.f32 %v2407, %v2407
        %v2536 = vmul.f32 %v2408, %v2408
        %v2537 = vmul.f32 %v2409, %v2409
        %v2538 = vmul.f32 %v2410, %v2410
        %v2539 = vmul.f32 %v2411, %v2411
        %v2540 = vmul.f32 %v2412, %v2412
        %v2541 = vmul.f32 %v2413, %v2413
        %v2542 = vmul.f32 %v2414, %v2414
        %v2543 = vmul.f32 %v2415, %v2415
        %v2544 = vmul.f32 %v2416, %v2416
        %v2545 = vmul.f32 %v2417, %v2417
        %v2546 = vmul.f32 %v2418, %v2418
        %v2547 = vmul.f32 %v2419, %v2419
        %v2548 = vmul.f32 %v2420, %v2420
        %v2549 = vadd.f32 %v2485, %v2517
        %v2550 = vadd.f32 %v2486, %v2518
        %v2551 = vadd.f32 %v2487, %v2519
        %v2552 = vadd.f32 %v2488, %v2520
        %v2553 = vadd.f32 %v2489, %v2521
        %v2554 = vadd.f32 %v2490, %v2522
        %v2555 = vadd.f32 %v2491, %v2523
        %v2556 = vadd.f32 %v2492, %v2524
        %v2557 = vadd.f32 %v2493, %v2525
        %v2558 = vadd.f32 %v2494, %v2526
        %v2559 = vadd.f32 %v2495, %v2527
        %v2560 = vadd.f32 %v2496, %v2528
        %v2561 = vadd.f32 %v2497, %v2529
        %v2562 = vadd.f32 %v2498, %v2530
        %v2563 = vadd.f32 %v2499, %v2531
        %v2564 = vadd.f32 %v2500, %v2532
        %v2565 = vadd.f32 %v2501, %v2533
        %v2566 = vadd.f32 %v2502, %v2534
        %v2567 = vadd.f32 %v2503, %v2535
        %v2568 = vadd.f32 %v2504, %v2536
        %v2569 = vadd.f32 %v2505, %v2537
        %v2570 = vadd.f32 %v2506, %v2538
        %v2571 = vadd.f32 %v2507, %v2539
        %v2572 = vadd.f32 %v2508, %v2540
        %v2573 = vadd.f32 %v2509, %v2541
        %v2574 = vadd.f32 %v2510, %v2542
        %v2575 = vadd.f32 %v2511, %v2543
        %v2576 = vadd.f32 %v2512, %v2544
        %v2577 = vadd.f32 %v2513, %v2545
        %v2578 = vadd.f32 %v2514, %v2546
        %v2579 = vadd.f32 %v2515, %v2547
        %v2580 = vadd.f32 %v2516, %v2548
        %v2581 = vmul.f32 %v2549, 0.5
        %v2582 = vmul.f32 %v2550, 0.5
        %v2583 = vmul.f32 %v2551, 0.5
        %v2584 = vmul.f32 %v2552, 0.5
        %v2585 = vmul.f32 %v2553, 0.5
        %v2586 = vmul.f32 %v2554, 0.5
        %v2587 = vmul.f32 %v2555, 0.5
        %v2588 = vmul.f32 %v2556, 0.5
        %v2589 = vmul.f32 %v2557, 0.5
        %v2590 = vmul.f32 %v2558, 0.5
        %v2591 = vmul.f32 %v2559, 0.5
        %v2592 = vmul.f32 %v2560, 0.5
        %v2593 = vmul.f32 %v2561, 0.5
        %v2594 = vmul.f32 %v2562, 0.5
        %v2595 = vmul.f32 %v2563, 0.5
        %v2596 = vmul.f32 %v2564, 0.5
        %v2597 = vmul.f32 %v2565, 0.5
        %v2598 = vmul.f32 %v2566, 0.5
        %v2599 = vmul.f32 %v2567, 0.5
        %v2600 = vmul.f32 %v2568, 0.5
        %v2601 = vmul.f32 %v2569, 0.5
        %v2602 = vmul.f32 %v2570, 0.5
        %v2603 = vmul.f32 %v2571, 0.5
        %v2604 = vmul.f32 %v2572, 0.5
        %v2605 = vmul.f32 %v2573, 0.5
        %v2606 = vmul.f32 %v2574, 0.5
        %v2607 = vmul.f32 %v2575, 0.5
        %v2608 = vmul.f32 %v2576, 0.5
        %v2609 = vmul.f32 %v2577, 0.5
        %v2610 = vmul.f32 %v2578, 0.5
        %v2611 = vmul.f32 %v2579, 0.5
        %v2612 = vmul.f32 %v2580, 0.5
        %v2613 = vmax.f32 %v2581, 1e-10
        %v2614 = vmax.f32 %v2582, 1e-10
        %v2615 = vmax.f32 %v2583, 1e-10
        %v2616 = vmax.f32 %v2584, 1e-10
        %v2617 = vmax.f32 %v2585, 1e-10
        %v2618 = vmax.f32 %v2586, 1e-10
        %v2619 = vmax.f32 %v2587, 1e-10
        %v2620 = vmax.f32 %v2588, 1e-10
        %v2621 = vmax.f32 %v2589, 1e-10
        %v2622 = vmax.f32 %v2590, 1e-10
        %v2623 = vmax.f32 %v2591, 1e-10
        %v2624 = vmax.f32 %v2592, 1e-10
        %v2625 = vmax.f32 %v2593, 1e-10
        %v2626 = vmax.f32 %v2594, 1e-10
        %v2627 = vmax.f32 %v2595, 1e-10
        %v2628 = vmax.f32 %v2596, 1e-10
        %v2629 = vmax.f32 %v2597, 1e-10
        %v2630 = vmax.f32 %v2598, 1e-10
        %v2631 = vmax.f32 %v2599, 1e-10
        %v2632 = vmax.f32 %v2600, 1e-10
        %v2633 = vmax.f32 %v2601, 1e-10
        %v2634 = vmax.f32 %v2602, 1e-10
        %v2635 = vmax.f32 %v2603, 1e-10
        %v2636 = vmax.f32 %v2604, 1e-10
        %v2637 = vmax.f32 %v2605, 1e-10
        %v2638 = vmax.f32 %v2606, 1e-10
        %v2639 = vmax.f32 %v2607, 1e-10
        %v2640 = vmax.f32 %v2608, 1e-10
        %v2641 = vmax.f32 %v2609, 1e-10
        %v2642 = vmax.f32 %v2610, 1e-10
        %v2643 = vmax.f32 %v2611, 1e-10
        %v2644 = vmax.f32 %v2612, 1e-10
        %v2645 = vrsqrt.pop %v2613
        %v2646 = vmul.f32 %v2613, %v2645
        %vm2647 = vcmp.eq.f32.partialorder %v2613, inf
        %v2648 = vsel %vm2647, %v2613, %v2646
        %vm2649 = vcmp.eq.f32.partialorder %v2613, 0.0
        %v2650 = vand.u32 %v2613, 2147483648
        %v2651 = vsel %vm2649, %v2650, %v2648
        %v2652 = vrsqrt.pop %v2614
        %v2653 = vmul.f32 %v2614, %v2652
        %vm2654 = vcmp.eq.f32.partialorder %v2614, inf
        %v2655 = vsel %vm2654, %v2614, %v2653
        %vm2656 = vcmp.eq.f32.partialorder %v2614, 0.0
        %v2657 = vand.u32 %v2614, 2147483648
        %v2658 = vsel %vm2656, %v2657, %v2655
        %v2659 = vrsqrt.pop %v2615
        %v2660 = vmul.f32 %v2615, %v2659
        %vm2661 = vcmp.eq.f32.partialorder %v2615, inf
        %v2662 = vsel %vm2661, %v2615, %v2660
        %vm2663 = vcmp.eq.f32.partialorder %v2615, 0.0
        %v2664 = vand.u32 %v2615, 2147483648
        %v2665 = vsel %vm2663, %v2664, %v2662
        %v2666 = vrsqrt.pop %v2616
        %v2667 = vmul.f32 %v2616, %v2666
        %vm2668 = vcmp.eq.f32.partialorder %v2616, inf
        %v2669 = vsel %vm2668, %v2616, %v2667
        %vm2670 = vcmp.eq.f32.partialorder %v2616, 0.0
        %v2671 = vand.u32 %v2616, 2147483648
        %v2672 = vsel %vm2670, %v2671, %v2669
        %v2673 = vrsqrt.pop %v2617
        %v2674 = vmul.f32 %v2617, %v2673
        %vm2675 = vcmp.eq.f32.partialorder %v2617, inf
        %v2676 = vsel %vm2675, %v2617, %v2674
        %vm2677 = vcmp.eq.f32.partialorder %v2617, 0.0
        %v2678 = vand.u32 %v2617, 2147483648
        %v2679 = vsel %vm2677, %v2678, %v2676
        %v2680 = vrsqrt.pop %v2618
        %v2681 = vmul.f32 %v2618, %v2680
        %vm2682 = vcmp.eq.f32.partialorder %v2618, inf
        %v2683 = vsel %vm2682, %v2618, %v2681
        %vm2684 = vcmp.eq.f32.partialorder %v2618, 0.0
        %v2685 = vand.u32 %v2618, 2147483648
        %v2686 = vsel %vm2684, %v2685, %v2683
        %v2687 = vrsqrt.pop %v2619
        %v2688 = vmul.f32 %v2619, %v2687
        %vm2689 = vcmp.eq.f32.partialorder %v2619, inf
        %v2690 = vsel %vm2689, %v2619, %v2688
        %vm2691 = vcmp.eq.f32.partialorder %v2619, 0.0
        %v2692 = vand.u32 %v2619, 2147483648
        %v2693 = vsel %vm2691, %v2692, %v2690
        %v2694 = vrsqrt.pop %v2620
        %v2695 = vmul.f32 %v2620, %v2694
        %vm2696 = vcmp.eq.f32.partialorder %v2620, inf
        %v2697 = vsel %vm2696, %v2620, %v2695
        %vm2698 = vcmp.eq.f32.partialorder %v2620, 0.0
        %v2699 = vand.u32 %v2620, 2147483648
        %v2700 = vsel %vm2698, %v2699, %v2697
        %v2701 = vrsqrt.pop %v2621
        %v2702 = vmul.f32 %v2621, %v2701
        %vm2703 = vcmp.eq.f32.partialorder %v2621, inf
        %v2704 = vsel %vm2703, %v2621, %v2702
        %vm2705 = vcmp.eq.f32.partialorder %v2621, 0.0
        %v2706 = vand.u32 %v2621, 2147483648
        %v2707 = vsel %vm2705, %v2706, %v2704
        %v2708 = vrsqrt.pop %v2622
        %v2709 = vmul.f32 %v2622, %v2708
        %vm2710 = vcmp.eq.f32.partialorder %v2622, inf
        %v2711 = vsel %vm2710, %v2622, %v2709
        %vm2712 = vcmp.eq.f32.partialorder %v2622, 0.0
        %v2713 = vand.u32 %v2622, 2147483648
        %v2714 = vsel %vm2712, %v2713, %v2711
        %v2715 = vrsqrt.pop %v2623
        %v2716 = vmul.f32 %v2623, %v2715
        %vm2717 = vcmp.eq.f32.partialorder %v2623, inf
        %v2718 = vsel %vm2717, %v2623, %v2716
        %vm2719 = vcmp.eq.f32.partialorder %v2623, 0.0
        %v2720 = vand.u32 %v2623, 2147483648
        %v2721 = vsel %vm2719, %v2720, %v2718
        %v2722 = vrsqrt.pop %v2624
        %v2723 = vmul.f32 %v2624, %v2722
        %vm2724 = vcmp.eq.f32.partialorder %v2624, inf
        %v2725 = vsel %vm2724, %v2624, %v2723
        %vm2726 = vcmp.eq.f32.partialorder %v2624, 0.0
        %v2727 = vand.u32 %v2624, 2147483648
        %v2728 = vsel %vm2726, %v2727, %v2725
        %v2729 = vrsqrt.pop %v2625
        %v2730 = vmul.f32 %v2625, %v2729
        %vm2731 = vcmp.eq.f32.partialorder %v2625, inf
        %v2732 = vsel %vm2731, %v2625, %v2730
        %vm2733 = vcmp.eq.f32.partialorder %v2625, 0.0
        %v2734 = vand.u32 %v2625, 2147483648
        %v2735 = vsel %vm2733, %v2734, %v2732
        %v2736 = vrsqrt.pop %v2626
        %v2737 = vmul.f32 %v2626, %v2736
        %vm2738 = vcmp.eq.f32.partialorder %v2626, inf
        %v2739 = vsel %vm2738, %v2626, %v2737
        %vm2740 = vcmp.eq.f32.partialorder %v2626, 0.0
        %v2741 = vand.u32 %v2626, 2147483648
        %v2742 = vsel %vm2740, %v2741, %v2739
        %v2743 = vrsqrt.pop %v2627
        %v2744 = vmul.f32 %v2627, %v2743
        %vm2745 = vcmp.eq.f32.partialorder %v2627, inf
        %v2746 = vsel %vm2745, %v2627, %v2744
        %vm2747 = vcmp.eq.f32.partialorder %v2627, 0.0
        %v2748 = vand.u32 %v2627, 2147483648
        %v2749 = vsel %vm2747, %v2748, %v2746
        %v2750 = vrsqrt.pop %v2628
        %v2751 = vmul.f32 %v2628, %v2750
        %vm2752 = vcmp.eq.f32.partialorder %v2628, inf
        %v2753 = vsel %vm2752, %v2628, %v2751
        %vm2754 = vcmp.eq.f32.partialorder %v2628, 0.0
        %v2755 = vand.u32 %v2628, 2147483648
        %v2756 = vsel %vm2754, %v2755, %v2753
        %v2757 = vrsqrt.pop %v2629
        %v2758 = vmul.f32 %v2629, %v2757
        %vm2759 = vcmp.eq.f32.partialorder %v2629, inf
        %v2760 = vsel %vm2759, %v2629, %v2758
        %vm2761 = vcmp.eq.f32.partialorder %v2629, 0.0
        %v2762 = vand.u32 %v2629, 2147483648
        %v2763 = vsel %vm2761, %v2762, %v2760
        %v2764 = vrsqrt.pop %v2630
        %v2765 = vmul.f32 %v2630, %v2764
        %vm2766 = vcmp.eq.f32.partialorder %v2630, inf
        %v2767 = vsel %vm2766, %v2630, %v2765
        %vm2768 = vcmp.eq.f32.partialorder %v2630, 0.0
        %v2769 = vand.u32 %v2630, 2147483648
        %v2770 = vsel %vm2768, %v2769, %v2767
        %v2771 = vrsqrt.pop %v2631
        %v2772 = vmul.f32 %v2631, %v2771
        %vm2773 = vcmp.eq.f32.partialorder %v2631, inf
        %v2774 = vsel %vm2773, %v2631, %v2772
        %vm2775 = vcmp.eq.f32.partialorder %v2631, 0.0
        %v2776 = vand.u32 %v2631, 2147483648
        %v2777 = vsel %vm2775, %v2776, %v2774
        %v2778 = vrsqrt.pop %v2632
        %v2779 = vmul.f32 %v2632, %v2778
        %vm2780 = vcmp.eq.f32.partialorder %v2632, inf
        %v2781 = vsel %vm2780, %v2632, %v2779
        %vm2782 = vcmp.eq.f32.partialorder %v2632, 0.0
        %v2783 = vand.u32 %v2632, 2147483648
        %v2784 = vsel %vm2782, %v2783, %v2781
        %v2785 = vrsqrt.pop %v2633
        %v2786 = vmul.f32 %v2633, %v2785
        %vm2787 = vcmp.eq.f32.partialorder %v2633, inf
        %v2788 = vsel %vm2787, %v2633, %v2786
        %vm2789 = vcmp.eq.f32.partialorder %v2633, 0.0
        %v2790 = vand.u32 %v2633, 2147483648
        %v2791 = vsel %vm2789, %v2790, %v2788
        %v2792 = vrsqrt.pop %v2634
        %v2793 = vmul.f32 %v2634, %v2792
        %vm2794 = vcmp.eq.f32.partialorder %v2634, inf
        %v2795 = vsel %vm2794, %v2634, %v2793
        %vm2796 = vcmp.eq.f32.partialorder %v2634, 0.0
        %v2797 = vand.u32 %v2634, 2147483648
        %v2798 = vsel %vm2796, %v2797, %v2795
        %v2799 = vrsqrt.pop %v2635
        %v2800 = vmul.f32 %v2635, %v2799
        %vm2801 = vcmp.eq.f32.partialorder %v2635, inf
        %v2802 = vsel %vm2801, %v2635, %v2800
        %vm2803 = vcmp.eq.f32.partialorder %v2635, 0.0
        %v2804 = vand.u32 %v2635, 2147483648
        %v2805 = vsel %vm2803, %v2804, %v2802
        %v2806 = vrsqrt.pop %v2636
        %v2807 = vmul.f32 %v2636, %v2806
        %vm2808 = vcmp.eq.f32.partialorder %v2636, inf
        %v2809 = vsel %vm2808, %v2636, %v2807
        %vm2810 = vcmp.eq.f32.partialorder %v2636, 0.0
        %v2811 = vand.u32 %v2636, 2147483648
        %v2812 = vsel %vm2810, %v2811, %v2809
        %v2813 = vrsqrt.pop %v2637
        %v2814 = vmul.f32 %v2637, %v2813
        %vm2815 = vcmp.eq.f32.partialorder %v2637, inf
        %v2816 = vsel %vm2815, %v2637, %v2814
        %vm2817 = vcmp.eq.f32.partialorder %v2637, 0.0
        %v2818 = vand.u32 %v2637, 2147483648
        %v2819 = vsel %vm2817, %v2818, %v2816
        %v2820 = vrsqrt.pop %v2638
        %v2821 = vmul.f32 %v2638, %v2820
        %vm2822 = vcmp.eq.f32.partialorder %v2638, inf
        %v2823 = vsel %vm2822, %v2638, %v2821
        %vm2824 = vcmp.eq.f32.partialorder %v2638, 0.0
        %v2825 = vand.u32 %v2638, 2147483648
        %v2826 = vsel %vm2824, %v2825, %v2823
        %v2827 = vrsqrt.pop %v2639
        %v2828 = vmul.f32 %v2639, %v2827
        %vm2829 = vcmp.eq.f32.partialorder %v2639, inf
        %v2830 = vsel %vm2829, %v2639, %v2828
        %vm2831 = vcmp.eq.f32.partialorder %v2639, 0.0
        %v2832 = vand.u32 %v2639, 2147483648
        %v2833 = vsel %vm2831, %v2832, %v2830
        %v2834 = vrsqrt.pop %v2640
        %v2835 = vmul.f32 %v2640, %v2834
        %vm2836 = vcmp.eq.f32.partialorder %v2640, inf
        %v2837 = vsel %vm2836, %v2640, %v2835
        %vm2838 = vcmp.eq.f32.partialorder %v2640, 0.0
        %v2839 = vand.u32 %v2640, 2147483648
        %v2840 = vsel %vm2838, %v2839, %v2837
        %v2841 = vrsqrt.pop %v2641
        %v2842 = vmul.f32 %v2641, %v2841
        %vm2843 = vcmp.eq.f32.partialorder %v2641, inf
        %v2844 = vsel %vm2843, %v2641, %v2842
        %vm2845 = vcmp.eq.f32.partialorder %v2641, 0.0
        %v2846 = vand.u32 %v2641, 2147483648
        %v2847 = vsel %vm2845, %v2846, %v2844
        %v2848 = vrsqrt.pop %v2642
        %v2849 = vmul.f32 %v2642, %v2848
        %vm2850 = vcmp.eq.f32.partialorder %v2642, inf
        %v2851 = vsel %vm2850, %v2642, %v2849
        %vm2852 = vcmp.eq.f32.partialorder %v2642, 0.0
        %v2853 = vand.u32 %v2642, 2147483648
        %v2854 = vsel %vm2852, %v2853, %v2851
        %v2855 = vrsqrt.pop %v2643
        %v2856 = vmul.f32 %v2643, %v2855
        %vm2857 = vcmp.eq.f32.partialorder %v2643, inf
        %v2858 = vsel %vm2857, %v2643, %v2856
        %vm2859 = vcmp.eq.f32.partialorder %v2643, 0.0
        %v2860 = vand.u32 %v2643, 2147483648
        %v2861 = vsel %vm2859, %v2860, %v2858
        %v2862 = vrsqrt.pop %v2644
        %v2863 = vmul.f32 %v2644, %v2862
        %vm2864 = vcmp.eq.f32.partialorder %v2644, inf
        %v2865 = vsel %vm2864, %v2644, %v2863
        %vm2866 = vcmp.eq.f32.partialorder %v2644, 0.0
        %v2867 = vand.u32 %v2644, 2147483648
        %v2868 = vsel %vm2866, %v2867, %v2865
        %v2901 = vlaneseq
        %v2902 = vand.u32 %v2901, 127
        %v2903 = vlaneseq
        %v2904 = vshrl.u32 %v2903, 7
        %v2905 = vsub.s32 %v2902, %v2904
        %v2906 = vrot.slane %v2651, %v2905
        %v2907 = vadd.s32 %v2902, 4294967288
        %v2908 = vlaneseq
        %v2909 = vshrl.u32 %v2908, 7
        %v2910 = vsub.s32 %v2907, %v2909
        %v2911 = vrot.slane %v2658, %v2910
        %vm2912 = vcmask 130112
        %v2913 = vsel %vm2912, %v2911, %v2906
        %v2914 = vadd.s32 %v2902, 4294967280
        %v2915 = vlaneseq
        %v2916 = vshrl.u32 %v2915, 7
        %v2917 = vsub.s32 %v2914, %v2916
        %v2918 = vrot.slane %v2665, %v2917
        %vm2919 = vcmask 195712
        %v2920 = vsel %vm2919, %v2918, %v2913
        %v2921 = vadd.s32 %v2902, 4294967272
        %v2922 = vlaneseq
        %v2923 = vshrl.u32 %v2922, 7
        %v2924 = vsub.s32 %v2921, %v2923
        %v2925 = vrot.slane %v2672, %v2924
        %vm2926 = vcmask 261312
        %v2927 = vsel %vm2926, %v2925, %v2920
        %v2928 = vadd.s32 %v2902, 4294967264
        %v2929 = vlaneseq
        %v2930 = vshrl.u32 %v2929, 7
        %v2931 = vsub.s32 %v2928, %v2930
        %v2932 = vrot.slane %v2679, %v2931
        %vm2933 = vcmask 326912
        %v2934 = vsel %vm2933, %v2932, %v2927
        %v2935 = vadd.s32 %v2902, 4294967256
        %v2936 = vlaneseq
        %v2937 = vshrl.u32 %v2936, 7
        %v2938 = vsub.s32 %v2935, %v2937
        %v2939 = vrot.slane %v2686, %v2938
        %vm2940 = vcmask 392512
        %v2941 = vsel %vm2940, %v2939, %v2934
        %v2942 = vadd.s32 %v2902, 4294967248
        %v2943 = vlaneseq
        %v2944 = vshrl.u32 %v2943, 7
        %v2945 = vsub.s32 %v2942, %v2944
        %v2946 = vrot.slane %v2693, %v2945
        %vm2947 = vcmask 458112
        %v2948 = vsel %vm2947, %v2946, %v2941
        %v2949 = vadd.s32 %v2902, 4294967240
        %v2950 = vlaneseq
        %v2951 = vshrl.u32 %v2950, 7
        %v2952 = vsub.s32 %v2949, %v2951
        %v2953 = vrot.slane %v2700, %v2952
        %vm2954 = vcmask 523712
        %v2955 = vsel %vm2954, %v2953, %v2948
        %v2956 = vadd.s32 %v2902, 4294967232
        %v2957 = vlaneseq
        %v2958 = vshrl.u32 %v2957, 7
        %v2959 = vsub.s32 %v2956, %v2958
        %v2960 = vrot.slane %v2707, %v2959
        %vm2961 = vcmask 589312
        %v2962 = vsel %vm2961, %v2960, %v2955
        %v2963 = vadd.s32 %v2902, 4294967224
        %v2964 = vlaneseq
        %v2965 = vshrl.u32 %v2964, 7
        %v2966 = vsub.s32 %v2963, %v2965
        %v2967 = vrot.slane %v2714, %v2966
        %vm2968 = vcmask 654912
        %v2969 = vsel %vm2968, %v2967, %v2962
        %v2970 = vadd.s32 %v2902, 4294967216
        %v2971 = vlaneseq
        %v2972 = vshrl.u32 %v2971, 7
        %v2973 = vsub.s32 %v2970, %v2972
        %v2974 = vrot.slane %v2721, %v2973
        %vm2975 = vcmask 720512
        %v2976 = vsel %vm2975, %v2974, %v2969
        %v2977 = vadd.s32 %v2902, 4294967208
        %v2978 = vlaneseq
        %v2979 = vshrl.u32 %v2978, 7
        %v2980 = vsub.s32 %v2977, %v2979
        %v2981 = vrot.slane %v2728, %v2980
        %vm2982 = vcmask 786112
        %v2983 = vsel %vm2982, %v2981, %v2976
        %v2984 = vadd.s32 %v2902, 4294967200
        %v2985 = vlaneseq
        %v2986 = vshrl.u32 %v2985, 7
        %v2987 = vsub.s32 %v2984, %v2986
        %v2988 = vrot.slane %v2735, %v2987
        %vm2989 = vcmask 851712
        %v2990 = vsel %vm2989, %v2988, %v2983
        %v2991 = vadd.s32 %v2902, 4294967192
        %v2992 = vlaneseq
        %v2993 = vshrl.u32 %v2992, 7
        %v2994 = vsub.s32 %v2991, %v2993
        %v2995 = vrot.slane %v2742, %v2994
        %vm2996 = vcmask 917312
        %v2997 = vsel %vm2996, %v2995, %v2990
        %v2998 = vadd.s32 %v2902, 4294967184
        %v2999 = vlaneseq
        %v3000 = vshrl.u32 %v2999, 7
        %v3001 = vsub.s32 %v2998, %v3000
        %v3002 = vrot.slane %v2749, %v3001
        %vm3003 = vcmask 982912
        %v3004 = vsel %vm3003, %v3002, %v2997
        %v3005 = vadd.s32 %v2902, 4294967176
        %v3006 = vlaneseq
        %v3007 = vshrl.u32 %v3006, 7
        %v3008 = vsub.s32 %v3005, %v3007
        %v3009 = vrot.slane %v2756, %v3008
        %vm3010 = vcmask 1048512
        %v3011 = vsel %vm3010, %v3009, %v3004
        %v3012 = vlaneseq
        %v3013 = vshrl.u32 %v3012, 7
        %v3014 = vsub.s32 %v2902, %v3013
        %v3015 = vrot.slane %v2763, %v3014
        %v3016 = vlaneseq
        %v3017 = vshrl.u32 %v3016, 7
        %v3018 = vsub.s32 %v2907, %v3017
        %v3019 = vrot.slane %v2770, %v3018
        %v3020 = vsel %vm2912, %v3019, %v3015
        %v3021 = vlaneseq
        %v3022 = vshrl.u32 %v3021, 7
        %v3023 = vsub.s32 %v2914, %v3022
        %v3024 = vrot.slane %v2777, %v3023
        %v3025 = vsel %vm2919, %v3024, %v3020
        %v3026 = vlaneseq
        %v3027 = vshrl.u32 %v3026, 7
        %v3028 = vsub.s32 %v2921, %v3027
        %v3029 = vrot.slane %v2784, %v3028
        %v3030 = vsel %vm2926, %v3029, %v3025
        %v3031 = vlaneseq
        %v3032 = vshrl.u32 %v3031, 7
        %v3033 = vsub.s32 %v2928, %v3032
        %v3034 = vrot.slane %v2791, %v3033
        %v3035 = vsel %vm2933, %v3034, %v3030
        %v3036 = vlaneseq
        %v3037 = vshrl.u32 %v3036, 7
        %v3038 = vsub.s32 %v2935, %v3037
        %v3039 = vrot.slane %v2798, %v3038
        %v3040 = vsel %vm2940, %v3039, %v3035
        %v3041 = vlaneseq
        %v3042 = vshrl.u32 %v3041, 7
        %v3043 = vsub.s32 %v2942, %v3042
        %v3044 = vrot.slane %v2805, %v3043
        %v3045 = vsel %vm2947, %v3044, %v3040
        %v3046 = vlaneseq
        %v3047 = vshrl.u32 %v3046, 7
        %v3048 = vsub.s32 %v2949, %v3047
        %v3049 = vrot.slane %v2812, %v3048
        %v3050 = vsel %vm2954, %v3049, %v3045
        %v3051 = vlaneseq
        %v3052 = vshrl.u32 %v3051, 7
        %v3053 = vsub.s32 %v2956, %v3052
        %v3054 = vrot.slane %v2819, %v3053
        %v3055 = vsel %vm2961, %v3054, %v3050
        %v3056 = vlaneseq
        %v3057 = vshrl.u32 %v3056, 7
        %v3058 = vsub.s32 %v2963, %v3057
        %v3059 = vrot.slane %v2826, %v3058
        %v3060 = vsel %vm2968, %v3059, %v3055
        %v3061 = vlaneseq
        %v3062 = vshrl.u32 %v3061, 7
        %v3063 = vsub.s32 %v2970, %v3062
        %v3064 = vrot.slane %v2833, %v3063
        %v3065 = vsel %vm2975, %v3064, %v3060
        %v3066 = vlaneseq
        %v3067 = vshrl.u32 %v3066, 7
        %v3068 = vsub.s32 %v2977, %v3067
        %v3069 = vrot.slane %v2840, %v3068
        %v3070 = vsel %vm2982, %v3069, %v3065
        %v3071 = vlaneseq
        %v3072 = vshrl.u32 %v3071, 7
        %v3073 = vsub.s32 %v2984, %v3072
        %v3074 = vrot.slane %v2847, %v3073
        %v3075 = vsel %vm2989, %v3074, %v3070
        %v3076 = vlaneseq
        %v3077 = vshrl.u32 %v3076, 7
        %v3078 = vsub.s32 %v2991, %v3077
        %v3079 = vrot.slane %v2854, %v3078
        %v3080 = vsel %vm2996, %v3079, %v3075
        %v3081 = vlaneseq
        %v3082 = vshrl.u32 %v3081, 7
        %v3083 = vsub.s32 %v2998, %v3082
        %v3084 = vrot.slane %v2861, %v3083
        %v3085 = vsel %vm3003, %v3084, %v3080
        %v3086 = vlaneseq
        %v3087 = vshrl.u32 %v3086, 7
        %v3088 = vsub.s32 %v3005, %v3087
        %v3089 = vrot.slane %v2868, %v3088
        %v3090 = vsel %vm3010, %v3089, %v3085
        %vm3091 = vcmask 1041409
        %v3092 = vsel %vm3091, %v3090, %v3011
        %3094 = vst [vmem:[%s175] sm:$0x3] %v3092
        %s3095 = sand.u32 %s110, 1
        %s3096 = scalar_lea.sflag [#allocation3], %s3095
        %s3097 = sand.u32 %s110, 1
        %s3098 = smul.addr %s3097, 2
        %s3099 = scalar_lea.vmem [#allocation2], %s3098
        // Predicated region
        $region37: #{tpu_custom_call.1} parent=35 // pred_check
          %p3100 = pneg %p120
        $region38: #{tpu_custom_call.1} parent=35 // pred_check_branch
          %3102 = sbr.rel (%p3100) target = $region40
        $region39: #{tpu_custom_call.1} parent=35 // pred_region
          %s3104 = ssub.s32 32, 32
          %3105 = vsyncadd %s3096, %s3104
          %s3106 = smul.addr %s18, 32
          %s3107 = scalar_lea.hbm %s4, %s3106
          %s3109 = sshll.u32 %s3099, 4
          %s3110 = int_to_ptr.vmem [resolvable:$true] %s3109
          %3112 = dma.vmem_to_hbm [thread:$0]  %s3110, 32, %s3107, %s3096
        $region40: #{tpu_custom_call.1} parent=35 // pred_fallthru
          _
      $region36: #{tpu_custom_call.1} parent=5 // pred_fallthru
        _
      %p3113 = scmp.le.s32.totalorder 2, %s13
      // Predicated region
      $region41: #{tpu_custom_call.1} parent=5 // pred_check
        %p3114 = pneg %p3113
      $region42: #{tpu_custom_call.1} parent=5 // pred_check_branch
        %3116 = sbr.rel (%p3114) target = $region44
      $region43: #{tpu_custom_call.1} parent=5 // pred_region
        %s3117 = ssub.s32 %s13, 2
        // Predicated region
        $region45: #{tpu_custom_call.1} parent=43 // pred_check
          %p3118 = pneg %p126
        $region46: #{tpu_custom_call.1} parent=43 // pred_check_branch
          %3120 = sbr.rel (%p3118) target = $region48
        $region47: #{tpu_custom_call.1} parent=43 // pred_region
          %s3121 = sand.u32 %s111, 1
          %s3122 = scalar_lea.sflag [#allocation3], %s3121
          %s3123 = sand.u32 %s111, 1
          %s3124 = smul.addr %s3123, 2
          %s3125 = scalar_lea.vmem [#allocation2], %s3124
          %3126 = dma.done %s3122, 32
        $region48: #{tpu_custom_call.1} parent=43 // pred_fallthru
          _
      $region44: #{tpu_custom_call.1} parent=5 // pred_fallthru
        _
    $region6: #{tpu_custom_call.1} parent=1 // loop_footer
      %s17 = sadd.s32 1, %s13
    $region7: #{tpu_custom_call.1} parent=1 // loop_footer_branch
      %12 = sbr.rel target = $region3
    $region8: #{tpu_custom_call.1} parent=1 // loop_exit
      _
    %3127 = vsyncpa [#allocation3], 1
    %s3128 = scalar_lea.sflag [#allocation3], 1
    %3129 = vsyncpa %s3128, 1

</llo_original>
